<compile_context>
chip_gen: v7x
topology: tpu7x:2x2x1
jax: 0.10.0
libtpu: 0.0.40
codegen_flags: <defaults>
</compile_context>

<pallas_src>
import functools
import math

import jax
import jax.numpy as jnp
from jax.experimental import pallas as pl
from jax.experimental.pallas import tpu as pltpu


LEAKY_SLOPE = 0.2
BN_EPS = 0.8  # nn.BatchNorm1d(out_feat, 0.8) -> eps = 0.8
HIDDEN = (128, 256, 512, 1024)


def _round_up(x, m):
    return (x + m - 1) // m * m


def _leaky_relu(x):
    # For slope in (0, 1): LeakyReLU(x) == max(x, slope * x).  vmul+vmax.
    return jnp.maximum(x, LEAKY_SLOPE * x)


def _bn_leaky(x, gamma, beta, mask, inv_n):
    """Fused train-mode BatchNorm1d (eps=0.8) + LeakyReLU(0.2).

    Single-pass statistics (sum / sum-of-squares over the valid rows), then a
    single FMA per element: y = x * scale + shift.
    """
    xm = x if mask is None else jnp.where(mask, x, 0.0)
    s = jnp.sum(xm, axis=0, keepdims=True)
    ss = jnp.sum(xm * xm, axis=0, keepdims=True)
    mean = s * inv_n
    var = ss * inv_n - mean * mean          # biased variance (PyTorch train mode)
    inv = jax.lax.rsqrt(var + BN_EPS)       # f32 rsqrt -> EUP
    scale = inv * gamma                     # (1, N)
    shift = beta - mean * scale             # (1, N)
    return _leaky_relu(x * scale + shift)


# --------------------------------------------------------------------------
# Kernel 1: layers 1-4 (full-batch BN stats => batch axis intentionally NOT
# tiled across a grid; per-tile stats would change semantics).
# --------------------------------------------------------------------------
def _build_trunk_kernel(n_rows, n_valid):
    inv_n = 1.0 / float(n_valid)
    need_mask = n_rows != n_valid

    def kernel(z_ref,
               w1_ref, b1_ref,
               w2_ref, b2_ref, g2_ref, be2_ref,
               w3_ref, b3_ref, g3_ref, be3_ref,
               w4_ref, b4_ref, g4_ref, be4_ref,
               h_ref):
        if need_mask:
            row_ids = jax.lax.broadcasted_iota(jnp.int32, (n_rows, 1), 0)
            mask = row_ids < n_valid
        else:
            mask = None

        def mm(x_f32, w_ref):
            # bf16 x bf16 on the MXU, f32 accumulation.
            return jnp.dot(x_f32.astype(jnp.bfloat16), w_ref[...],
                           preferred_element_type=jnp.float32)

        # block(latent, 128, normalize=False)
        h = _leaky_relu(mm(z_ref[...], w1_ref) + b1_ref[...])
        # block(128, 256) / block(256, 512) / block(512, 1024)
        h = _bn_leaky(mm(h, w2_ref) + b2_ref[...], g2_ref[...], be2_ref[...],
                      mask, inv_n)
        h = _bn_leaky(mm(h, w3_ref) + b3_ref[...], g3_ref[...], be3_ref[...],
                      mask, inv_n)
        h = _bn_leaky(mm(h, w4_ref) + b4_ref[...], g4_ref[...], be4_ref[...],
                      mask, inv_n)
        # Emit bf16: exactly what the layer-5 matmul LHS needs.
        h_ref[...] = h.astype(jnp.bfloat16)

    return kernel


# --------------------------------------------------------------------------
# Kernel 2: Linear(1024 -> out_pad) + tanh, tiled over (M, N), K resident.
# --------------------------------------------------------------------------
def _out_layer_kernel(h_ref, w_ref, b_ref, o_ref):
    acc = jnp.dot(h_ref[...], w_ref[...], preferred_element_type=jnp.float32)
    o_ref[...] = jnp.tanh(acc + b_ref[...])


# --------------------------------------------------------------------------
# Parameters
# --------------------------------------------------------------------------
def init_params(key, latent_dim, out_dim):
    """Deterministic PyTorch-style init: U(-1/sqrt(fan_in), 1/sqrt(fan_in))."""
    dims = [latent_dim, *HIDDEN, out_dim]
    params = []
    for i in range(5):
        fan_in, fan_out = dims[i], dims[i + 1]
        key, kw, kb = jax.random.split(key, 3)
        bound = 1.0 / math.sqrt(float(fan_in))
        w = jax.random.uniform(kw, (fan_in, fan_out), jnp.float32, -bound, bound)
        b = jax.random.uniform(kb, (1, fan_out), jnp.float32, -bound, bound)
        params.append((w, b))
    # BatchNorm affine params for layers 2,3,4 (gamma=1, beta=0 at init).
    bn = [(jnp.ones((1, d), jnp.float32), jnp.zeros((1, d), jnp.float32))
          for d in (256, 512, 1024)]
    return params, bn


def prepare_params(params, bn, img_shape):
    """One-time weight prep: bf16 casts + lane-dense padding of the last layer.

    Call this ONCE and reuse the result; doing it inside the forward would
    re-materialize all weights in HBM on every call.
    """
    out_dim = math.prod(img_shape)
    out_pad = _round_up(out_dim, 128)

    (w1, b1), (w2, b2), (w3, b3), (w4, b4), (w5, b5) = params
    (g2, be2), (g3, be3), (g4, be4) = bn

    if out_pad != out_dim:
        w5 = jnp.pad(w5, ((0, 0), (0, out_pad - out_dim)))
        b5 = jnp.pad(b5, ((0, 0), (0, out_pad - out_dim)))

    bf16 = lambda w: w.astype(jnp.bfloat16)
    trunk = (bf16(w1), b1,
             bf16(w2), b2, g2, be2,
             bf16(w3), b3, g3, be3,
             bf16(w4), b4, g4, be4)
    head = (bf16(w5), b5)
    return trunk, head


# --------------------------------------------------------------------------
# Forward
# --------------------------------------------------------------------------
@functools.partial(jax.jit, static_argnames=("img_shape",))
def generator_forward(z, trunk, head, img_shape):
    B, latent = z.shape
    out_dim = math.prod(img_shape)
    out_pad = _round_up(out_dim, 128)

    w5, b5 = head
    assert w5.shape == (1024, out_pad), (
        "head params were not prepared for this img_shape; call prepare_params")

    # M tiling for the final layer.  Small batches: one block.  Large batches:
    # 256-row blocks (feeds v6e/v7x's 2x256^2 MXU; on v5e 128 would be the
    # ideal tile, 256 still keeps its 4x128^2 MXU fed).
    if B <= 256:
        b_pad = _round_up(B, 16)          # bf16 packs 16 rows per vreg
        tm = b_pad
    else:
        b_pad = _round_up(B, 256)
        tm = 256
    tn = 512 if out_pad % 512 == 0 else (256 if out_pad % 256 == 0 else 128)

    zp = z if b_pad == B else jnp.pad(z, ((0, b_pad - B), (0, 0)))

    # ---------------- Kernel 1: layers 1-4 (batch-resident) ----------------
    vmem_spec = pl.BlockSpec(memory_space=pltpu.MemorySpace.VMEM)
    trunk_args = (zp,) + trunk

    w_bytes = 2 * (latent * 128 + 128 * 256 + 256 * 512 + 512 * 1024)
    bias_bytes = 4 * (128 + 256 + 512 + 1024 + 2 * (256 + 512 + 1024))
    # Conservative resident-set estimate: f32 activations for every layer,
    # bf16 matmul-LHS copies, bf16 h4 output, weights, + headroom.
    act_bytes = b_pad * ((latent + 128 + 256 + 512 + 1024) * 4
                         + (latent + 128 + 256 + 512) * 2
                         + 1024 * 2)
    k1_est = w_bytes + bias_bytes + act_bytes + (1 << 20)
    # v7x has only 64 MiB VMEM per TensorCore (v5e/v6e: 128 MiB).
    assert k1_est <= 56 * 1024 * 1024, (
        f"trunk-kernel VMEM estimate {k1_est / 2**20:.1f} MiB exceeds the v7x "
        "budget; reduce the batch size")
    k1_vmem = max(32 * 1024 * 1024, _round_up(k1_est, 1 << 20))

    k1_cost = pl.CostEstimate(
        flops=2 * b_pad * (latent * 128 + 128 * 256 + 256 * 512 + 512 * 1024),
        transcendentals=256 + 512 + 1024,                      # BN rsqrt
        bytes_accessed=(b_pad * latent * 4 + w_bytes + bias_bytes
                        + b_pad * 1024 * 2))

    h4 = pl.pallas_call(
        _build_trunk_kernel(b_pad, B),
        out_shape=jax.ShapeDtypeStruct((b_pad, 1024), jnp.bfloat16),
        in_specs=[vmem_spec] * len(trunk_args),
        out_specs=vmem_spec,
        compiler_params=pltpu.CompilerParams(vmem_limit_bytes=k1_vmem),
        cost_estimate=k1_cost,
    )(*trunk_args)

    # --------- Kernel 2: Linear(1024 -> out_pad) + tanh, tiled -------------
    k2_cost = pl.CostEstimate(
        flops=2 * b_pad * 1024 * out_pad,
        transcendentals=b_pad * out_pad,                        # tanh
        bytes_accessed=(b_pad * 1024 * 2 + 1024 * out_pad * 2
                        + out_pad * 4 + b_pad * out_pad * 4))

    flat = pl.pallas_call(
        _out_layer_kernel,
        out_shape=jax.ShapeDtypeStruct((b_pad, out_pad), jnp.float32),
        grid=(b_pad // tm, out_pad // tn),
        in_specs=[pl.BlockSpec((tm, 1024), lambda i, j: (i, 0)),
                  pl.BlockSpec((1024, tn), lambda i, j: (0, j)),
                  pl.BlockSpec((1, tn), lambda i, j: (0, j))],
        out_specs=pl.BlockSpec((tm, tn), lambda i, j: (i, j)),
        compiler_params=pltpu.CompilerParams(
            # Both axes independent -> shard across v7x's 2 TensorCores
            # (harmless on single-TC v5e/v6e).
            dimension_semantics=("parallel", "parallel"),
            vmem_limit_bytes=32 * 1024 * 1024),
        cost_estimate=k2_cost,
    )(h4, w5, b5)

    # Drop padding, then img.view(B, *img_shape)  (NCHW).
    return flat[:B, :out_dim].reshape((B,) + tuple(img_shape))


if __name__ == "__main__":
    latent_dim = 32
    img_shape = (1, 16, 16)   # (C, H, W) -> prod = 256
    batch = 8

    key = jax.random.PRNGKey(0)
    key, zkey = jax.random.split(key)
    z = jax.random.normal(zkey, (batch, latent_dim), jnp.float32)

    params, bn = init_params(key, latent_dim, math.prod(img_shape))
    trunk, head = prepare_params(params, bn, img_shape)   # one-time weight prep

    img = generator_forward(z, trunk, head, img_shape)
    jax.block_until_ready(img)

    assert img.shape == (batch,) + img_shape, img.shape
    assert img.dtype == jnp.float32
    assert bool(jnp.all(jnp.isfinite(img)))
    print("KERNEL_OK")
</pallas_src>

<mosaic_0001>
module attributes {stable_mosaic.version = 11 : i64} {
  func.func @_out_layer_kernel(%arg0: i32, %arg1: i32, %arg2: memref<16x1024xbf16, #tpu.memory_space<vmem>>, %arg3: memref<1024x256xbf16, #tpu.memory_space<vmem>>, %arg4: memref<1x256xf32, #tpu.memory_space<vmem>>, %arg5: memref<16x256xf32, #tpu.memory_space<vmem>>) attributes {dimension_semantics = [#tpu.dimension_semantics<parallel>, #tpu.dimension_semantics<parallel>], iteration_bounds = array<i64: 1, 1>, scalar_prefetch = 0 : i64, scratch_operands = 0 : i64, tpu.core_type = #tpu.core_type<tc>, window_params = [{transform_indices = @transform_0, window_bounds = array<i64: 16, 1024>}, {transform_indices = @transform_1, window_bounds = array<i64: 1024, 256>}, {transform_indices = @transform_2, window_bounds = array<i64: 1, 256>}, {transform_indices = @transform_3, window_bounds = array<i64: 16, 256>}]} {
    %c0 = arith.constant 0 : index
    %c0_0 = arith.constant 0 : index
    %0 = vector.load %arg2[%c0, %c0_0] : memref<16x1024xbf16, #tpu.memory_space<vmem>>, vector<16x1024xbf16>
    %c0_1 = arith.constant 0 : index
    %c0_2 = arith.constant 0 : index
    %1 = vector.load %arg3[%c0_1, %c0_2] : memref<1024x256xbf16, #tpu.memory_space<vmem>>, vector<1024x256xbf16>
    %cst = arith.constant dense<0.000000e+00> : vector<16x256xf32>
    %2 = tpu.matmul %0, %1, %cst {dimension_numbers = #tpu.dot_dimension_numbers<[1], [0], [0], [1], [0, 0, 1, 1], [], []>} : vector<16x1024xbf16>, vector<1024x256xbf16>, vector<16x256xf32> -> vector<16x256xf32>
    %c0_3 = arith.constant 0 : index
    %c0_4 = arith.constant 0 : index
    %3 = vector.load %arg4[%c0_3, %c0_4] : memref<1x256xf32, #tpu.memory_space<vmem>>, vector<1x256xf32>
    %4 = vector.broadcast %3 : vector<1x256xf32> to vector<16x256xf32>
    %5 = arith.addf %2, %4 : vector<16x256xf32>
    %6 = math.tanh %5 : vector<16x256xf32>
    %c0_5 = arith.constant 0 : index
    %c0_6 = arith.constant 0 : index
    %7 = vector.load %arg5[%c0_5, %c0_6] : memref<16x256xf32, #tpu.memory_space<vmem>>, vector<16x256xf32>
    tpu.vector_store %arg5[%c0_5, %c0_6], %6 {strides = array<i32>} : memref<16x256xf32, #tpu.memory_space<vmem>>, vector<16x256xf32>,
    return
  }
  func.func @transform_0(%arg0: i32, %arg1: i32) -> (i32, i32) {
    %c0_i32 = arith.constant 0 : i32
    %c0_i32_0 = arith.constant 0 : i32
    return %arg0, %c0_i32 : i32, i32
  }
  func.func @transform_1(%arg0: i32, %arg1: i32) -> (i32, i32) {
    %c0_i32 = arith.constant 0 : i32
    %c0_i32_0 = arith.constant 0 : i32
    return %c0_i32, %arg1 : i32, i32
  }
  func.func @transform_2(%arg0: i32, %arg1: i32) -> (i32, i32) {
    %c0_i32 = arith.constant 0 : i32
    %c0_i32_0 = arith.constant 0 : i32
    return %c0_i32, %arg1 : i32, i32
  }
  func.func @transform_3(%arg0: i32, %arg1: i32) -> (i32, i32) {
    %c0_i32 = arith.constant 0 : i32
    return %arg0, %arg1 : i32, i32
  }
}

module attributes {stable_mosaic.version = 11 : i64} {
  func.func @kernel(%arg0: memref<16x32xf32, #tpu.memory_space<vmem>>, %arg1: memref<32x128xbf16, #tpu.memory_space<vmem>>, %arg2: memref<1x128xf32, #tpu.memory_space<vmem>>, %arg3: memref<128x256xbf16, #tpu.memory_space<vmem>>, %arg4: memref<1x256xf32, #tpu.memory_space<vmem>>, %arg5: memref<1x256xf32, #tpu.memory_space<vmem>>, %arg6: memref<1x256xf32, #tpu.memory_space<vmem>>, %arg7: memref<256x512xbf16, #tpu.memory_space<vmem>>, %arg8: memref<1x512xf32, #tpu.memory_space<vmem>>, %arg9: memref<1x512xf32, #tpu.memory_space<vmem>>, %arg10: memref<1x512xf32, #tpu.memory_space<vmem>>, %arg11: memref<512x1024xbf16, #tpu.memory_space<vmem>>, %arg12: memref<1x1024xf32, #tpu.memory_space<vmem>>, %arg13: memref<1x1024xf32, #tpu.memory_space<vmem>>, %arg14: memref<1x1024xf32, #tpu.memory_space<vmem>>, %arg15: memref<16x1024xbf16, #tpu.memory_space<vmem>>) attributes {dimension_semantics = [], scalar_prefetch = 0 : i64, scratch_operands = 0 : i64, tpu.core_type = #tpu.core_type<tc>} {
    %0 = tpu.iota {dimensions = array<i32: 0>} : vector<16x1xi32>
    %c8_i32 = arith.constant 8 : i32
    %1 = vector.broadcast %c8_i32 : i32 to vector<16x1xi32>
    %2 = arith.cmpi slt, %0, %1 : vector<16x1xi32>
    %c0 = arith.constant 0 : index
    %c0_0 = arith.constant 0 : index
    %3 = vector.load %arg0[%c0, %c0_0] : memref<16x32xf32, #tpu.memory_space<vmem>>, vector<16x32xf32>
    %4 = arith.truncf %3 : vector<16x32xf32> to vector<16x32xbf16>
    %c0_1 = arith.constant 0 : index
    %c0_2 = arith.constant 0 : index
    %5 = vector.load %arg1[%c0_1, %c0_2] : memref<32x128xbf16, #tpu.memory_space<vmem>>, vector<32x128xbf16>
    %cst = arith.constant dense<0.000000e+00> : vector<16x128xf32>
    %6 = tpu.matmul %4, %5, %cst {dimension_numbers = #tpu.dot_dimension_numbers<[1], [0], [0], [1], [0, 0, 1, 1], [], []>} : vector<16x32xbf16>, vector<32x128xbf16>, vector<16x128xf32> -> vector<16x128xf32>
    %c0_3 = arith.constant 0 : index
    %c0_4 = arith.constant 0 : index
    %7 = vector.load %arg2[%c0_3, %c0_4] : memref<1x128xf32, #tpu.memory_space<vmem>>, vector<1x128xf32>
    %8 = vector.broadcast %7 : vector<1x128xf32> to vector<16x128xf32>
    %9 = arith.addf %6, %8 : vector<16x128xf32>
    %cst_5 = arith.constant 2.000000e-01 : f32
    %10 = vector.broadcast %cst_5 : f32 to vector<16x128xf32>
    %11 = arith.mulf %10, %9 : vector<16x128xf32>
    %12 = arith.maximumf %9, %11 : vector<16x128xf32>
    %13 = arith.truncf %12 : vector<16x128xf32> to vector<16x128xbf16>
    %c0_6 = arith.constant 0 : index
    %c0_7 = arith.constant 0 : index
    %14 = vector.load %arg3[%c0_6, %c0_7] : memref<128x256xbf16, #tpu.memory_space<vmem>>, vector<128x256xbf16>
    %cst_8 = arith.constant dense<0.000000e+00> : vector<16x256xf32>
    %15 = tpu.matmul %13, %14, %cst_8 {dimension_numbers = #tpu.dot_dimension_numbers<[1], [0], [0], [1], [0, 0, 1, 1], [], []>} : vector<16x128xbf16>, vector<128x256xbf16>, vector<16x256xf32> -> vector<16x256xf32>
    %c0_9 = arith.constant 0 : index
    %c0_10 = arith.constant 0 : index
    %16 = vector.load %arg4[%c0_9, %c0_10] : memref<1x256xf32, #tpu.memory_space<vmem>>, vector<1x256xf32>
    %17 = vector.broadcast %16 : vector<1x256xf32> to vector<16x256xf32>
    %18 = arith.addf %15, %17 : vector<16x256xf32>
    %c0_11 = arith.constant 0 : index
    %c0_12 = arith.constant 0 : index
    %19 = vector.load %arg5[%c0_11, %c0_12] : memref<1x256xf32, #tpu.memory_space<vmem>>, vector<1x256xf32>
    %c0_13 = arith.constant 0 : index
    %c0_14 = arith.constant 0 : index
    %20 = vector.load %arg6[%c0_13, %c0_14] : memref<1x256xf32, #tpu.memory_space<vmem>>, vector<1x256xf32>
    %cst_15 = arith.constant 0.000000e+00 : f32
    %21 = vector.shape_cast %2 : vector<16x1xi1> to vector<16x1xi1>
    %22 = vector.broadcast %21 : vector<16x1xi1> to vector<16x256xi1>
    %23 = vector.broadcast %cst_15 : f32 to vector<16x256xf32>
    %24 = arith.select %22, %18, %23 : vector<16x256xi1>, vector<16x256xf32>
    %cst_16 = arith.constant dense<0.000000e+00> : vector<256xf32>
    %25 = vector.multi_reduction <add>, %24, %cst_16 [0] : vector<16x256xf32> to vector<256xf32>
    %26 = vector.shape_cast %25 : vector<256xf32> to vector<1x256xf32>
    %27 = arith.mulf %24, %24 : vector<16x256xf32>
    %cst_17 = arith.constant dense<0.000000e+00> : vector<256xf32>
    %28 = vector.multi_reduction <add>, %27, %cst_17 [0] : vector<16x256xf32> to vector<256xf32>
    %29 = vector.shape_cast %28 : vector<256xf32> to vector<1x256xf32>
    %cst_18 = arith.constant 1.250000e-01 : f32
    %30 = vector.broadcast %cst_18 : f32 to vector<1x256xf32>
    %31 = arith.mulf %26, %30 : vector<1x256xf32>
    %cst_19 = arith.constant 1.250000e-01 : f32
    %32 = vector.broadcast %cst_19 : f32 to vector<1x256xf32>
    %33 = arith.mulf %29, %32 : vector<1x256xf32>
    %34 = arith.mulf %31, %31 : vector<1x256xf32>
    %35 = arith.subf %33, %34 : vector<1x256xf32>
    %cst_20 = arith.constant 8.000000e-01 : f32
    %36 = vector.broadcast %cst_20 : f32 to vector<1x256xf32>
    %37 = arith.addf %35, %36 : vector<1x256xf32>
    %38 = math.rsqrt %37 : vector<1x256xf32>
    %39 = arith.mulf %38, %19 : vector<1x256xf32>
    %40 = arith.mulf %31, %39 : vector<1x256xf32>
    %41 = arith.subf %20, %40 : vector<1x256xf32>
    %42 = vector.broadcast %39 : vector<1x256xf32> to vector<16x256xf32>
    %43 = arith.mulf %18, %42 : vector<16x256xf32>
    %44 = vector.broadcast %41 : vector<1x256xf32> to vector<16x256xf32>
    %45 = arith.addf %43, %44 : vector<16x256xf32>
    %cst_21 = arith.constant 2.000000e-01 : f32
    %46 = vector.broadcast %cst_21 : f32 to vector<16x256xf32>
    %47 = arith.mulf %46, %45 : vector<16x256xf32>
    %48 = arith.maximumf %45, %47 : vector<16x256xf32>
    %49 = arith.truncf %48 : vector<16x256xf32> to vector<16x256xbf16>
    %c0_22 = arith.constant 0 : index
    %c0_23 = arith.constant 0 : index
    %50 = vector.load %arg7[%c0_22, %c0_23] : memref<256x512xbf16, #tpu.memory_space<vmem>>, vector<256x512xbf16>
    %cst_24 = arith.constant dense<0.000000e+00> : vector<16x512xf32>
    %51 = tpu.matmul %49, %50, %cst_24 {dimension_numbers = #tpu.dot_dimension_numbers<[1], [0], [0], [1], [0, 0, 1, 1], [], []>} : vector<16x256xbf16>, vector<256x512xbf16>, vector<16x512xf32> -> vector<16x512xf32>
    %c0_25 = arith.constant 0 : index
    %c0_26 = arith.constant 0 : index
    %52 = vector.load %arg8[%c0_25, %c0_26] : memref<1x512xf32, #tpu.memory_space<vmem>>, vector<1x512xf32>
    %53 = vector.broadcast %52 : vector<1x512xf32> to vector<16x512xf32>
    %54 = arith.addf %51, %53 : vector<16x512xf32>
    %c0_27 = arith.constant 0 : index
    %c0_28 = arith.constant 0 : index
    %55 = vector.load %arg9[%c0_27, %c0_28] : memref<1x512xf32, #tpu.memory_space<vmem>>, vector<1x512xf32>
    %c0_29 = arith.constant 0 : index
    %c0_30 = arith.constant 0 : index
    %56 = vector.load %arg10[%c0_29, %c0_30] : memref<1x512xf32, #tpu.memory_space<vmem>>, vector<1x512xf32>
    %cst_31 = arith.constant 0.000000e+00 : f32
    %57 = vector.shape_cast %2 : vector<16x1xi1> to vector<16x1xi1>
    %58 = vector.broadcast %57 : vector<16x1xi1> to vector<16x512xi1>
    %59 = vector.broadcast %cst_31 : f32 to vector<16x512xf32>
    %60 = arith.select %58, %54, %59 : vector<16x512xi1>, vector<16x512xf32>
    %cst_32 = arith.constant dense<0.000000e+00> : vector<512xf32>
    %61 = vector.multi_reduction <add>, %60, %cst_32 [0] : vector<16x512xf32> to vector<512xf32>
    %62 = vector.shape_cast %61 : vector<512xf32> to vector<1x512xf32>
    %63 = arith.mulf %60, %60 : vector<16x512xf32>
    %cst_33 = arith.constant dense<0.000000e+00> : vector<512xf32>
    %64 = vector.multi_reduction <add>, %63, %cst_33 [0] : vector<16x512xf32> to vector<512xf32>
    %65 = vector.shape_cast %64 : vector<512xf32> to vector<1x512xf32>
    %cst_34 = arith.constant 1.250000e-01 : f32
    %66 = vector.broadcast %cst_34 : f32 to vector<1x512xf32>
    %67 = arith.mulf %62, %66 : vector<1x512xf32>
    %cst_35 = arith.constant 1.250000e-01 : f32
    %68 = vector.broadcast %cst_35 : f32 to vector<1x512xf32>
    %69 = arith.mulf %65, %68 : vector<1x512xf32>
    %70 = arith.mulf %67, %67 : vector<1x512xf32>
    %71 = arith.subf %69, %70 : vector<1x512xf32>
    %cst_36 = arith.constant 8.000000e-01 : f32
    %72 = vector.broadcast %cst_36 : f32 to vector<1x512xf32>
    %73 = arith.addf %71, %72 : vector<1x512xf32>
    %74 = math.rsqrt %73 : vector<1x512xf32>
    %75 = arith.mulf %74, %55 : vector<1x512xf32>
    %76 = arith.mulf %67, %75 : vector<1x512xf32>
    %77 = arith.subf %56, %76 : vector<1x512xf32>
    %78 = vector.broadcast %75 : vector<1x512xf32> to vector<16x512xf32>
    %79 = arith.mulf %54, %78 : vector<16x512xf32>
    %80 = vector.broadcast %77 : vector<1x512xf32> to vector<16x512xf32>
    %81 = arith.addf %79, %80 : vector<16x512xf32>
    %cst_37 = arith.constant 2.000000e-01 : f32
    %82 = vector.broadcast %cst_37 : f32 to vector<16x512xf32>
    %83 = arith.mulf %82, %81 : vector<16x512xf32>
    %84 = arith.maximumf %81, %83 : vector<16x512xf32>
    %85 = arith.truncf %84 : vector<16x512xf32> to vector<16x512xbf16>
    %c0_38 = arith.constant 0 : index
    %c0_39 = arith.constant 0 : index
    %86 = vector.load %arg11[%c0_38, %c0_39] : memref<512x1024xbf16, #tpu.memory_space<vmem>>, vector<512x1024xbf16>
    %cst_40 = arith.constant dense<0.000000e+00> : vector<16x1024xf32>
    %87 = tpu.matmul %85, %86, %cst_40 {dimension_numbers = #tpu.dot_dimension_numbers<[1], [0], [0], [1], [0, 0, 1, 1], [], []>} : vector<16x512xbf16>, vector<512x1024xbf16>, vector<16x1024xf32> -> vector<16x1024xf32>
    %c0_41 = arith.constant 0 : index
    %c0_42 = arith.constant 0 : index
    %88 = vector.load %arg12[%c0_41, %c0_42] : memref<1x1024xf32, #tpu.memory_space<vmem>>, vector<1x1024xf32>
    %89 = vector.broadcast %88 : vector<1x1024xf32> to vector<16x1024xf32>
    %90 = arith.addf %87, %89 : vector<16x1024xf32>
    %c0_43 = arith.constant 0 : index
    %c0_44 = arith.constant 0 : index
    %91 = vector.load %arg13[%c0_43, %c0_44] : memref<1x1024xf32, #tpu.memory_space<vmem>>, vector<1x1024xf32>
    %c0_45 = arith.constant 0 : index
    %c0_46 = arith.constant 0 : index
    %92 = vector.load %arg14[%c0_45, %c0_46] : memref<1x1024xf32, #tpu.memory_space<vmem>>, vector<1x1024xf32>
    %cst_47 = arith.constant 0.000000e+00 : f32
    %93 = vector.shape_cast %2 : vector<16x1xi1> to vector<16x1xi1>
    %94 = vector.broadcast %93 : vector<16x1xi1> to vector<16x1024xi1>
    %95 = vector.broadcast %cst_47 : f32 to vector<16x1024xf32>
    %96 = arith.select %94, %90, %95 : vector<16x1024xi1>, vector<16x1024xf32>
    %cst_48 = arith.constant dense<0.000000e+00> : vector<1024xf32>
    %97 = vector.multi_reduction <add>, %96, %cst_48 [0] : vector<16x1024xf32> to vector<1024xf32>
    %98 = vector.shape_cast %97 : vector<1024xf32> to vector<1x1024xf32>
    %99 = arith.mulf %96, %96 : vector<16x1024xf32>
    %cst_49 = arith.constant dense<0.000000e+00> : vector<1024xf32>
    %100 = vector.multi_reduction <add>, %99, %cst_49 [0] : vector<16x1024xf32> to vector<1024xf32>
    %101 = vector.shape_cast %100 : vector<1024xf32> to vector<1x1024xf32>
    %cst_50 = arith.constant 1.250000e-01 : f32
    %102 = vector.broadcast %cst_50 : f32 to vector<1x1024xf32>
    %103 = arith.mulf %98, %102 : vector<1x1024xf32>
    %cst_51 = arith.constant 1.250000e-01 : f32
    %104 = vector.broadcast %cst_51 : f32 to vector<1x1024xf32>
    %105 = arith.mulf %101, %104 : vector<1x1024xf32>
    %106 = arith.mulf %103, %103 : vector<1x1024xf32>
    %107 = arith.subf %105, %106 : vector<1x1024xf32>
    %cst_52 = arith.constant 8.000000e-01 : f32
    %108 = vector.broadcast %cst_52 : f32 to vector<1x1024xf32>
    %109 = arith.addf %107, %108 : vector<1x1024xf32>
    %110 = math.rsqrt %109 : vector<1x1024xf32>
    %111 = arith.mulf %110, %91 : vector<1x1024xf32>
    %112 = arith.mulf %103, %111 : vector<1x1024xf32>
    %113 = arith.subf %92, %112 : vector<1x1024xf32>
    %114 = vector.broadcast %111 : vector<1x1024xf32> to vector<16x1024xf32>
    %115 = arith.mulf %90, %114 : vector<16x1024xf32>
    %116 = vector.broadcast %113 : vector<1x1024xf32> to vector<16x1024xf32>
    %117 = arith.addf %115, %116 : vector<16x1024xf32>
    %cst_53 = arith.constant 2.000000e-01 : f32
    %118 = vector.broadcast %cst_53 : f32 to vector<16x1024xf32>
    %119 = arith.mulf %118, %117 : vector<16x1024xf32>
    %120 = arith.maximumf %117, %119 : vector<16x1024xf32>
    %121 = arith.truncf %120 : vector<16x1024xf32> to vector<16x1024xbf16>
    %c0_54 = arith.constant 0 : index
    %c0_55 = arith.constant 0 : index
    %122 = vector.load %arg15[%c0_54, %c0_55] : memref<16x1024xbf16, #tpu.memory_space<vmem>>, vector<16x1024xbf16>
    tpu.vector_store %arg15[%c0_54, %c0_55], %121 {strides = array<i32>} : memref<16x1024xbf16, #tpu.memory_space<vmem>>, vector<16x1024xbf16>,
    return
  }
}

</mosaic_0001>

<llo_original>
// kernel: generator_forward.3
$region0: #{generator_forward.3}
  #allocation0 [shape = 'u32[]', space=smem, size = 0x4, offset = 0x4, fixed_abs, tag = 'smem constant byte address 0x4 - core index']
  #allocation1 [shape = 'u32[144,128]{1,0:T(1,128)}', space=vmem, size = 0x12000, scoped, tag = 'internal scratch']
  %s0 = inlined_call_operand.vmem [shape: bf16[16,1024], index: 0, kind: input, shape index: {}]
  %s1 = inlined_call_operand.vmem [shape: bf16[1024,256], index: 1, kind: input, shape index: {}]
  %s2 = inlined_call_operand.vmem [shape: f32[1,256], index: 2, kind: input, shape index: {}]
  %s3 = inlined_call_operand.vmem [shape: f32[16,256], index: 3, kind: output, shape index: {}]
  %s4 = sld [smem:[#allocation0]]
  $region22: #{generator_forward.3} parent=0
    _
  %s6 = ssub.s32 1, %s4
  %s7 = scalar_select 0, %s6, %s4
  // Predicated region
  $region2: #{generator_forward.3} parent=0 // pred_check
    _
  $region3: #{generator_forward.3} parent=0 // pred_check_branch
    %9 = sbr.rel (0) target = $region5
  $region4: #{generator_forward.3} parent=0 // pred_region
    _
  $region5: #{generator_forward.3} parent=0 // pred_fallthru
    _
  // Predicated region
  $region6: #{generator_forward.3} parent=0 // pred_check
    _
  $region7: #{generator_forward.3} parent=0 // pred_check_branch
    %11 = sbr.rel (0) target = $region9
  $region8: #{generator_forward.3} parent=0 // pred_region
    _
  $region9: #{generator_forward.3} parent=0 // pred_fallthru
    _
  // Predicated region
  $region10: #{generator_forward.3} parent=0 // pred_check
    _
  $region11: #{generator_forward.3} parent=0 // pred_check_branch
    %13 = sbr.rel (0) target = $region13
  $region12: #{generator_forward.3} parent=0 // pred_region
    _
  $region13: #{generator_forward.3} parent=0 // pred_fallthru
    _
  %v14 = vld [vmem:[%s0] sm:$0xff]
  %v15 = vld [vmem:[%s0 + $0x8] sm:$0xff]
  %v16 = vld [vmem:[%s0 + $0x10] sm:$0xff]
  %v17 = vld [vmem:[%s0 + $0x18] sm:$0xff]
  %v18 = vld [vmem:[%s0 + $0x20] sm:$0xff]
  %v19 = vld [vmem:[%s0 + $0x28] sm:$0xff]
  %v20 = vld [vmem:[%s0 + $0x30] sm:$0xff]
  %v21 = vld [vmem:[%s0 + $0x38] sm:$0xff]
  %v22 = vld [vmem:[%s1] sm:$0xff]
  %v23 = vld [vmem:[%s1 + $0x8] sm:$0xff]
  %v24 = vld [vmem:[%s1 + $0x10] sm:$0xff]
  %v25 = vld [vmem:[%s1 + $0x18] sm:$0xff]
  %v26 = vld [vmem:[%s1 + $0x20] sm:$0xff]
  %v27 = vld [vmem:[%s1 + $0x28] sm:$0xff]
  %v28 = vld [vmem:[%s1 + $0x30] sm:$0xff]
  %v29 = vld [vmem:[%s1 + $0x38] sm:$0xff]
  %v30 = vld [vmem:[%s1 + $0x40] sm:$0xff]
  %v31 = vld [vmem:[%s1 + $0x48] sm:$0xff]
  %v32 = vld [vmem:[%s1 + $0x50] sm:$0xff]
  %v33 = vld [vmem:[%s1 + $0x58] sm:$0xff]
  %v34 = vld [vmem:[%s1 + $0x60] sm:$0xff]
  %v35 = vld [vmem:[%s1 + $0x68] sm:$0xff]
  %v36 = vld [vmem:[%s1 + $0x70] sm:$0xff]
  %v37 = vld [vmem:[%s1 + $0x78] sm:$0xff]
  %v38 = vld [vmem:[%s1 + $0x80] sm:$0xff]
  %v39 = vld [vmem:[%s1 + $0x88] sm:$0xff]
  %v40 = vld [vmem:[%s1 + $0x90] sm:$0xff]
  %v41 = vld [vmem:[%s1 + $0x98] sm:$0xff]
  %v42 = vld [vmem:[%s1 + $0xa0] sm:$0xff]
  %v43 = vld [vmem:[%s1 + $0xa8] sm:$0xff]
  %v44 = vld [vmem:[%s1 + $0xb0] sm:$0xff]
  %v45 = vld [vmem:[%s1 + $0xb8] sm:$0xff]
  %v46 = vld [vmem:[%s1 + $0xc0] sm:$0xff]
  %v47 = vld [vmem:[%s1 + $0xc8] sm:$0xff]
  %v48 = vld [vmem:[%s1 + $0xd0] sm:$0xff]
  %v49 = vld [vmem:[%s1 + $0xd8] sm:$0xff]
  %v50 = vld [vmem:[%s1 + $0xe0] sm:$0xff]
  %v51 = vld [vmem:[%s1 + $0xe8] sm:$0xff]
  %v52 = vld [vmem:[%s1 + $0xf0] sm:$0xff]
  %v53 = vld [vmem:[%s1 + $0xf8] sm:$0xff]
  %v54 = vld [vmem:[%s1 + $0x100] sm:$0xff]
  %v55 = vld [vmem:[%s1 + $0x108] sm:$0xff]
  %v56 = vld [vmem:[%s1 + $0x110] sm:$0xff]
  %v57 = vld [vmem:[%s1 + $0x118] sm:$0xff]
  %v58 = vld [vmem:[%s1 + $0x120] sm:$0xff]
  %v59 = vld [vmem:[%s1 + $0x128] sm:$0xff]
  %v60 = vld [vmem:[%s1 + $0x130] sm:$0xff]
  %v61 = vld [vmem:[%s1 + $0x138] sm:$0xff]
  %v62 = vld [vmem:[%s1 + $0x140] sm:$0xff]
  %v63 = vld [vmem:[%s1 + $0x148] sm:$0xff]
  %v64 = vld [vmem:[%s1 + $0x150] sm:$0xff]
  %v65 = vld [vmem:[%s1 + $0x158] sm:$0xff]
  %v66 = vld [vmem:[%s1 + $0x160] sm:$0xff]
  %v67 = vld [vmem:[%s1 + $0x168] sm:$0xff]
  %v68 = vld [vmem:[%s1 + $0x170] sm:$0xff]
  %v69 = vld [vmem:[%s1 + $0x178] sm:$0xff]
  %v70 = vld [vmem:[%s1 + $0x180] sm:$0xff]
  %v71 = vld [vmem:[%s1 + $0x188] sm:$0xff]
  %v72 = vld [vmem:[%s1 + $0x190] sm:$0xff]
  %v73 = vld [vmem:[%s1 + $0x198] sm:$0xff]
  %v74 = vld [vmem:[%s1 + $0x1a0] sm:$0xff]
  %v75 = vld [vmem:[%s1 + $0x1a8] sm:$0xff]
  %v76 = vld [vmem:[%s1 + $0x1b0] sm:$0xff]
  %v77 = vld [vmem:[%s1 + $0x1b8] sm:$0xff]
  %v78 = vld [vmem:[%s1 + $0x1c0] sm:$0xff]
  %v79 = vld [vmem:[%s1 + $0x1c8] sm:$0xff]
  %v80 = vld [vmem:[%s1 + $0x1d0] sm:$0xff]
  %v81 = vld [vmem:[%s1 + $0x1d8] sm:$0xff]
  %v82 = vld [vmem:[%s1 + $0x1e0] sm:$0xff]
  %v83 = vld [vmem:[%s1 + $0x1e8] sm:$0xff]
  %v84 = vld [vmem:[%s1 + $0x1f0] sm:$0xff]
  %v85 = vld [vmem:[%s1 + $0x1f8] sm:$0xff]
  %v86 = vld [vmem:[%s1 + $0x200] sm:$0xff]
  %v87 = vld [vmem:[%s1 + $0x208] sm:$0xff]
  %v88 = vld [vmem:[%s1 + $0x210] sm:$0xff]
  %v89 = vld [vmem:[%s1 + $0x218] sm:$0xff]
  %v90 = vld [vmem:[%s1 + $0x220] sm:$0xff]
  %v91 = vld [vmem:[%s1 + $0x228] sm:$0xff]
  %v92 = vld [vmem:[%s1 + $0x230] sm:$0xff]
  %v93 = vld [vmem:[%s1 + $0x238] sm:$0xff]
  %v94 = vld [vmem:[%s1 + $0x240] sm:$0xff]
  %v95 = vld [vmem:[%s1 + $0x248] sm:$0xff]
  %v96 = vld [vmem:[%s1 + $0x250] sm:$0xff]
  %v97 = vld [vmem:[%s1 + $0x258] sm:$0xff]
  %v98 = vld [vmem:[%s1 + $0x260] sm:$0xff]
  %v99 = vld [vmem:[%s1 + $0x268] sm:$0xff]
  %v100 = vld [vmem:[%s1 + $0x270] sm:$0xff]
  %v101 = vld [vmem:[%s1 + $0x278] sm:$0xff]
  %v102 = vld [vmem:[%s1 + $0x280] sm:$0xff]
  %v103 = vld [vmem:[%s1 + $0x288] sm:$0xff]
  %v104 = vld [vmem:[%s1 + $0x290] sm:$0xff]
  %v105 = vld [vmem:[%s1 + $0x298] sm:$0xff]
  %v106 = vld [vmem:[%s1 + $0x2a0] sm:$0xff]
  %v107 = vld [vmem:[%s1 + $0x2a8] sm:$0xff]
  %v108 = vld [vmem:[%s1 + $0x2b0] sm:$0xff]
  %v109 = vld [vmem:[%s1 + $0x2b8] sm:$0xff]
  %v110 = vld [vmem:[%s1 + $0x2c0] sm:$0xff]
  %v111 = vld [vmem:[%s1 + $0x2c8] sm:$0xff]
  %v112 = vld [vmem:[%s1 + $0x2d0] sm:$0xff]
  %v113 = vld [vmem:[%s1 + $0x2d8] sm:$0xff]
  %v114 = vld [vmem:[%s1 + $0x2e0] sm:$0xff]
  %v115 = vld [vmem:[%s1 + $0x2e8] sm:$0xff]
  %v116 = vld [vmem:[%s1 + $0x2f0] sm:$0xff]
  %v117 = vld [vmem:[%s1 + $0x2f8] sm:$0xff]
  %v118 = vld [vmem:[%s1 + $0x300] sm:$0xff]
  %v119 = vld [vmem:[%s1 + $0x308] sm:$0xff]
  %v120 = vld [vmem:[%s1 + $0x310] sm:$0xff]
  %v121 = vld [vmem:[%s1 + $0x318] sm:$0xff]
  %v122 = vld [vmem:[%s1 + $0x320] sm:$0xff]
  %v123 = vld [vmem:[%s1 + $0x328] sm:$0xff]
  %v124 = vld [vmem:[%s1 + $0x330] sm:$0xff]
  %v125 = vld [vmem:[%s1 + $0x338] sm:$0xff]
  %v126 = vld [vmem:[%s1 + $0x340] sm:$0xff]
  %v127 = vld [vmem:[%s1 + $0x348] sm:$0xff]
  %v128 = vld [vmem:[%s1 + $0x350] sm:$0xff]
  %v129 = vld [vmem:[%s1 + $0x358] sm:$0xff]
  %v130 = vld [vmem:[%s1 + $0x360] sm:$0xff]
  %v131 = vld [vmem:[%s1 + $0x368] sm:$0xff]
  %v132 = vld [vmem:[%s1 + $0x370] sm:$0xff]
  %v133 = vld [vmem:[%s1 + $0x378] sm:$0xff]
  %v134 = vld [vmem:[%s1 + $0x380] sm:$0xff]
  %v135 = vld [vmem:[%s1 + $0x388] sm:$0xff]
  %v136 = vld [vmem:[%s1 + $0x390] sm:$0xff]
  %v137 = vld [vmem:[%s1 + $0x398] sm:$0xff]
  %v138 = vld [vmem:[%s1 + $0x3a0] sm:$0xff]
  %v139 = vld [vmem:[%s1 + $0x3a8] sm:$0xff]
  %v140 = vld [vmem:[%s1 + $0x3b0] sm:$0xff]
  %v141 = vld [vmem:[%s1 + $0x3b8] sm:$0xff]
  %v142 = vld [vmem:[%s1 + $0x3c0] sm:$0xff]
  %v143 = vld [vmem:[%s1 + $0x3c8] sm:$0xff]
  %v144 = vld [vmem:[%s1 + $0x3d0] sm:$0xff]
  %v145 = vld [vmem:[%s1 + $0x3d8] sm:$0xff]
  %v146 = vld [vmem:[%s1 + $0x3e0] sm:$0xff]
  %v147 = vld [vmem:[%s1 + $0x3e8] sm:$0xff]
  %v148 = vld [vmem:[%s1 + $0x3f0] sm:$0xff]
  %v149 = vld [vmem:[%s1 + $0x3f8] sm:$0xff]
  %v150 = vld [vmem:[%s2] sm:$0x3]
  %v152 = vlaneseq
  %v153 = vshrl.u32 %v152, 7
  %v154 = vsub.s32 0, %v153
  %v155 = vrot.slane %v150, %v154
  %v156 = vlaneseq
  %v157 = vshrl.u32 %v156, 7
  %v158 = vsub.s32 1, %v157
  %v159 = vrot.slane %v150, %v158
  %v170 = vunpack.c.l.b16 %v14
  %v171 = vunpack.c.h.b16 %v14
  %v172 = vunpack.c.l.b16 %v15
  %v173 = vunpack.c.h.b16 %v15
  %v174 = vunpack.c.l.b16 %v16
  %v175 = vunpack.c.h.b16 %v16
  %v176 = vunpack.c.l.b16 %v17
  %v177 = vunpack.c.h.b16 %v17
  %v178 = vunpack.c.l.b16 %v18
  %v179 = vunpack.c.h.b16 %v18
  %v180 = vunpack.c.l.b16 %v19
  %v181 = vunpack.c.h.b16 %v19
  %v182 = vunpack.c.l.b16 %v20
  %v183 = vunpack.c.h.b16 %v20
  %v184 = vunpack.c.l.b16 %v21
  %v185 = vunpack.c.h.b16 %v21
  %v186 = vpack.c.b16 %v178, %v170
  %v187 = vpack.c.b16 %v179, %v171
  %v188 = vpack.c.b16 %v180, %v172
  %v189 = vpack.c.b16 %v181, %v173
  %v190 = vpack.c.b16 %v182, %v174
  %v191 = vpack.c.b16 %v183, %v175
  %v192 = vpack.c.b16 %v184, %v176
  %v193 = vpack.c.b16 %v185, %v177
  %v330 = vunpack.c.l.b16 %v22
  %v331 = vunpack.c.h.b16 %v22
  %v332 = vunpack.c.l.b16 %v23
  %v333 = vunpack.c.h.b16 %v23
  %v334 = vunpack.c.l.b16 %v24
  %v335 = vunpack.c.h.b16 %v24
  %v336 = vunpack.c.l.b16 %v25
  %v337 = vunpack.c.h.b16 %v25
  %v338 = vunpack.c.l.b16 %v26
  %v339 = vunpack.c.h.b16 %v26
  %v340 = vunpack.c.l.b16 %v27
  %v341 = vunpack.c.h.b16 %v27
  %v342 = vunpack.c.l.b16 %v28
  %v343 = vunpack.c.h.b16 %v28
  %v344 = vunpack.c.l.b16 %v29
  %v345 = vunpack.c.h.b16 %v29
  %v346 = vunpack.c.l.b16 %v30
  %v347 = vunpack.c.h.b16 %v30
  %v348 = vunpack.c.l.b16 %v31
  %v349 = vunpack.c.h.b16 %v31
  %v350 = vunpack.c.l.b16 %v32
  %v351 = vunpack.c.h.b16 %v32
  %v352 = vunpack.c.l.b16 %v33
  %v353 = vunpack.c.h.b16 %v33
  %v354 = vunpack.c.l.b16 %v34
  %v355 = vunpack.c.h.b16 %v34
  %v356 = vunpack.c.l.b16 %v35
  %v357 = vunpack.c.h.b16 %v35
  %v358 = vunpack.c.l.b16 %v36
  %v359 = vunpack.c.h.b16 %v36
  %v360 = vunpack.c.l.b16 %v37
  %v361 = vunpack.c.h.b16 %v37
  %v362 = vunpack.c.l.b16 %v38
  %v363 = vunpack.c.h.b16 %v38
  %v364 = vunpack.c.l.b16 %v39
  %v365 = vunpack.c.h.b16 %v39
  %v366 = vunpack.c.l.b16 %v40
  %v367 = vunpack.c.h.b16 %v40
  %v368 = vunpack.c.l.b16 %v41
  %v369 = vunpack.c.h.b16 %v41
  %v370 = vunpack.c.l.b16 %v42
  %v371 = vunpack.c.h.b16 %v42
  %v372 = vunpack.c.l.b16 %v43
  %v373 = vunpack.c.h.b16 %v43
  %v374 = vunpack.c.l.b16 %v44
  %v375 = vunpack.c.h.b16 %v44
  %v376 = vunpack.c.l.b16 %v45
  %v377 = vunpack.c.h.b16 %v45
  %v378 = vunpack.c.l.b16 %v46
  %v379 = vunpack.c.h.b16 %v46
  %v380 = vunpack.c.l.b16 %v47
  %v381 = vunpack.c.h.b16 %v47
  %v382 = vunpack.c.l.b16 %v48
  %v383 = vunpack.c.h.b16 %v48
  %v384 = vunpack.c.l.b16 %v49
  %v385 = vunpack.c.h.b16 %v49
  %v386 = vunpack.c.l.b16 %v50
  %v387 = vunpack.c.h.b16 %v50
  %v388 = vunpack.c.l.b16 %v51
  %v389 = vunpack.c.h.b16 %v51
  %v390 = vunpack.c.l.b16 %v52
  %v391 = vunpack.c.h.b16 %v52
  %v392 = vunpack.c.l.b16 %v53
  %v393 = vunpack.c.h.b16 %v53
  %v394 = vunpack.c.l.b16 %v54
  %v395 = vunpack.c.h.b16 %v54
  %v396 = vunpack.c.l.b16 %v55
  %v397 = vunpack.c.h.b16 %v55
  %v398 = vunpack.c.l.b16 %v56
  %v399 = vunpack.c.h.b16 %v56
  %v400 = vunpack.c.l.b16 %v57
  %v401 = vunpack.c.h.b16 %v57
  %v402 = vunpack.c.l.b16 %v58
  %v403 = vunpack.c.h.b16 %v58
  %v404 = vunpack.c.l.b16 %v59
  %v405 = vunpack.c.h.b16 %v59
  %v406 = vunpack.c.l.b16 %v60
  %v407 = vunpack.c.h.b16 %v60
  %v408 = vunpack.c.l.b16 %v61
  %v409 = vunpack.c.h.b16 %v61
  %v410 = vunpack.c.l.b16 %v62
  %v411 = vunpack.c.h.b16 %v62
  %v412 = vunpack.c.l.b16 %v63
  %v413 = vunpack.c.h.b16 %v63
  %v414 = vunpack.c.l.b16 %v64
  %v415 = vunpack.c.h.b16 %v64
  %v416 = vunpack.c.l.b16 %v65
  %v417 = vunpack.c.h.b16 %v65
  %v418 = vunpack.c.l.b16 %v66
  %v419 = vunpack.c.h.b16 %v66
  %v420 = vunpack.c.l.b16 %v67
  %v421 = vunpack.c.h.b16 %v67
  %v422 = vunpack.c.l.b16 %v68
  %v423 = vunpack.c.h.b16 %v68
  %v424 = vunpack.c.l.b16 %v69
  %v425 = vunpack.c.h.b16 %v69
  %v426 = vunpack.c.l.b16 %v70
  %v427 = vunpack.c.h.b16 %v70
  %v428 = vunpack.c.l.b16 %v71
  %v429 = vunpack.c.h.b16 %v71
  %v430 = vunpack.c.l.b16 %v72
  %v431 = vunpack.c.h.b16 %v72
  %v432 = vunpack.c.l.b16 %v73
  %v433 = vunpack.c.h.b16 %v73
  %v434 = vunpack.c.l.b16 %v74
  %v435 = vunpack.c.h.b16 %v74
  %v436 = vunpack.c.l.b16 %v75
  %v437 = vunpack.c.h.b16 %v75
  %v438 = vunpack.c.l.b16 %v76
  %v439 = vunpack.c.h.b16 %v76
  %v440 = vunpack.c.l.b16 %v77
  %v441 = vunpack.c.h.b16 %v77
  %v442 = vunpack.c.l.b16 %v78
  %v443 = vunpack.c.h.b16 %v78
  %v444 = vunpack.c.l.b16 %v79
  %v445 = vunpack.c.h.b16 %v79
  %v446 = vunpack.c.l.b16 %v80
  %v447 = vunpack.c.h.b16 %v80
  %v448 = vunpack.c.l.b16 %v81
  %v449 = vunpack.c.h.b16 %v81
  %v450 = vunpack.c.l.b16 %v82
  %v451 = vunpack.c.h.b16 %v82
  %v452 = vunpack.c.l.b16 %v83
  %v453 = vunpack.c.h.b16 %v83
  %v454 = vunpack.c.l.b16 %v84
  %v455 = vunpack.c.h.b16 %v84
  %v456 = vunpack.c.l.b16 %v85
  %v457 = vunpack.c.h.b16 %v85
  %v458 = vunpack.c.l.b16 %v86
  %v459 = vunpack.c.h.b16 %v86
  %v460 = vunpack.c.l.b16 %v87
  %v461 = vunpack.c.h.b16 %v87
  %v462 = vunpack.c.l.b16 %v88
  %v463 = vunpack.c.h.b16 %v88
  %v464 = vunpack.c.l.b16 %v89
  %v465 = vunpack.c.h.b16 %v89
  %v466 = vunpack.c.l.b16 %v90
  %v467 = vunpack.c.h.b16 %v90
  %v468 = vunpack.c.l.b16 %v91
  %v469 = vunpack.c.h.b16 %v91
  %v470 = vunpack.c.l.b16 %v92
  %v471 = vunpack.c.h.b16 %v92
  %v472 = vunpack.c.l.b16 %v93
  %v473 = vunpack.c.h.b16 %v93
  %v474 = vunpack.c.l.b16 %v94
  %v475 = vunpack.c.h.b16 %v94
  %v476 = vunpack.c.l.b16 %v95
  %v477 = vunpack.c.h.b16 %v95
  %v478 = vunpack.c.l.b16 %v96
  %v479 = vunpack.c.h.b16 %v96
  %v480 = vunpack.c.l.b16 %v97
  %v481 = vunpack.c.h.b16 %v97
  %v482 = vunpack.c.l.b16 %v98
  %v483 = vunpack.c.h.b16 %v98
  %v484 = vunpack.c.l.b16 %v99
  %v485 = vunpack.c.h.b16 %v99
  %v486 = vunpack.c.l.b16 %v100
  %v487 = vunpack.c.h.b16 %v100
  %v488 = vunpack.c.l.b16 %v101
  %v489 = vunpack.c.h.b16 %v101
  %v490 = vunpack.c.l.b16 %v102
  %v491 = vunpack.c.h.b16 %v102
  %v492 = vunpack.c.l.b16 %v103
  %v493 = vunpack.c.h.b16 %v103
  %v494 = vunpack.c.l.b16 %v104
  %v495 = vunpack.c.h.b16 %v104
  %v496 = vunpack.c.l.b16 %v105
  %v497 = vunpack.c.h.b16 %v105
  %v498 = vunpack.c.l.b16 %v106
  %v499 = vunpack.c.h.b16 %v106
  %v500 = vunpack.c.l.b16 %v107
  %v501 = vunpack.c.h.b16 %v107
  %v502 = vunpack.c.l.b16 %v108
  %v503 = vunpack.c.h.b16 %v108
  %v504 = vunpack.c.l.b16 %v109
  %v505 = vunpack.c.h.b16 %v109
  %v506 = vunpack.c.l.b16 %v110
  %v507 = vunpack.c.h.b16 %v110
  %v508 = vunpack.c.l.b16 %v111
  %v509 = vunpack.c.h.b16 %v111
  %v510 = vunpack.c.l.b16 %v112
  %v511 = vunpack.c.h.b16 %v112
  %v512 = vunpack.c.l.b16 %v113
  %v513 = vunpack.c.h.b16 %v113
  %v514 = vunpack.c.l.b16 %v114
  %v515 = vunpack.c.h.b16 %v114
  %v516 = vunpack.c.l.b16 %v115
  %v517 = vunpack.c.h.b16 %v115
  %v518 = vunpack.c.l.b16 %v116
  %v519 = vunpack.c.h.b16 %v116
  %v520 = vunpack.c.l.b16 %v117
  %v521 = vunpack.c.h.b16 %v117
  %v522 = vunpack.c.l.b16 %v118
  %v523 = vunpack.c.h.b16 %v118
  %v524 = vunpack.c.l.b16 %v119
  %v525 = vunpack.c.h.b16 %v119
  %v526 = vunpack.c.l.b16 %v120
  %v527 = vunpack.c.h.b16 %v120
  %v528 = vunpack.c.l.b16 %v121
  %v529 = vunpack.c.h.b16 %v121
  %v530 = vunpack.c.l.b16 %v122
  %v531 = vunpack.c.h.b16 %v122
  %v532 = vunpack.c.l.b16 %v123
  %v533 = vunpack.c.h.b16 %v123
  %v534 = vunpack.c.l.b16 %v124
  %v535 = vunpack.c.h.b16 %v124
  %v536 = vunpack.c.l.b16 %v125
  %v537 = vunpack.c.h.b16 %v125
  %v538 = vunpack.c.l.b16 %v126
  %v539 = vunpack.c.h.b16 %v126
  %v540 = vunpack.c.l.b16 %v127
  %v541 = vunpack.c.h.b16 %v127
  %v542 = vunpack.c.l.b16 %v128
  %v543 = vunpack.c.h.b16 %v128
  %v544 = vunpack.c.l.b16 %v129
  %v545 = vunpack.c.h.b16 %v129
  %v546 = vunpack.c.l.b16 %v130
  %v547 = vunpack.c.h.b16 %v130
  %v548 = vunpack.c.l.b16 %v131
  %v549 = vunpack.c.h.b16 %v131
  %v550 = vunpack.c.l.b16 %v132
  %v551 = vunpack.c.h.b16 %v132
  %v552 = vunpack.c.l.b16 %v133
  %v553 = vunpack.c.h.b16 %v133
  %v554 = vunpack.c.l.b16 %v134
  %v555 = vunpack.c.h.b16 %v134
  %v556 = vunpack.c.l.b16 %v135
  %v557 = vunpack.c.h.b16 %v135
  %v558 = vunpack.c.l.b16 %v136
  %v559 = vunpack.c.h.b16 %v136
  %v560 = vunpack.c.l.b16 %v137
  %v561 = vunpack.c.h.b16 %v137
  %v562 = vunpack.c.l.b16 %v138
  %v563 = vunpack.c.h.b16 %v138
  %v564 = vunpack.c.l.b16 %v139
  %v565 = vunpack.c.h.b16 %v139
  %v566 = vunpack.c.l.b16 %v140
  %v567 = vunpack.c.h.b16 %v140
  %v568 = vunpack.c.l.b16 %v141
  %v569 = vunpack.c.h.b16 %v141
  %v570 = vunpack.c.l.b16 %v142
  %v571 = vunpack.c.h.b16 %v142
  %v572 = vunpack.c.l.b16 %v143
  %v573 = vunpack.c.h.b16 %v143
  %v574 = vunpack.c.l.b16 %v144
  %v575 = vunpack.c.h.b16 %v144
  %v576 = vunpack.c.l.b16 %v145
  %v577 = vunpack.c.h.b16 %v145
  %v578 = vunpack.c.l.b16 %v146
  %v579 = vunpack.c.h.b16 %v146
  %v580 = vunpack.c.l.b16 %v147
  %v581 = vunpack.c.h.b16 %v147
  %v582 = vunpack.c.l.b16 %v148
  %v583 = vunpack.c.h.b16 %v148
  %v584 = vunpack.c.l.b16 %v149
  %v585 = vunpack.c.h.b16 %v149
  %v586 = vpack.c.b16 %v332, %v330
  %v587 = vpack.c.b16 %v333, %v331
  %v588 = vpack.c.b16 %v336, %v334
  %v589 = vpack.c.b16 %v337, %v335
  %v590 = vpack.c.b16 %v340, %v338
  %v591 = vpack.c.b16 %v341, %v339
  %v592 = vpack.c.b16 %v344, %v342
  %v593 = vpack.c.b16 %v345, %v343
  %v594 = vpack.c.b16 %v348, %v346
  %v595 = vpack.c.b16 %v349, %v347
  %v596 = vpack.c.b16 %v352, %v350
  %v597 = vpack.c.b16 %v353, %v351
  %v598 = vpack.c.b16 %v356, %v354
  %v599 = vpack.c.b16 %v357, %v355
  %v600 = vpack.c.b16 %v360, %v358
  %v601 = vpack.c.b16 %v361, %v359
  %v602 = vpack.c.b16 %v364, %v362
  %v603 = vpack.c.b16 %v365, %v363
  %v604 = vpack.c.b16 %v368, %v366
  %v605 = vpack.c.b16 %v369, %v367
  %v606 = vpack.c.b16 %v372, %v370
  %v607 = vpack.c.b16 %v373, %v371
  %v608 = vpack.c.b16 %v376, %v374
  %v609 = vpack.c.b16 %v377, %v375
  %v610 = vpack.c.b16 %v380, %v378
  %v611 = vpack.c.b16 %v381, %v379
  %v612 = vpack.c.b16 %v384, %v382
  %v613 = vpack.c.b16 %v385, %v383
  %v614 = vpack.c.b16 %v388, %v386
  %v615 = vpack.c.b16 %v389, %v387
  %v616 = vpack.c.b16 %v392, %v390
  %v617 = vpack.c.b16 %v393, %v391
  %v618 = vpack.c.b16 %v396, %v394
  %v619 = vpack.c.b16 %v397, %v395
  %v620 = vpack.c.b16 %v400, %v398
  %v621 = vpack.c.b16 %v401, %v399
  %v622 = vpack.c.b16 %v404, %v402
  %v623 = vpack.c.b16 %v405, %v403
  %v624 = vpack.c.b16 %v408, %v406
  %v625 = vpack.c.b16 %v409, %v407
  %v626 = vpack.c.b16 %v412, %v410
  %v627 = vpack.c.b16 %v413, %v411
  %v628 = vpack.c.b16 %v416, %v414
  %v629 = vpack.c.b16 %v417, %v415
  %v630 = vpack.c.b16 %v420, %v418
  %v631 = vpack.c.b16 %v421, %v419
  %v632 = vpack.c.b16 %v424, %v422
  %v633 = vpack.c.b16 %v425, %v423
  %v634 = vpack.c.b16 %v428, %v426
  %v635 = vpack.c.b16 %v429, %v427
  %v636 = vpack.c.b16 %v432, %v430
  %v637 = vpack.c.b16 %v433, %v431
  %v638 = vpack.c.b16 %v436, %v434
  %v639 = vpack.c.b16 %v437, %v435
  %v640 = vpack.c.b16 %v440, %v438
  %v641 = vpack.c.b16 %v441, %v439
  %v642 = vpack.c.b16 %v444, %v442
  %v643 = vpack.c.b16 %v445, %v443
  %v644 = vpack.c.b16 %v448, %v446
  %v645 = vpack.c.b16 %v449, %v447
  %v646 = vpack.c.b16 %v452, %v450
  %v647 = vpack.c.b16 %v453, %v451
  %v648 = vpack.c.b16 %v456, %v454
  %v649 = vpack.c.b16 %v457, %v455
  %v650 = vpack.c.b16 %v460, %v458
  %v651 = vpack.c.b16 %v461, %v459
  %v652 = vpack.c.b16 %v464, %v462
  %v653 = vpack.c.b16 %v465, %v463
  %v654 = vpack.c.b16 %v468, %v466
  %v655 = vpack.c.b16 %v469, %v467
  %v656 = vpack.c.b16 %v472, %v470
  %v657 = vpack.c.b16 %v473, %v471
  %v658 = vpack.c.b16 %v476, %v474
  %v659 = vpack.c.b16 %v477, %v475
  %v660 = vpack.c.b16 %v480, %v478
  %v661 = vpack.c.b16 %v481, %v479
  %v662 = vpack.c.b16 %v484, %v482
  %v663 = vpack.c.b16 %v485, %v483
  %v664 = vpack.c.b16 %v488, %v486
  %v665 = vpack.c.b16 %v489, %v487
  %v666 = vpack.c.b16 %v492, %v490
  %v667 = vpack.c.b16 %v493, %v491
  %v668 = vpack.c.b16 %v496, %v494
  %v669 = vpack.c.b16 %v497, %v495
  %v670 = vpack.c.b16 %v500, %v498
  %v671 = vpack.c.b16 %v501, %v499
  %v672 = vpack.c.b16 %v504, %v502
  %v673 = vpack.c.b16 %v505, %v503
  %v674 = vpack.c.b16 %v508, %v506
  %v675 = vpack.c.b16 %v509, %v507
  %v676 = vpack.c.b16 %v512, %v510
  %v677 = vpack.c.b16 %v513, %v511
  %v678 = vpack.c.b16 %v516, %v514
  %v679 = vpack.c.b16 %v517, %v515
  %v680 = vpack.c.b16 %v520, %v518
  %v681 = vpack.c.b16 %v521, %v519
  %v682 = vpack.c.b16 %v524, %v522
  %v683 = vpack.c.b16 %v525, %v523
  %v684 = vpack.c.b16 %v528, %v526
  %v685 = vpack.c.b16 %v529, %v527
  %v686 = vpack.c.b16 %v532, %v530
  %v687 = vpack.c.b16 %v533, %v531
  %v688 = vpack.c.b16 %v536, %v534
  %v689 = vpack.c.b16 %v537, %v535
  %v690 = vpack.c.b16 %v540, %v538
  %v691 = vpack.c.b16 %v541, %v539
  %v692 = vpack.c.b16 %v544, %v542
  %v693 = vpack.c.b16 %v545, %v543
  %v694 = vpack.c.b16 %v548, %v546
  %v695 = vpack.c.b16 %v549, %v547
  %v696 = vpack.c.b16 %v552, %v550
  %v697 = vpack.c.b16 %v553, %v551
  %v698 = vpack.c.b16 %v556, %v554
  %v699 = vpack.c.b16 %v557, %v555
  %v700 = vpack.c.b16 %v560, %v558
  %v701 = vpack.c.b16 %v561, %v559
  %v702 = vpack.c.b16 %v564, %v562
  %v703 = vpack.c.b16 %v565, %v563
  %v704 = vpack.c.b16 %v568, %v566
  %v705 = vpack.c.b16 %v569, %v567
  %v706 = vpack.c.b16 %v572, %v570
  %v707 = vpack.c.b16 %v573, %v571
  %v708 = vpack.c.b16 %v576, %v574
  %v709 = vpack.c.b16 %v577, %v575
  %v710 = vpack.c.b16 %v580, %v578
  %v711 = vpack.c.b16 %v581, %v579
  %v712 = vpack.c.b16 %v584, %v582
  %v713 = vpack.c.b16 %v585, %v583
  %842 = vmatprep.subr.bf16.mxu0 %v587
  %843 = vmatpush1.bf16.msra.mxu0 %v586
  %844 = vmatprep.subr.bf16.mxu0 %v589
  %845 = vmatpush1.bf16.msra.mxu0 %v588
  %846 = vmatprep.subr.bf16.mxu0 %v591
  %847 = vmatpush1.bf16.msra.mxu0 %v590
  %848 = vmatprep.subr.bf16.mxu0 %v593
  %849 = vmatpush1.bf16.msra.mxu0 %v592
  %850 = vmatprep.subr.bf16.mxu0 %v595
  %851 = vmatpush1.bf16.msra.mxu0 %v594
  %852 = vmatprep.subr.bf16.mxu0 %v597
  %853 = vmatpush1.bf16.msra.mxu0 %v596
  %854 = vmatprep.subr.bf16.mxu0 %v599
  %855 = vmatpush1.bf16.msra.mxu0 %v598
  %856 = vmatprep.subr.bf16.mxu0 %v601
  %857 = vmatpush1.bf16.msra.mxu0 %v600
  %858 = vmatprep.subr.bf16.mxu0 %v603
  %859 = vmatpush1.bf16.msra.mxu0 %v602
  %860 = vmatprep.subr.bf16.mxu0 %v605
  %861 = vmatpush1.bf16.msra.mxu0 %v604
  %862 = vmatprep.subr.bf16.mxu0 %v607
  %863 = vmatpush1.bf16.msra.mxu0 %v606
  %864 = vmatprep.subr.bf16.mxu0 %v609
  %865 = vmatpush1.bf16.msra.mxu0 %v608
  %866 = vmatprep.subr.bf16.mxu0 %v611
  %867 = vmatpush1.bf16.msra.mxu0 %v610
  %868 = vmatprep.subr.bf16.mxu0 %v613
  %869 = vmatpush1.bf16.msra.mxu0 %v612
  %870 = vmatprep.subr.bf16.mxu0 %v615
  %871 = vmatpush1.bf16.msra.mxu0 %v614
  %872 = vmatprep.subr.bf16.mxu0 %v617
  %873 = vmatpush1.bf16.msra.mxu0 %v616
  %874 = vmatprep.mubr.bf16.mxu0 %v187
  %875 = vmatmul.mubr.bf16.gmra.mrb[0].mxu0 %v186
  %v876 = vpop.f32.mrb[0].mxu0
  %v877 = vadd.f32 %v155, %v876
  %v878 = vpop.f32.mrb[0].mxu0
  %v879 = vadd.f32 %v159, %v878
  %v880 = vpop.f32.mrb[0].mxu0
  %v881 = vadd.f32 %v155, %v880
  %v882 = vpop.f32.mrb[0].mxu0
  %v883 = vadd.f32 %v159, %v882
  %884 = vdwg.mxu0
  %885 = vmatprep.subr.bf16.mxu0 %v619
  %886 = vmatpush1.bf16.msra.mxu0 %v618
  %887 = vmatprep.subr.bf16.mxu0 %v621
  %888 = vmatpush1.bf16.msra.mxu0 %v620
  %889 = vmatprep.subr.bf16.mxu0 %v623
  %890 = vmatpush1.bf16.msra.mxu0 %v622
  %891 = vmatprep.subr.bf16.mxu0 %v625
  %892 = vmatpush1.bf16.msra.mxu0 %v624
  %893 = vmatprep.subr.bf16.mxu0 %v627
  %894 = vmatpush1.bf16.msra.mxu0 %v626
  %895 = vmatprep.subr.bf16.mxu0 %v629
  %896 = vmatpush1.bf16.msra.mxu0 %v628
  %897 = vmatprep.subr.bf16.mxu0 %v631
  %898 = vmatpush1.bf16.msra.mxu0 %v630
  %899 = vmatprep.subr.bf16.mxu0 %v633
  %900 = vmatpush1.bf16.msra.mxu0 %v632
  %901 = vmatprep.subr.bf16.mxu0 %v635
  %902 = vmatpush1.bf16.msra.mxu0 %v634
  %903 = vmatprep.subr.bf16.mxu0 %v637
  %904 = vmatpush1.bf16.msra.mxu0 %v636
  %905 = vmatprep.subr.bf16.mxu0 %v639
  %906 = vmatpush1.bf16.msra.mxu0 %v638
  %907 = vmatprep.subr.bf16.mxu0 %v641
  %908 = vmatpush1.bf16.msra.mxu0 %v640
  %909 = vmatprep.subr.bf16.mxu0 %v643
  %910 = vmatpush1.bf16.msra.mxu0 %v642
  %911 = vmatprep.subr.bf16.mxu0 %v645
  %912 = vmatpush1.bf16.msra.mxu0 %v644
  %913 = vmatprep.subr.bf16.mxu0 %v647
  %914 = vmatpush1.bf16.msra.mxu0 %v646
  %915 = vmatprep.subr.bf16.mxu0 %v649
  %916 = vmatpush1.bf16.msra.mxu0 %v648
  %917 = vmatprep.mubr.bf16.mxu0 %v189
  %918 = vmatmul.mubr.bf16.gmra.mrb[0].mxu0 %v188
  %v919 = vpop.f32.mrb[0].mxu0
  %v920 = vadd.f32 %v877, %v919
  %v921 = vpop.f32.mrb[0].mxu0
  %v922 = vadd.f32 %v879, %v921
  %v923 = vpop.f32.mrb[0].mxu0
  %v924 = vadd.f32 %v881, %v923
  %v925 = vpop.f32.mrb[0].mxu0
  %v926 = vadd.f32 %v883, %v925
  %927 = vdwg.mxu0
  %928 = vmatprep.subr.bf16.mxu0 %v651
  %929 = vmatpush1.bf16.msra.mxu0 %v650
  %930 = vmatprep.subr.bf16.mxu0 %v653
  %931 = vmatpush1.bf16.msra.mxu0 %v652
  %932 = vmatprep.subr.bf16.mxu0 %v655
  %933 = vmatpush1.bf16.msra.mxu0 %v654
  %934 = vmatprep.subr.bf16.mxu0 %v657
  %935 = vmatpush1.bf16.msra.mxu0 %v656
  %936 = vmatprep.subr.bf16.mxu0 %v659
  %937 = vmatpush1.bf16.msra.mxu0 %v658
  %938 = vmatprep.subr.bf16.mxu0 %v661
  %939 = vmatpush1.bf16.msra.mxu0 %v660
  %940 = vmatprep.subr.bf16.mxu0 %v663
  %941 = vmatpush1.bf16.msra.mxu0 %v662
  %942 = vmatprep.subr.bf16.mxu0 %v665
  %943 = vmatpush1.bf16.msra.mxu0 %v664
  %944 = vmatprep.subr.bf16.mxu0 %v667
  %945 = vmatpush1.bf16.msra.mxu0 %v666
  %946 = vmatprep.subr.bf16.mxu0 %v669
  %947 = vmatpush1.bf16.msra.mxu0 %v668
  %948 = vmatprep.subr.bf16.mxu0 %v671
  %949 = vmatpush1.bf16.msra.mxu0 %v670
  %950 = vmatprep.subr.bf16.mxu0 %v673
  %951 = vmatpush1.bf16.msra.mxu0 %v672
  %952 = vmatprep.subr.bf16.mxu0 %v675
  %953 = vmatpush1.bf16.msra.mxu0 %v674
  %954 = vmatprep.subr.bf16.mxu0 %v677
  %955 = vmatpush1.bf16.msra.mxu0 %v676
  %956 = vmatprep.subr.bf16.mxu0 %v679
  %957 = vmatpush1.bf16.msra.mxu0 %v678
  %958 = vmatprep.subr.bf16.mxu0 %v681
  %959 = vmatpush1.bf16.msra.mxu0 %v680
  %960 = vmatprep.mubr.bf16.mxu0 %v191
  %961 = vmatmul.mubr.bf16.gmra.mrb[0].mxu0 %v190
  %v962 = vpop.f32.mrb[0].mxu0
  %v963 = vadd.f32 %v920, %v962
  %v964 = vpop.f32.mrb[0].mxu0
  %v965 = vadd.f32 %v922, %v964
  %v966 = vpop.f32.mrb[0].mxu0
  %v967 = vadd.f32 %v924, %v966
  %v968 = vpop.f32.mrb[0].mxu0
  %v969 = vadd.f32 %v926, %v968
  %970 = vdwg.mxu0
  %971 = vmatprep.subr.bf16.mxu0 %v683
  %972 = vmatpush1.bf16.msra.mxu0 %v682
  %973 = vmatprep.subr.bf16.mxu0 %v685
  %974 = vmatpush1.bf16.msra.mxu0 %v684
  %975 = vmatprep.subr.bf16.mxu0 %v687
  %976 = vmatpush1.bf16.msra.mxu0 %v686
  %977 = vmatprep.subr.bf16.mxu0 %v689
  %978 = vmatpush1.bf16.msra.mxu0 %v688
  %979 = vmatprep.subr.bf16.mxu0 %v691
  %980 = vmatpush1.bf16.msra.mxu0 %v690
  %981 = vmatprep.subr.bf16.mxu0 %v693
  %982 = vmatpush1.bf16.msra.mxu0 %v692
  %983 = vmatprep.subr.bf16.mxu0 %v695
  %984 = vmatpush1.bf16.msra.mxu0 %v694
  %985 = vmatprep.subr.bf16.mxu0 %v697
  %986 = vmatpush1.bf16.msra.mxu0 %v696
  %987 = vmatprep.subr.bf16.mxu0 %v699
  %988 = vmatpush1.bf16.msra.mxu0 %v698
  %989 = vmatprep.subr.bf16.mxu0 %v701
  %990 = vmatpush1.bf16.msra.mxu0 %v700
  %991 = vmatprep.subr.bf16.mxu0 %v703
  %992 = vmatpush1.bf16.msra.mxu0 %v702
  %993 = vmatprep.subr.bf16.mxu0 %v705
  %994 = vmatpush1.bf16.msra.mxu0 %v704
  %995 = vmatprep.subr.bf16.mxu0 %v707
  %996 = vmatpush1.bf16.msra.mxu0 %v706
  %997 = vmatprep.subr.bf16.mxu0 %v709
  %998 = vmatpush1.bf16.msra.mxu0 %v708
  %999 = vmatprep.subr.bf16.mxu0 %v711
  %1000 = vmatpush1.bf16.msra.mxu0 %v710
  %1001 = vmatprep.subr.bf16.mxu0 %v713
  %1002 = vmatpush1.bf16.msra.mxu0 %v712
  %1003 = vmatprep.mubr.bf16.mxu0 %v193
  %1004 = vmatmul.mubr.bf16.gmra.mrb[0].mxu0 %v192
  %v1005 = vpop.f32.mrb[0].mxu0
  %v1006 = vadd.f32 %v963, %v1005
  %v1007 = vpop.f32.mrb[0].mxu0
  %v1008 = vadd.f32 %v965, %v1007
  %v1009 = vpop.f32.mrb[0].mxu0
  %v1010 = vadd.f32 %v967, %v1009
  %v1011 = vpop.f32.mrb[0].mxu0
  %v1012 = vadd.f32 %v969, %v1011
  %1013 = vdwg.mxu0
  %v1014 = vtanh.pop %v1006
  %v1015 = vtanh.pop %v1008
  %v1016 = vtanh.pop %v1010
  %v1017 = vtanh.pop %v1012
  %1018 = vst [vmem:[%s3] sm:$0xff] %v1014
  %1019 = vst [vmem:[%s3 + $0x8] sm:$0xff] %v1015
  %1020 = vst [vmem:[%s3 + $0x10] sm:$0xff] %v1016
  %1021 = vst [vmem:[%s3 + $0x18] sm:$0xff] %v1017
  // Predicated region
  $region14: #{generator_forward.3} parent=0 // pred_check
    _
  $region15: #{generator_forward.3} parent=0 // pred_check_branch
    %1023 = sbr.rel (0) target = $region17
  $region16: #{generator_forward.3} parent=0 // pred_region
    _
  $region17: #{generator_forward.3} parent=0 // pred_fallthru
    _
  // Predicated region
  $region18: #{generator_forward.3} parent=0 // pred_check
    _
  $region19: #{generator_forward.3} parent=0 // pred_check_branch
    %1025 = sbr.rel (0) target = $region21
  $region20: #{generator_forward.3} parent=0 // pred_region
    _
  $region21: #{generator_forward.3} parent=0 // pred_fallthru
    _

// kernel: generator_forward.2
$region0: #{generator_forward.2}
  #allocation0 [shape = 'u32[]', space=smem, size = 0x4, offset = 0x4, fixed_abs, tag = 'smem constant byte address 0x4 - core index']
  #allocation1 [shape = 'u32[144,128]{1,0:T(1,128)}', space=vmem, size = 0x12000, scoped, tag = 'internal scratch']
  %s0 = inlined_call_operand.vmem [shape: f32[16,32], index: 0, kind: input, shape index: {}]
  %s1 = inlined_call_operand.vmem [shape: bf16[32,128], index: 1, kind: input, shape index: {}]
  %s2 = inlined_call_operand.hbm [shape: f32[1,128], index: 2, kind: input, shape index: {}]
  %s3 = inlined_call_operand.hbm [shape: bf16[128,256], index: 3, kind: input, shape index: {}]
  %s4 = inlined_call_operand.hbm [shape: f32[1,256], index: 4, kind: input, shape index: {}]
  %s5 = inlined_call_operand.vmem [shape: f32[1,256], index: 5, kind: input, shape index: {}]
  %s6 = inlined_call_operand.hbm [shape: f32[1,256], index: 6, kind: input, shape index: {}]
  %s7 = inlined_call_operand.hbm [shape: bf16[256,512], index: 7, kind: input, shape index: {}]
  %s8 = inlined_call_operand.vmem [shape: f32[1,512], index: 8, kind: input, shape index: {}]
  %s9 = inlined_call_operand.vmem [shape: f32[1,512], index: 9, kind: input, shape index: {}]
  %s10 = inlined_call_operand.vmem [shape: f32[1,512], index: 10, kind: input, shape index: {}]
  %s11 = inlined_call_operand.hbm [shape: bf16[512,1024], index: 11, kind: input, shape index: {}]
  %s12 = inlined_call_operand.vmem [shape: f32[1,1024], index: 12, kind: input, shape index: {}]
  %s13 = inlined_call_operand.vmem [shape: f32[1,1024], index: 13, kind: input, shape index: {}]
  %s14 = inlined_call_operand.vmem [shape: f32[1,1024], index: 14, kind: input, shape index: {}]
  %s15 = inlined_call_operand.vmem [shape: bf16[16,1024], index: 15, kind: output, shape index: {}]
  %s16 = sld [smem:[#allocation0]]
  $region94: #{generator_forward.2} parent=0
    _
  %s18 = ssub.s32 1, %s16
  %s19 = scalar_select 0, %s18, %s16
  $region1: #{generator_forward.2} parent=0
    #allocation2 [shape = 'u8[512]{0}', space=vmem, size = 0x400, scoped, tag = 'input window, operand 2, single buffered']
    #allocation3 [shape = 's32[1]{0}', space=sflag, size = 0x4, scoped, tag = 'scoped memory for generator_forward.2']
    #allocation4 [shape = 'u8[65536]{0}', space=vmem, size = 0x10000, scoped, tag = 'input window, operand 3, single buffered']
    #allocation5 [shape = 's32[1]{0}', space=sflag, size = 0x4, scoped, tag = 'scoped memory for generator_forward.2']
    #allocation6 [shape = 'u8[1024]{0}', space=vmem, size = 0x400, scoped, tag = 'input window, operand 4, single buffered']
    #allocation7 [shape = 'u8[1024]{0}', space=vmem, size = 0x400, scoped, tag = 'input window, operand 6, single buffered']
    #allocation8 [shape = 's32[1]{0}', space=sflag, size = 0x4, scoped, tag = 'scoped memory for generator_forward.2']
    #allocation9 [shape = 'u8[262144]{0}', space=vmem, size = 0x40000, scoped, tag = 'input window, operand 7, single buffered']
    #allocation10 [shape = 'u8[1048576]{0}', space=vmem, size = 0x100000, scoped, tag = 'input window, operand 11, single buffered']
    #allocation11 [shape = 's32[1]{0}', space=sflag, size = 0x4, scoped, tag = 'scoped memory for generator_forward.2']
    %20 = vsyncpa [#allocation3], 0
    %21 = vsyncpa [#allocation5], 0
    %22 = vsyncpa [#allocation8], 0
    %23 = vsyncpa [#allocation11], 0
    // Predicated region
    $region2: #{generator_forward.2} parent=1 // pred_check
      _
    $region3: #{generator_forward.2} parent=1 // pred_check_branch
      %25 = sbr.rel (0) target = $region5
    $region4: #{generator_forward.2} parent=1 // pred_region
      _
    $region5: #{generator_forward.2} parent=1 // pred_fallthru
      _
    // Predicated region
    $region6: #{generator_forward.2} parent=1 // pred_check
      _
    $region7: #{generator_forward.2} parent=1 // pred_check_branch
      %27 = sbr.rel (0) target = $region9
    $region8: #{generator_forward.2} parent=1 // pred_region
      _
    $region9: #{generator_forward.2} parent=1 // pred_fallthru
      _
    // Predicated region
    $region10: #{generator_forward.2} parent=1 // pred_check
      _
    $region11: #{generator_forward.2} parent=1 // pred_check_branch
      %29 = sbr.rel (0) target = $region13
    $region12: #{generator_forward.2} parent=1 // pred_region
      %s31 = ssub.s32 16, 16
      %32 = vsyncadd [#allocation3], %s31
      %s34 = sshll.u32 [#allocation2], 4
      %s35 = int_to_ptr.vmem [resolvable:$true] %s34
      %37 = dma.hbm_to_vmem [thread:$0]  %s2, 16, %s35, [#allocation3]
    $region13: #{generator_forward.2} parent=1 // pred_fallthru
      _
    // Predicated region
    $region14: #{generator_forward.2} parent=1 // pred_check
      _
    $region15: #{generator_forward.2} parent=1 // pred_check_branch
      %39 = sbr.rel (0) target = $region17
    $region16: #{generator_forward.2} parent=1 // pred_region
      %s41 = ssub.s32 2048, 2048
      %42 = vsyncadd [#allocation5], %s41
      %s43 = sshll.u32 [#allocation4], 4
      %s44 = int_to_ptr.vmem [resolvable:$true] %s43
      %49 = dma.hbm_to_vmem [thread:$0]  %s3, 2048, %s44, [#allocation5], 128, 128, 8
    $region17: #{generator_forward.2} parent=1 // pred_fallthru
      _
    // Predicated region
    $region18: #{generator_forward.2} parent=1 // pred_check
      _
    $region19: #{generator_forward.2} parent=1 // pred_check_branch
      %51 = sbr.rel (0) target = $region21
    $region20: #{generator_forward.2} parent=1 // pred_region
      %s53 = ssub.s32 32, 32
      %54 = vsyncadd [#allocation5], %s53
      %s56 = sshll.u32 [#allocation6], 4
      %s57 = int_to_ptr.vmem [resolvable:$true] %s56
      %59 = dma.hbm_to_vmem [thread:$0]  %s4, 32, %s57, [#allocation5]
    $region21: #{generator_forward.2} parent=1 // pred_fallthru
      _
    // Predicated region
    $region22: #{generator_forward.2} parent=1 // pred_check
      _
    $region23: #{generator_forward.2} parent=1 // pred_check_branch
      %61 = sbr.rel (0) target = $region25
    $region24: #{generator_forward.2} parent=1 // pred_region
      _
    $region25: #{generator_forward.2} parent=1 // pred_fallthru
      _
    // Predicated region
    $region26: #{generator_forward.2} parent=1 // pred_check
      _
    $region27: #{generator_forward.2} parent=1 // pred_check_branch
      %63 = sbr.rel (0) target = $region29
    $region28: #{generator_forward.2} parent=1 // pred_region
      %s65 = ssub.s32 32, 32
      %66 = vsyncadd [#allocation8], %s65
      %s68 = sshll.u32 [#allocation7], 4
      %s69 = int_to_ptr.vmem [resolvable:$true] %s68
      %71 = dma.hbm_to_vmem [thread:$0]  %s6, 32, %s69, [#allocation8]
    $region29: #{generator_forward.2} parent=1 // pred_fallthru
      _
    // Predicated region
    $region30: #{generator_forward.2} parent=1 // pred_check
      _
    $region31: #{generator_forward.2} parent=1 // pred_check_branch
      %73 = sbr.rel (0) target = $region33
    $region32: #{generator_forward.2} parent=1 // pred_region
      %s75 = ssub.s32 8192, 8192
      %76 = vsyncadd [#allocation8], %s75
      %s77 = sshll.u32 [#allocation9], 4
      %s78 = int_to_ptr.vmem [resolvable:$true] %s77
      %83 = dma.hbm_to_vmem [thread:$0]  %s7, 8192, %s78, [#allocation8], 256, 256, 16
    $region33: #{generator_forward.2} parent=1 // pred_fallthru
      _
    // Predicated region
    $region34: #{generator_forward.2} parent=1 // pred_check
      _
    $region35: #{generator_forward.2} parent=1 // pred_check_branch
      %85 = sbr.rel (0) target = $region37
    $region36: #{generator_forward.2} parent=1 // pred_region
      _
    $region37: #{generator_forward.2} parent=1 // pred_fallthru
      _
    // Predicated region
    $region38: #{generator_forward.2} parent=1 // pred_check
      _
    $region39: #{generator_forward.2} parent=1 // pred_check_branch
      %87 = sbr.rel (0) target = $region41
    $region40: #{generator_forward.2} parent=1 // pred_region
      _
    $region41: #{generator_forward.2} parent=1 // pred_fallthru
      _
    // Predicated region
    $region42: #{generator_forward.2} parent=1 // pred_check
      _
    $region43: #{generator_forward.2} parent=1 // pred_check_branch
      %89 = sbr.rel (0) target = $region45
    $region44: #{generator_forward.2} parent=1 // pred_region
      _
    $region45: #{generator_forward.2} parent=1 // pred_fallthru
      _
    // Predicated region
    $region46: #{generator_forward.2} parent=1 // pred_check
      _
    $region47: #{generator_forward.2} parent=1 // pred_check_branch
      %91 = sbr.rel (0) target = $region49
    $region48: #{generator_forward.2} parent=1 // pred_region
      %s93 = ssub.s32 32768, 32768
      %94 = vsyncadd [#allocation11], %s93
      %s95 = sshll.u32 [#allocation10], 4
      %s96 = int_to_ptr.vmem [resolvable:$true] %s95
      %101 = dma.hbm_to_vmem [thread:$0]  %s11, 32768, %s96, [#allocation11], 512, 512, 32
    $region49: #{generator_forward.2} parent=1 // pred_fallthru
      _
    // Predicated region
    $region50: #{generator_forward.2} parent=1 // pred_check
      _
    $region51: #{generator_forward.2} parent=1 // pred_check_branch
      %103 = sbr.rel (0) target = $region53
    $region52: #{generator_forward.2} parent=1 // pred_region
      _
    $region53: #{generator_forward.2} parent=1 // pred_fallthru
      _
    // Predicated region
    $region54: #{generator_forward.2} parent=1 // pred_check
      _
    $region55: #{generator_forward.2} parent=1 // pred_check_branch
      %105 = sbr.rel (0) target = $region57
    $region56: #{generator_forward.2} parent=1 // pred_region
      _
    $region57: #{generator_forward.2} parent=1 // pred_fallthru
      _
    // Predicated region
    $region58: #{generator_forward.2} parent=1 // pred_check
      _
    $region59: #{generator_forward.2} parent=1 // pred_check_branch
      %107 = sbr.rel (0) target = $region61
    $region60: #{generator_forward.2} parent=1 // pred_region
      _
    $region61: #{generator_forward.2} parent=1 // pred_fallthru
      _
    // Predicated region
    $region62: #{generator_forward.2} parent=1 // pred_check
      _
    $region63: #{generator_forward.2} parent=1 // pred_check_branch
      %109 = sbr.rel (0) target = $region65
    $region64: #{generator_forward.2} parent=1 // pred_region
      %110 = dma.done [#allocation3], 16
    $region65: #{generator_forward.2} parent=1 // pred_fallthru
      _
    // Predicated region
    $region66: #{generator_forward.2} parent=1 // pred_check
      _
    $region67: #{generator_forward.2} parent=1 // pred_check_branch
      %112 = sbr.rel (0) target = $region69
    $region68: #{generator_forward.2} parent=1 // pred_region
      %113 = dma.done [#allocation5], 2048
    $region69: #{generator_forward.2} parent=1 // pred_fallthru
      _
    // Predicated region
    $region70: #{generator_forward.2} parent=1 // pred_check
      _
    $region71: #{generator_forward.2} parent=1 // pred_check_branch
      %115 = sbr.rel (0) target = $region73
    $region72: #{generator_forward.2} parent=1 // pred_region
      %116 = dma.done [#allocation5], 32
    $region73: #{generator_forward.2} parent=1 // pred_fallthru
      _
    // Predicated region
    $region74: #{generator_forward.2} parent=1 // pred_check
      _
    $region75: #{generator_forward.2} parent=1 // pred_check_branch
      %118 = sbr.rel (0) target = $region77
    $region76: #{generator_forward.2} parent=1 // pred_region
      %119 = dma.done [#allocation8], 32
    $region77: #{generator_forward.2} parent=1 // pred_fallthru
      _
    // Predicated region
    $region78: #{generator_forward.2} parent=1 // pred_check
      _
    $region79: #{generator_forward.2} parent=1 // pred_check_branch
      %121 = sbr.rel (0) target = $region81
    $region80: #{generator_forward.2} parent=1 // pred_region
      %122 = dma.done [#allocation8], 8192
    $region81: #{generator_forward.2} parent=1 // pred_fallthru
      _
    // Predicated region
    $region82: #{generator_forward.2} parent=1 // pred_check
      _
    $region83: #{generator_forward.2} parent=1 // pred_check_branch
      %124 = sbr.rel (0) target = $region85
    $region84: #{generator_forward.2} parent=1 // pred_region
      %125 = dma.done [#allocation11], 32768
    $region85: #{generator_forward.2} parent=1 // pred_fallthru
      _
    %v127 = vlaneseq
    %v128 = vshrl.u32 %v127, 7
    %v129 = vadd.s32 %v128, 8
    %vm130 = vcmp.lt.s32.totalorder %v128, 8
    %vm131 = vcmp.lt.s32.totalorder %v129, 8
    %v132 = vld [vmem:[%s0] sm:$0xff]
    %v133 = vld [vmem:[%s0 + $0x8] sm:$0xff]
    %v134 = vpack.c.bf16 %v133, %v132
    %v135 = vld [vmem:[%s1] sm:$0xf]
    %v136 = vld [vmem:[%s1 + $0x4] sm:$0xf]
    %v137 = vld [vmem:[%s1 + $0x8] sm:$0xf]
    %v138 = vld [vmem:[%s1 + $0xc] sm:$0xf]
    %v139 = vld [vmem:[#allocation2] sm:$0x1]
    %v141 = vlaneseq
    %v142 = vshrl.u32 %v141, 7
    %v143 = vsub.s32 0, %v142
    %v144 = vrot.slane %v139, %v143
    %v150 = vunpack.c.l.b16 %v135
    %v151 = vunpack.c.l.b16 %v136
    %v152 = vunpack.c.l.b16 %v137
    %v153 = vunpack.c.l.b16 %v138
    %v154 = vpack.c.b16 %v151, %v150
    %v155 = vpack.c.b16 %v153, %v152
    %vm158 = vcmask 261120
    %v160 = vsel %vm158, %v134, 0
    %162 = vmatprep.subr.bf16.mxu0 0
    %163 = vmatpush1.bf16.msra.mxu0 %v154
    %164 = vmatprep.subr.bf16.mxu0 0
    %165 = vmatpush1.bf16.msra.mxu0 %v155
    %166 = vmatprep.subr.bf16.mxu0 0
    %167 = vmatpush1.bf16.msra.mxu0 0
    %168 = vmatprep.subr.bf16.mxu0 0
    %169 = vmatpush1.bf16.msra.mxu0 0
    %170 = vmatprep.subr.bf16.mxu0 0
    %171 = vmatpush1.bf16.msra.mxu0 0
    %172 = vmatprep.subr.bf16.mxu0 0
    %173 = vmatpush1.bf16.msra.mxu0 0
    %174 = vmatprep.subr.bf16.mxu0 0
    %175 = vmatpush1.bf16.msra.mxu0 0
    %176 = vmatprep.subr.bf16.mxu0 0
    %177 = vmatpush1.bf16.msra.mxu0 0
    %178 = vmatprep.subr.bf16.mxu0 0
    %179 = vmatpush1.bf16.msra.mxu0 0
    %180 = vmatprep.subr.bf16.mxu0 0
    %181 = vmatpush1.bf16.msra.mxu0 0
    %182 = vmatprep.subr.bf16.mxu0 0
    %183 = vmatpush1.bf16.msra.mxu0 0
    %184 = vmatprep.subr.bf16.mxu0 0
    %185 = vmatpush1.bf16.msra.mxu0 0
    %186 = vmatprep.subr.bf16.mxu0 0
    %187 = vmatpush1.bf16.msra.mxu0 0
    %188 = vmatprep.subr.bf16.mxu0 0
    %189 = vmatpush1.bf16.msra.mxu0 0
    %190 = vmatprep.subr.bf16.mxu0 0
    %191 = vmatpush1.bf16.msra.mxu0 0
    %192 = vmatprep.subr.bf16.mxu0 0
    %193 = vmatpush1.bf16.msra.mxu0 0
    %194 = vmatprep.mubr.bf16.mxu0 0
    %195 = vmatmul.mubr.bf16.gmra.mrb[0].mxu0 %v160
    %v196 = vpop.f32.mrb[0].mxu0
    %v197 = vadd.f32 %v144, %v196
    %v198 = vpop.f32.mrb[0].mxu0
    %v199 = vpop.f32.mrb[0].mxu0
    %v200 = vadd.f32 %v144, %v199
    %v201 = vpop.f32.mrb[0].mxu0
    %202 = vdwg.mxu0
    %v203 = vmul.f32 %v197, 0.2
    %v204 = vmul.f32 %v200, 0.2
    %v205 = vmax.f32 %v197, %v203
    %v206 = vmax.f32 %v200, %v204
    %v207 = vpack.c.bf16 %v206, %v205
    %v208 = vld [vmem:[#allocation4] sm:$0xff]
    %v209 = vld [vmem:[#allocation4 + $0x8] sm:$0xff]
    %v210 = vld [vmem:[#allocation4 + $0x10] sm:$0xff]
    %v211 = vld [vmem:[#allocation4 + $0x18] sm:$0xff]
    %v212 = vld [vmem:[#allocation4 + $0x20] sm:$0xff]
    %v213 = vld [vmem:[#allocation4 + $0x28] sm:$0xff]
    %v214 = vld [vmem:[#allocation4 + $0x30] sm:$0xff]
    %v215 = vld [vmem:[#allocation4 + $0x38] sm:$0xff]
    %v216 = vld [vmem:[#allocation4 + $0x40] sm:$0xff]
    %v217 = vld [vmem:[#allocation4 + $0x48] sm:$0xff]
    %v218 = vld [vmem:[#allocation4 + $0x50] sm:$0xff]
    %v219 = vld [vmem:[#allocation4 + $0x58] sm:$0xff]
    %v220 = vld [vmem:[#allocation4 + $0x60] sm:$0xff]
    %v221 = vld [vmem:[#allocation4 + $0x68] sm:$0xff]
    %v222 = vld [vmem:[#allocation4 + $0x70] sm:$0xff]
    %v223 = vld [vmem:[#allocation4 + $0x78] sm:$0xff]
    %v224 = vld [vmem:[#allocation6] sm:$0x3]
    %v226 = vlaneseq
    %v227 = vshrl.u32 %v226, 7
    %v228 = vsub.s32 0, %v227
    %v229 = vrot.slane %v224, %v228
    %v230 = vlaneseq
    %v231 = vshrl.u32 %v230, 7
    %v232 = vsub.s32 1, %v231
    %v233 = vrot.slane %v224, %v232
    %v252 = vunpack.c.l.b16 %v208
    %v253 = vunpack.c.h.b16 %v208
    %v254 = vunpack.c.l.b16 %v209
    %v255 = vunpack.c.h.b16 %v209
    %v256 = vunpack.c.l.b16 %v210
    %v257 = vunpack.c.h.b16 %v210
    %v258 = vunpack.c.l.b16 %v211
    %v259 = vunpack.c.h.b16 %v211
    %v260 = vunpack.c.l.b16 %v212
    %v261 = vunpack.c.h.b16 %v212
    %v262 = vunpack.c.l.b16 %v213
    %v263 = vunpack.c.h.b16 %v213
    %v264 = vunpack.c.l.b16 %v214
    %v265 = vunpack.c.h.b16 %v214
    %v266 = vunpack.c.l.b16 %v215
    %v267 = vunpack.c.h.b16 %v215
    %v268 = vunpack.c.l.b16 %v216
    %v269 = vunpack.c.h.b16 %v216
    %v270 = vunpack.c.l.b16 %v217
    %v271 = vunpack.c.h.b16 %v217
    %v272 = vunpack.c.l.b16 %v218
    %v273 = vunpack.c.h.b16 %v218
    %v274 = vunpack.c.l.b16 %v219
    %v275 = vunpack.c.h.b16 %v219
    %v276 = vunpack.c.l.b16 %v220
    %v277 = vunpack.c.h.b16 %v220
    %v278 = vunpack.c.l.b16 %v221
    %v279 = vunpack.c.h.b16 %v221
    %v280 = vunpack.c.l.b16 %v222
    %v281 = vunpack.c.h.b16 %v222
    %v282 = vunpack.c.l.b16 %v223
    %v283 = vunpack.c.h.b16 %v223
    %v284 = vpack.c.b16 %v254, %v252
    %v285 = vpack.c.b16 %v255, %v253
    %v286 = vpack.c.b16 %v258, %v256
    %v287 = vpack.c.b16 %v259, %v257
    %v288 = vpack.c.b16 %v262, %v260
    %v289 = vpack.c.b16 %v263, %v261
    %v290 = vpack.c.b16 %v266, %v264
    %v291 = vpack.c.b16 %v267, %v265
    %v292 = vpack.c.b16 %v270, %v268
    %v293 = vpack.c.b16 %v271, %v269
    %v294 = vpack.c.b16 %v274, %v272
    %v295 = vpack.c.b16 %v275, %v273
    %v296 = vpack.c.b16 %v278, %v276
    %v297 = vpack.c.b16 %v279, %v277
    %v298 = vpack.c.b16 %v282, %v280
    %v299 = vpack.c.b16 %v283, %v281
    %316 = vmatprep.subr.bf16.mxu0 %v285
    %317 = vmatpush1.bf16.msra.mxu0 %v284
    %318 = vmatprep.subr.bf16.mxu0 %v287
    %319 = vmatpush1.bf16.msra.mxu0 %v286
    %320 = vmatprep.subr.bf16.mxu0 %v289
    %321 = vmatpush1.bf16.msra.mxu0 %v288
    %322 = vmatprep.subr.bf16.mxu0 %v291
    %323 = vmatpush1.bf16.msra.mxu0 %v290
    %324 = vmatprep.subr.bf16.mxu0 %v293
    %325 = vmatpush1.bf16.msra.mxu0 %v292
    %326 = vmatprep.subr.bf16.mxu0 %v295
    %327 = vmatpush1.bf16.msra.mxu0 %v294
    %328 = vmatprep.subr.bf16.mxu0 %v297
    %329 = vmatpush1.bf16.msra.mxu0 %v296
    %330 = vmatprep.subr.bf16.mxu0 %v299
    %331 = vmatpush1.bf16.msra.mxu0 %v298
    %332 = vmatprep.subr.bf16.mxu0 0
    %333 = vmatpush1.bf16.msra.mxu0 0
    %334 = vmatprep.subr.bf16.mxu0 0
    %335 = vmatpush1.bf16.msra.mxu0 0
    %336 = vmatprep.subr.bf16.mxu0 0
    %337 = vmatpush1.bf16.msra.mxu0 0
    %338 = vmatprep.subr.bf16.mxu0 0
    %339 = vmatpush1.bf16.msra.mxu0 0
    %340 = vmatprep.subr.bf16.mxu0 0
    %341 = vmatpush1.bf16.msra.mxu0 0
    %342 = vmatprep.subr.bf16.mxu0 0
    %343 = vmatpush1.bf16.msra.mxu0 0
    %344 = vmatprep.subr.bf16.mxu0 0
    %345 = vmatpush1.bf16.msra.mxu0 0
    %346 = vmatprep.subr.bf16.mxu0 0
    %347 = vmatpush1.bf16.msra.mxu0 0
    %348 = vmatprep.mubr.bf16.mxu0 0
    %349 = vmatmul.mubr.bf16.gmra.mrb[0].mxu0 %v207
    %v350 = vpop.f32.mrb[0].mxu0
    %v351 = vadd.f32 %v229, %v350
    %v352 = vpop.f32.mrb[0].mxu0
    %v353 = vadd.f32 %v233, %v352
    %v354 = vpop.f32.mrb[0].mxu0
    %v355 = vadd.f32 %v229, %v354
    %v356 = vpop.f32.mrb[0].mxu0
    %v357 = vadd.f32 %v233, %v356
    %358 = vdwg.mxu0
    %v359 = vld [vmem:[%s5] sm:$0x3]
    %v360 = vld [vmem:[#allocation7] sm:$0x3]
    %v361 = vsel %vm130, 1, 0
    %v362 = vsel %vm131, 1, 0
    %vm363 = vcmp.eq.s32.totalorder %v361, 1
    %vm364 = vcmp.eq.s32.totalorder %v362, 1
    %v365 = vsel %vm363, %v351, 0.0
    %v366 = vsel %vm363, %v353, 0.0
    %v367 = vsel %vm364, %v355, 0.0
    %v368 = vsel %vm364, %v357, 0.0
    %v369 = vadd.f32 %v365, %v367
    %v370 = vrot.slane %v369, 4
    %v371 = vadd.f32 %v369, %v370
    %v372 = vrot.slane %v371, 2
    %v373 = vadd.f32 %v371, %v372
    %v374 = vrot.slane %v373, 1
    %v375 = vadd.f32 %v373, %v374
    %v376 = vadd.f32 %v366, %v368
    %v377 = vrot.slane %v376, 4
    %v378 = vadd.f32 %v376, %v377
    %v379 = vrot.slane %v378, 2
    %v380 = vadd.f32 %v378, %v379
    %v381 = vrot.slane %v380, 1
    %v382 = vadd.f32 %v380, %v381
    %v383 = vmul.f32 %v365, %v365
    %v384 = vmul.f32 %v366, %v366
    %v385 = vmul.f32 %v367, %v367
    %v386 = vmul.f32 %v368, %v368
    %v387 = vadd.f32 %v383, %v385
    %v388 = vrot.slane %v387, 4
    %v389 = vadd.f32 %v387, %v388
    %v390 = vrot.slane %v389, 2
    %v391 = vadd.f32 %v389, %v390
    %v392 = vrot.slane %v391, 1
    %v393 = vadd.f32 %v391, %v392
    %v394 = vadd.f32 %v384, %v386
    %v395 = vrot.slane %v394, 4
    %v396 = vadd.f32 %v394, %v395
    %v397 = vrot.slane %v396, 2
    %v398 = vadd.f32 %v396, %v397
    %v399 = vrot.slane %v398, 1
    %v400 = vadd.f32 %v398, %v399
    %v401 = vmul.f32 %v375, 0.125
    %v402 = vmul.f32 %v382, 0.125
    %v403 = vmul.f32 %v393, 0.125
    %v404 = vmul.f32 %v400, 0.125
    %v405 = vmul.f32 %v401, %v401
    %v406 = vmul.f32 %v402, %v402
    %v407 = vsub.f32 %v403, %v405
    %v408 = vsub.f32 %v404, %v406
    %v409 = vadd.f32 %v407, 0.8
    %v410 = vadd.f32 %v408, 0.8
    %v411 = vrsqrt.pop %v409
    %v412 = vrsqrt.pop %v410
    %v414 = vlaneseq
    %v415 = vshrl.u32 %v414, 7
    %v416 = vsub.s32 0, %v415
    %v417 = vrot.slane %v359, %v416
    %v418 = vlaneseq
    %v419 = vshrl.u32 %v418, 7
    %v420 = vsub.s32 1, %v419
    %v421 = vrot.slane %v359, %v420
    %v424 = vmul.f32 %v411, %v417
    %v425 = vmul.f32 %v412, %v421
    %v426 = vmul.f32 %v401, %v424
    %v427 = vmul.f32 %v402, %v425
    %v430 = vcombine.low %v426, %v427
    %v432 = vunpack.c.l.s4 1966171168
    %v433 = vunpack.c.0.s8 %v432
    %v434 = vlaneseq
    %v435 = vshrl.u32 %v434, 7
    %v436 = vsub.s32 %v433, %v435
    %v437 = vrot.slane %v430, %v436
    %v439 = vunpack.c.l.s4 1966171168
    %v440 = vunpack.c.0.s8 %v439
    %v441 = vlaneseq
    %v442 = vshrl.u32 %v441, 7
    %v443 = vsub.s32 %v440, %v442
    %v444 = vrot.slane %v437, %v443
    %v446 = vsub.f32 %v360, %v444
    %v447 = vlaneseq
    %v448 = vshrl.u32 %v447, 7
    %v449 = vsub.s32 0, %v448
    %v450 = vrot.slane %v424, %v449
    %v451 = vlaneseq
    %v452 = vshrl.u32 %v451, 7
    %v453 = vsub.s32 0, %v452
    %v454 = vrot.slane %v425, %v453
    %v455 = vmul.f32 %v351, %v450
    %v456 = vmul.f32 %v353, %v454
    %v457 = vmul.f32 %v355, %v450
    %v458 = vmul.f32 %v357, %v454
    %v460 = vlaneseq
    %v461 = vshrl.u32 %v460, 7
    %v462 = vsub.s32 0, %v461
    %v463 = vrot.slane %v446, %v462
    %v464 = vlaneseq
    %v465 = vshrl.u32 %v464, 7
    %v466 = vsub.s32 1, %v465
    %v467 = vrot.slane %v446, %v466
    %v470 = vadd.f32 %v455, %v463
    %v471 = vadd.f32 %v456, %v467
    %v472 = vadd.f32 %v457, %v463
    %v473 = vadd.f32 %v458, %v467
    %v474 = vmul.f32 %v470, 0.2
    %v475 = vmul.f32 %v471, 0.2
    %v476 = vmul.f32 %v472, 0.2
    %v477 = vmul.f32 %v473, 0.2
    %v478 = vmax.f32 %v470, %v474
    %v479 = vmax.f32 %v471, %v475
    %v480 = vmax.f32 %v472, %v476
    %v481 = vmax.f32 %v473, %v477
    %v482 = vpack.c.bf16 %v480, %v478
    %v483 = vpack.c.bf16 %v481, %v479
    %v484 = vld [vmem:[#allocation9] sm:$0xff]
    %v485 = vld [vmem:[#allocation9 + $0x8] sm:$0xff]
    %v486 = vld [vmem:[#allocation9 + $0x10] sm:$0xff]
    %v487 = vld [vmem:[#allocation9 + $0x18] sm:$0xff]
    %v488 = vld [vmem:[#allocation9 + $0x20] sm:$0xff]
    %v489 = vld [vmem:[#allocation9 + $0x28] sm:$0xff]
    %v490 = vld [vmem:[#allocation9 + $0x30] sm:$0xff]
    %v491 = vld [vmem:[#allocation9 + $0x38] sm:$0xff]
    %v492 = vld [vmem:[#allocation9 + $0x40] sm:$0xff]
    %v493 = vld [vmem:[#allocation9 + $0x48] sm:$0xff]
    %v494 = vld [vmem:[#allocation9 + $0x50] sm:$0xff]
    %v495 = vld [vmem:[#allocation9 + $0x58] sm:$0xff]
    %v496 = vld [vmem:[#allocation9 + $0x60] sm:$0xff]
    %v497 = vld [vmem:[#allocation9 + $0x68] sm:$0xff]
    %v498 = vld [vmem:[#allocation9 + $0x70] sm:$0xff]
    %v499 = vld [vmem:[#allocation9 + $0x78] sm:$0xff]
    %v500 = vld [vmem:[#allocation9 + $0x80] sm:$0xff]
    %v501 = vld [vmem:[#allocation9 + $0x88] sm:$0xff]
    %v502 = vld [vmem:[#allocation9 + $0x90] sm:$0xff]
    %v503 = vld [vmem:[#allocation9 + $0x98] sm:$0xff]
    %v504 = vld [vmem:[#allocation9 + $0xa0] sm:$0xff]
    %v505 = vld [vmem:[#allocation9 + $0xa8] sm:$0xff]
    %v506 = vld [vmem:[#allocation9 + $0xb0] sm:$0xff]
    %v507 = vld [vmem:[#allocation9 + $0xb8] sm:$0xff]
    %v508 = vld [vmem:[#allocation9 + $0xc0] sm:$0xff]
    %v509 = vld [vmem:[#allocation9 + $0xc8] sm:$0xff]
    %v510 = vld [vmem:[#allocation9 + $0xd0] sm:$0xff]
    %v511 = vld [vmem:[#allocation9 + $0xd8] sm:$0xff]
    %v512 = vld [vmem:[#allocation9 + $0xe0] sm:$0xff]
    %v513 = vld [vmem:[#allocation9 + $0xe8] sm:$0xff]
    %v514 = vld [vmem:[#allocation9 + $0xf0] sm:$0xff]
    %v515 = vld [vmem:[#allocation9 + $0xf8] sm:$0xff]
    %v516 = vld [vmem:[#allocation9 + $0x100] sm:$0xff]
    %v517 = vld [vmem:[#allocation9 + $0x108] sm:$0xff]
    %v518 = vld [vmem:[#allocation9 + $0x110] sm:$0xff]
    %v519 = vld [vmem:[#allocation9 + $0x118] sm:$0xff]
    %v520 = vld [vmem:[#allocation9 + $0x120] sm:$0xff]
    %v521 = vld [vmem:[#allocation9 + $0x128] sm:$0xff]
    %v522 = vld [vmem:[#allocation9 + $0x130] sm:$0xff]
    %v523 = vld [vmem:[#allocation9 + $0x138] sm:$0xff]
    %v524 = vld [vmem:[#allocation9 + $0x140] sm:$0xff]
    %v525 = vld [vmem:[#allocation9 + $0x148] sm:$0xff]
    %v526 = vld [vmem:[#allocation9 + $0x150] sm:$0xff]
    %v527 = vld [vmem:[#allocation9 + $0x158] sm:$0xff]
    %v528 = vld [vmem:[#allocation9 + $0x160] sm:$0xff]
    %v529 = vld [vmem:[#allocation9 + $0x168] sm:$0xff]
    %v530 = vld [vmem:[#allocation9 + $0x170] sm:$0xff]
    %v531 = vld [vmem:[#allocation9 + $0x178] sm:$0xff]
    %v532 = vld [vmem:[#allocation9 + $0x180] sm:$0xff]
    %v533 = vld [vmem:[#allocation9 + $0x188] sm:$0xff]
    %v534 = vld [vmem:[#allocation9 + $0x190] sm:$0xff]
    %v535 = vld [vmem:[#allocation9 + $0x198] sm:$0xff]
    %v536 = vld [vmem:[#allocation9 + $0x1a0] sm:$0xff]
    %v537 = vld [vmem:[#allocation9 + $0x1a8] sm:$0xff]
    %v538 = vld [vmem:[#allocation9 + $0x1b0] sm:$0xff]
    %v539 = vld [vmem:[#allocation9 + $0x1b8] sm:$0xff]
    %v540 = vld [vmem:[#allocation9 + $0x1c0] sm:$0xff]
    %v541 = vld [vmem:[#allocation9 + $0x1c8] sm:$0xff]
    %v542 = vld [vmem:[#allocation9 + $0x1d0] sm:$0xff]
    %v543 = vld [vmem:[#allocation9 + $0x1d8] sm:$0xff]
    %v544 = vld [vmem:[#allocation9 + $0x1e0] sm:$0xff]
    %v545 = vld [vmem:[#allocation9 + $0x1e8] sm:$0xff]
    %v546 = vld [vmem:[#allocation9 + $0x1f0] sm:$0xff]
    %v547 = vld [vmem:[#allocation9 + $0x1f8] sm:$0xff]
    %v548 = vld [vmem:[%s8] sm:$0xf]
    %v550 = vlaneseq
    %v551 = vshrl.u32 %v550, 7
    %v552 = vsub.s32 0, %v551
    %v553 = vrot.slane %v548, %v552
    %v554 = vlaneseq
    %v555 = vshrl.u32 %v554, 7
    %v556 = vsub.s32 1, %v555
    %v557 = vrot.slane %v548, %v556
    %v558 = vlaneseq
    %v559 = vshrl.u32 %v558, 7
    %v560 = vsub.s32 2, %v559
    %v561 = vrot.slane %v548, %v560
    %v562 = vlaneseq
    %v563 = vshrl.u32 %v562, 7
    %v564 = vsub.s32 3, %v563
    %v565 = vrot.slane %v548, %v564
    %v634 = vunpack.c.l.b16 %v484
    %v635 = vunpack.c.h.b16 %v484
    %v636 = vunpack.c.l.b16 %v485
    %v637 = vunpack.c.h.b16 %v485
    %v638 = vunpack.c.l.b16 %v486
    %v639 = vunpack.c.h.b16 %v486
    %v640 = vunpack.c.l.b16 %v487
    %v641 = vunpack.c.h.b16 %v487
    %v642 = vunpack.c.l.b16 %v488
    %v643 = vunpack.c.h.b16 %v488
    %v644 = vunpack.c.l.b16 %v489
    %v645 = vunpack.c.h.b16 %v489
    %v646 = vunpack.c.l.b16 %v490
    %v647 = vunpack.c.h.b16 %v490
    %v648 = vunpack.c.l.b16 %v491
    %v649 = vunpack.c.h.b16 %v491
    %v650 = vunpack.c.l.b16 %v492
    %v651 = vunpack.c.h.b16 %v492
    %v652 = vunpack.c.l.b16 %v493
    %v653 = vunpack.c.h.b16 %v493
    %v654 = vunpack.c.l.b16 %v494
    %v655 = vunpack.c.h.b16 %v494
    %v656 = vunpack.c.l.b16 %v495
    %v657 = vunpack.c.h.b16 %v495
    %v658 = vunpack.c.l.b16 %v496
    %v659 = vunpack.c.h.b16 %v496
    %v660 = vunpack.c.l.b16 %v497
    %v661 = vunpack.c.h.b16 %v497
    %v662 = vunpack.c.l.b16 %v498
    %v663 = vunpack.c.h.b16 %v498
    %v664 = vunpack.c.l.b16 %v499
    %v665 = vunpack.c.h.b16 %v499
    %v666 = vunpack.c.l.b16 %v500
    %v667 = vunpack.c.h.b16 %v500
    %v668 = vunpack.c.l.b16 %v501
    %v669 = vunpack.c.h.b16 %v501
    %v670 = vunpack.c.l.b16 %v502
    %v671 = vunpack.c.h.b16 %v502
    %v672 = vunpack.c.l.b16 %v503
    %v673 = vunpack.c.h.b16 %v503
    %v674 = vunpack.c.l.b16 %v504
    %v675 = vunpack.c.h.b16 %v504
    %v676 = vunpack.c.l.b16 %v505
    %v677 = vunpack.c.h.b16 %v505
    %v678 = vunpack.c.l.b16 %v506
    %v679 = vunpack.c.h.b16 %v506
    %v680 = vunpack.c.l.b16 %v507
    %v681 = vunpack.c.h.b16 %v507
    %v682 = vunpack.c.l.b16 %v508
    %v683 = vunpack.c.h.b16 %v508
    %v684 = vunpack.c.l.b16 %v509
    %v685 = vunpack.c.h.b16 %v509
    %v686 = vunpack.c.l.b16 %v510
    %v687 = vunpack.c.h.b16 %v510
    %v688 = vunpack.c.l.b16 %v511
    %v689 = vunpack.c.h.b16 %v511
    %v690 = vunpack.c.l.b16 %v512
    %v691 = vunpack.c.h.b16 %v512
    %v692 = vunpack.c.l.b16 %v513
    %v693 = vunpack.c.h.b16 %v513
    %v694 = vunpack.c.l.b16 %v514
    %v695 = vunpack.c.h.b16 %v514
    %v696 = vunpack.c.l.b16 %v515
    %v697 = vunpack.c.h.b16 %v515
    %v698 = vunpack.c.l.b16 %v516
    %v699 = vunpack.c.h.b16 %v516
    %v700 = vunpack.c.l.b16 %v517
    %v701 = vunpack.c.h.b16 %v517
    %v702 = vunpack.c.l.b16 %v518
    %v703 = vunpack.c.h.b16 %v518
    %v704 = vunpack.c.l.b16 %v519
    %v705 = vunpack.c.h.b16 %v519
    %v706 = vunpack.c.l.b16 %v520
    %v707 = vunpack.c.h.b16 %v520
    %v708 = vunpack.c.l.b16 %v521
    %v709 = vunpack.c.h.b16 %v521
    %v710 = vunpack.c.l.b16 %v522
    %v711 = vunpack.c.h.b16 %v522
    %v712 = vunpack.c.l.b16 %v523
    %v713 = vunpack.c.h.b16 %v523
    %v714 = vunpack.c.l.b16 %v524
    %v715 = vunpack.c.h.b16 %v524
    %v716 = vunpack.c.l.b16 %v525
    %v717 = vunpack.c.h.b16 %v525
    %v718 = vunpack.c.l.b16 %v526
    %v719 = vunpack.c.h.b16 %v526
    %v720 = vunpack.c.l.b16 %v527
    %v721 = vunpack.c.h.b16 %v527
    %v722 = vunpack.c.l.b16 %v528
    %v723 = vunpack.c.h.b16 %v528
    %v724 = vunpack.c.l.b16 %v529
    %v725 = vunpack.c.h.b16 %v529
    %v726 = vunpack.c.l.b16 %v530
    %v727 = vunpack.c.h.b16 %v530
    %v728 = vunpack.c.l.b16 %v531
    %v729 = vunpack.c.h.b16 %v531
    %v730 = vunpack.c.l.b16 %v532
    %v731 = vunpack.c.h.b16 %v532
    %v732 = vunpack.c.l.b16 %v533
    %v733 = vunpack.c.h.b16 %v533
    %v734 = vunpack.c.l.b16 %v534
    %v735 = vunpack.c.h.b16 %v534
    %v736 = vunpack.c.l.b16 %v535
    %v737 = vunpack.c.h.b16 %v535
    %v738 = vunpack.c.l.b16 %v536
    %v739 = vunpack.c.h.b16 %v536
    %v740 = vunpack.c.l.b16 %v537
    %v741 = vunpack.c.h.b16 %v537
    %v742 = vunpack.c.l.b16 %v538
    %v743 = vunpack.c.h.b16 %v538
    %v744 = vunpack.c.l.b16 %v539
    %v745 = vunpack.c.h.b16 %v539
    %v746 = vunpack.c.l.b16 %v540
    %v747 = vunpack.c.h.b16 %v540
    %v748 = vunpack.c.l.b16 %v541
    %v749 = vunpack.c.h.b16 %v541
    %v750 = vunpack.c.l.b16 %v542
    %v751 = vunpack.c.h.b16 %v542
    %v752 = vunpack.c.l.b16 %v543
    %v753 = vunpack.c.h.b16 %v543
    %v754 = vunpack.c.l.b16 %v544
    %v755 = vunpack.c.h.b16 %v544
    %v756 = vunpack.c.l.b16 %v545
    %v757 = vunpack.c.h.b16 %v545
    %v758 = vunpack.c.l.b16 %v546
    %v759 = vunpack.c.h.b16 %v546
    %v760 = vunpack.c.l.b16 %v547
    %v761 = vunpack.c.h.b16 %v547
    %v762 = vpack.c.b16 %v638, %v634
    %v763 = vpack.c.b16 %v639, %v635
    %v764 = vpack.c.b16 %v640, %v636
    %v765 = vpack.c.b16 %v641, %v637
    %v766 = vpack.c.b16 %v646, %v642
    %v767 = vpack.c.b16 %v647, %v643
    %v768 = vpack.c.b16 %v648, %v644
    %v769 = vpack.c.b16 %v649, %v645
    %v770 = vpack.c.b16 %v654, %v650
    %v771 = vpack.c.b16 %v655, %v651
    %v772 = vpack.c.b16 %v656, %v652
    %v773 = vpack.c.b16 %v657, %v653
    %v774 = vpack.c.b16 %v662, %v658
    %v775 = vpack.c.b16 %v663, %v659
    %v776 = vpack.c.b16 %v664, %v660
    %v777 = vpack.c.b16 %v665, %v661
    %v778 = vpack.c.b16 %v670, %v666
    %v779 = vpack.c.b16 %v671, %v667
    %v780 = vpack.c.b16 %v672, %v668
    %v781 = vpack.c.b16 %v673, %v669
    %v782 = vpack.c.b16 %v678, %v674
    %v783 = vpack.c.b16 %v679, %v675
    %v784 = vpack.c.b16 %v680, %v676
    %v785 = vpack.c.b16 %v681, %v677
    %v786 = vpack.c.b16 %v686, %v682
    %v787 = vpack.c.b16 %v687, %v683
    %v788 = vpack.c.b16 %v688, %v684
    %v789 = vpack.c.b16 %v689, %v685
    %v790 = vpack.c.b16 %v694, %v690
    %v791 = vpack.c.b16 %v695, %v691
    %v792 = vpack.c.b16 %v696, %v692
    %v793 = vpack.c.b16 %v697, %v693
    %v794 = vpack.c.b16 %v702, %v698
    %v795 = vpack.c.b16 %v703, %v699
    %v796 = vpack.c.b16 %v704, %v700
    %v797 = vpack.c.b16 %v705, %v701
    %v798 = vpack.c.b16 %v710, %v706
    %v799 = vpack.c.b16 %v711, %v707
    %v800 = vpack.c.b16 %v712, %v708
    %v801 = vpack.c.b16 %v713, %v709
    %v802 = vpack.c.b16 %v718, %v714
    %v803 = vpack.c.b16 %v719, %v715
    %v804 = vpack.c.b16 %v720, %v716
    %v805 = vpack.c.b16 %v721, %v717
    %v806 = vpack.c.b16 %v726, %v722
    %v807 = vpack.c.b16 %v727, %v723
    %v808 = vpack.c.b16 %v728, %v724
    %v809 = vpack.c.b16 %v729, %v725
    %v810 = vpack.c.b16 %v734, %v730
    %v811 = vpack.c.b16 %v735, %v731
    %v812 = vpack.c.b16 %v736, %v732
    %v813 = vpack.c.b16 %v737, %v733
    %v814 = vpack.c.b16 %v742, %v738
    %v815 = vpack.c.b16 %v743, %v739
    %v816 = vpack.c.b16 %v744, %v740
    %v817 = vpack.c.b16 %v745, %v741
    %v818 = vpack.c.b16 %v750, %v746
    %v819 = vpack.c.b16 %v751, %v747
    %v820 = vpack.c.b16 %v752, %v748
    %v821 = vpack.c.b16 %v753, %v749
    %v822 = vpack.c.b16 %v758, %v754
    %v823 = vpack.c.b16 %v759, %v755
    %v824 = vpack.c.b16 %v760, %v756
    %v825 = vpack.c.b16 %v761, %v757
    %890 = vmatprep.subr.bf16.mxu0 %v763
    %891 = vmatpush1.bf16.msra.mxu0 %v762
    %892 = vmatprep.subr.bf16.mxu0 %v767
    %893 = vmatpush1.bf16.msra.mxu0 %v766
    %894 = vmatprep.subr.bf16.mxu0 %v771
    %895 = vmatpush1.bf16.msra.mxu0 %v770
    %896 = vmatprep.subr.bf16.mxu0 %v775
    %897 = vmatpush1.bf16.msra.mxu0 %v774
    %898 = vmatprep.subr.bf16.mxu0 %v779
    %899 = vmatpush1.bf16.msra.mxu0 %v778
    %900 = vmatprep.subr.bf16.mxu0 %v783
    %901 = vmatpush1.bf16.msra.mxu0 %v782
    %902 = vmatprep.subr.bf16.mxu0 %v787
    %903 = vmatpush1.bf16.msra.mxu0 %v786
    %904 = vmatprep.subr.bf16.mxu0 %v791
    %905 = vmatpush1.bf16.msra.mxu0 %v790
    %906 = vmatprep.subr.bf16.mxu0 %v795
    %907 = vmatpush1.bf16.msra.mxu0 %v794
    %908 = vmatprep.subr.bf16.mxu0 %v799
    %909 = vmatpush1.bf16.msra.mxu0 %v798
    %910 = vmatprep.subr.bf16.mxu0 %v803
    %911 = vmatpush1.bf16.msra.mxu0 %v802
    %912 = vmatprep.subr.bf16.mxu0 %v807
    %913 = vmatpush1.bf16.msra.mxu0 %v806
    %914 = vmatprep.subr.bf16.mxu0 %v811
    %915 = vmatpush1.bf16.msra.mxu0 %v810
    %916 = vmatprep.subr.bf16.mxu0 %v815
    %917 = vmatpush1.bf16.msra.mxu0 %v814
    %918 = vmatprep.subr.bf16.mxu0 %v819
    %919 = vmatpush1.bf16.msra.mxu0 %v818
    %920 = vmatprep.subr.bf16.mxu0 %v823
    %921 = vmatpush1.bf16.msra.mxu0 %v822
    %922 = vmatprep.mubr.bf16.mxu0 %v483
    %923 = vmatmul.mubr.bf16.gmra.mrb[0].mxu0 %v482
    %v924 = vpop.f32.mrb[0].mxu0
    %v925 = vadd.f32 %v553, %v924
    %v926 = vpop.f32.mrb[0].mxu0
    %v927 = vadd.f32 %v557, %v926
    %v928 = vpop.f32.mrb[0].mxu0
    %v929 = vadd.f32 %v553, %v928
    %v930 = vpop.f32.mrb[0].mxu0
    %v931 = vadd.f32 %v557, %v930
    %932 = vdwg.mxu0
    %933 = vmatprep.subr.bf16.mxu0 %v765
    %934 = vmatpush1.bf16.msra.mxu0 %v764
    %935 = vmatprep.subr.bf16.mxu0 %v769
    %936 = vmatpush1.bf16.msra.mxu0 %v768
    %937 = vmatprep.subr.bf16.mxu0 %v773
    %938 = vmatpush1.bf16.msra.mxu0 %v772
    %939 = vmatprep.subr.bf16.mxu0 %v777
    %940 = vmatpush1.bf16.msra.mxu0 %v776
    %941 = vmatprep.subr.bf16.mxu0 %v781
    %942 = vmatpush1.bf16.msra.mxu0 %v780
    %943 = vmatprep.subr.bf16.mxu0 %v785
    %944 = vmatpush1.bf16.msra.mxu0 %v784
    %945 = vmatprep.subr.bf16.mxu0 %v789
    %946 = vmatpush1.bf16.msra.mxu0 %v788
    %947 = vmatprep.subr.bf16.mxu0 %v793
    %948 = vmatpush1.bf16.msra.mxu0 %v792
    %949 = vmatprep.subr.bf16.mxu0 %v797
    %950 = vmatpush1.bf16.msra.mxu0 %v796
    %951 = vmatprep.subr.bf16.mxu0 %v801
    %952 = vmatpush1.bf16.msra.mxu0 %v800
    %953 = vmatprep.subr.bf16.mxu0 %v805
    %954 = vmatpush1.bf16.msra.mxu0 %v804
    %955 = vmatprep.subr.bf16.mxu0 %v809
    %956 = vmatpush1.bf16.msra.mxu0 %v808
    %957 = vmatprep.subr.bf16.mxu0 %v813
    %958 = vmatpush1.bf16.msra.mxu0 %v812
    %959 = vmatprep.subr.bf16.mxu0 %v817
    %960 = vmatpush1.bf16.msra.mxu0 %v816
    %961 = vmatprep.subr.bf16.mxu0 %v821
    %962 = vmatpush1.bf16.msra.mxu0 %v820
    %963 = vmatprep.subr.bf16.mxu0 %v825
    %964 = vmatpush1.bf16.msra.mxu0 %v824
    %965 = vmatprep.mubr.bf16.mxu0 %v483
    %966 = vmatmul.mubr.bf16.gmra.mrb[0].mxu0 %v482
    %v967 = vpop.f32.mrb[0].mxu0
    %v968 = vadd.f32 %v561, %v967
    %v969 = vpop.f32.mrb[0].mxu0
    %v970 = vadd.f32 %v565, %v969
    %v971 = vpop.f32.mrb[0].mxu0
    %v972 = vadd.f32 %v561, %v971
    %v973 = vpop.f32.mrb[0].mxu0
    %v974 = vadd.f32 %v565, %v973
    %975 = vdwg.mxu0
    %v976 = vld [vmem:[%s9] sm:$0xf]
    %v977 = vld [vmem:[%s10] sm:$0xf]
    %v978 = vsel %vm363, %v925, 0.0
    %v979 = vsel %vm363, %v927, 0.0
    %v980 = vsel %vm363, %v968, 0.0
    %v981 = vsel %vm363, %v970, 0.0
    %v982 = vsel %vm364, %v929, 0.0
    %v983 = vsel %vm364, %v931, 0.0
    %v984 = vsel %vm364, %v972, 0.0
    %v985 = vsel %vm364, %v974, 0.0
    %v986 = vadd.f32 %v978, %v982
    %v987 = vrot.slane %v986, 4
    %v988 = vadd.f32 %v986, %v987
    %v989 = vrot.slane %v988, 2
    %v990 = vadd.f32 %v988, %v989
    %v991 = vrot.slane %v990, 1
    %v992 = vadd.f32 %v990, %v991
    %v993 = vadd.f32 %v979, %v983
    %v994 = vrot.slane %v993, 4
    %v995 = vadd.f32 %v993, %v994
    %v996 = vrot.slane %v995, 2
    %v997 = vadd.f32 %v995, %v996
    %v998 = vrot.slane %v997, 1
    %v999 = vadd.f32 %v997, %v998
    %v1000 = vadd.f32 %v980, %v984
    %v1001 = vrot.slane %v1000, 4
    %v1002 = vadd.f32 %v1000, %v1001
    %v1003 = vrot.slane %v1002, 2
    %v1004 = vadd.f32 %v1002, %v1003
    %v1005 = vrot.slane %v1004, 1
    %v1006 = vadd.f32 %v1004, %v1005
    %v1007 = vadd.f32 %v981, %v985
    %v1008 = vrot.slane %v1007, 4
    %v1009 = vadd.f32 %v1007, %v1008
    %v1010 = vrot.slane %v1009, 2
    %v1011 = vadd.f32 %v1009, %v1010
    %v1012 = vrot.slane %v1011, 1
    %v1013 = vadd.f32 %v1011, %v1012
    %v1014 = vmul.f32 %v978, %v978
    %v1015 = vmul.f32 %v979, %v979
    %v1016 = vmul.f32 %v980, %v980
    %v1017 = vmul.f32 %v981, %v981
    %v1018 = vmul.f32 %v982, %v982
    %v1019 = vmul.f32 %v983, %v983
    %v1020 = vmul.f32 %v984, %v984
    %v1021 = vmul.f32 %v985, %v985
    %v1022 = vadd.f32 %v1014, %v1018
    %v1023 = vrot.slane %v1022, 4
    %v1024 = vadd.f32 %v1022, %v1023
    %v1025 = vrot.slane %v1024, 2
    %v1026 = vadd.f32 %v1024, %v1025
    %v1027 = vrot.slane %v1026, 1
    %v1028 = vadd.f32 %v1026, %v1027
    %v1029 = vadd.f32 %v1015, %v1019
    %v1030 = vrot.slane %v1029, 4
    %v1031 = vadd.f32 %v1029, %v1030
    %v1032 = vrot.slane %v1031, 2
    %v1033 = vadd.f32 %v1031, %v1032
    %v1034 = vrot.slane %v1033, 1
    %v1035 = vadd.f32 %v1033, %v1034
    %v1036 = vadd.f32 %v1016, %v1020
    %v1037 = vrot.slane %v1036, 4
    %v1038 = vadd.f32 %v1036, %v1037
    %v1039 = vrot.slane %v1038, 2
    %v1040 = vadd.f32 %v1038, %v1039
    %v1041 = vrot.slane %v1040, 1
    %v1042 = vadd.f32 %v1040, %v1041
    %v1043 = vadd.f32 %v1017, %v1021
    %v1044 = vrot.slane %v1043, 4
    %v1045 = vadd.f32 %v1043, %v1044
    %v1046 = vrot.slane %v1045, 2
    %v1047 = vadd.f32 %v1045, %v1046
    %v1048 = vrot.slane %v1047, 1
    %v1049 = vadd.f32 %v1047, %v1048
    %v1050 = vmul.f32 %v992, 0.125
    %v1051 = vmul.f32 %v999, 0.125
    %v1052 = vmul.f32 %v1006, 0.125
    %v1053 = vmul.f32 %v1013, 0.125
    %v1054 = vmul.f32 %v1028, 0.125
    %v1055 = vmul.f32 %v1035, 0.125
    %v1056 = vmul.f32 %v1042, 0.125
    %v1057 = vmul.f32 %v1049, 0.125
    %v1058 = vmul.f32 %v1050, %v1050
    %v1059 = vmul.f32 %v1051, %v1051
    %v1060 = vmul.f32 %v1052, %v1052
    %v1061 = vmul.f32 %v1053, %v1053
    %v1062 = vsub.f32 %v1054, %v1058
    %v1063 = vsub.f32 %v1055, %v1059
    %v1064 = vsub.f32 %v1056, %v1060
    %v1065 = vsub.f32 %v1057, %v1061
    %v1066 = vadd.f32 %v1062, 0.8
    %v1067 = vadd.f32 %v1063, 0.8
    %v1068 = vadd.f32 %v1064, 0.8
    %v1069 = vadd.f32 %v1065, 0.8
    %v1070 = vrsqrt.pop %v1066
    %v1071 = vrsqrt.pop %v1067
    %v1072 = vrsqrt.pop %v1068
    %v1073 = vrsqrt.pop %v1069
    %v1075 = vlaneseq
    %v1076 = vshrl.u32 %v1075, 7
    %v1077 = vsub.s32 0, %v1076
    %v1078 = vrot.slane %v976, %v1077
    %v1079 = vlaneseq
    %v1080 = vshrl.u32 %v1079, 7
    %v1081 = vsub.s32 1, %v1080
    %v1082 = vrot.slane %v976, %v1081
    %v1083 = vlaneseq
    %v1084 = vshrl.u32 %v1083, 7
    %v1085 = vsub.s32 2, %v1084
    %v1086 = vrot.slane %v976, %v1085
    %v1087 = vlaneseq
    %v1088 = vshrl.u32 %v1087, 7
    %v1089 = vsub.s32 3, %v1088
    %v1090 = vrot.slane %v976, %v1089
    %v1095 = vmul.f32 %v1070, %v1078
    %v1096 = vmul.f32 %v1071, %v1082
    %v1097 = vmul.f32 %v1072, %v1086
    %v1098 = vmul.f32 %v1073, %v1090
    %v1099 = vmul.f32 %v1050, %v1095
    %v1100 = vmul.f32 %v1051, %v1096
    %v1101 = vmul.f32 %v1052, %v1097
    %v1102 = vmul.f32 %v1053, %v1098
    %v1107 = vcombine.low %v1099, %v1100
    %v1108 = vcombine.low %v1101, %v1102
    %v1110 = vunpack.c.l.s4 1966171168
    %v1111 = vunpack.c.0.s8 %v1110
    %v1112 = vlaneseq
    %v1113 = vshrl.u32 %v1112, 7
    %v1114 = vsub.s32 %v1111, %v1113
    %v1115 = vrot.slane %v1107, %v1114
    %v1117 = vunpack.c.l.s4 1966171168
    %v1118 = vunpack.c.0.s8 %v1117
    %v1119 = vlaneseq
    %v1120 = vshrl.u32 %v1119, 7
    %v1121 = vsub.s32 %v1118, %v1120
    %v1122 = vrot.slane %v1108, %v1121
    %v1123 = vcombine.low %v1115, %v1122
    %v1125 = vunpack.c.l.s4 1966171168
    %v1126 = vunpack.c.0.s8 %v1125
    %v1127 = vlaneseq
    %v1128 = vshrl.u32 %v1127, 7
    %v1129 = vsub.s32 %v1126, %v1128
    %v1130 = vrot.slane %v1123, %v1129
    %v1132 = vsub.f32 %v977, %v1130
    %v1133 = vlaneseq
    %v1134 = vshrl.u32 %v1133, 7
    %v1135 = vsub.s32 0, %v1134
    %v1136 = vrot.slane %v1095, %v1135
    %v1137 = vlaneseq
    %v1138 = vshrl.u32 %v1137, 7
    %v1139 = vsub.s32 0, %v1138
    %v1140 = vrot.slane %v1096, %v1139
    %v1141 = vlaneseq
    %v1142 = vshrl.u32 %v1141, 7
    %v1143 = vsub.s32 0, %v1142
    %v1144 = vrot.slane %v1097, %v1143
    %v1145 = vlaneseq
    %v1146 = vshrl.u32 %v1145, 7
    %v1147 = vsub.s32 0, %v1146
    %v1148 = vrot.slane %v1098, %v1147
    %v1149 = vmul.f32 %v925, %v1136
    %v1150 = vmul.f32 %v927, %v1140
    %v1151 = vmul.f32 %v968, %v1144
    %v1152 = vmul.f32 %v970, %v1148
    %v1153 = vmul.f32 %v929, %v1136
    %v1154 = vmul.f32 %v931, %v1140
    %v1155 = vmul.f32 %v972, %v1144
    %v1156 = vmul.f32 %v974, %v1148
    %v1158 = vlaneseq
    %v1159 = vshrl.u32 %v1158, 7
    %v1160 = vsub.s32 0, %v1159
    %v1161 = vrot.slane %v1132, %v1160
    %v1162 = vlaneseq
    %v1163 = vshrl.u32 %v1162, 7
    %v1164 = vsub.s32 1, %v1163
    %v1165 = vrot.slane %v1132, %v1164
    %v1166 = vlaneseq
    %v1167 = vshrl.u32 %v1166, 7
    %v1168 = vsub.s32 2, %v1167
    %v1169 = vrot.slane %v1132, %v1168
    %v1170 = vlaneseq
    %v1171 = vshrl.u32 %v1170, 7
    %v1172 = vsub.s32 3, %v1171
    %v1173 = vrot.slane %v1132, %v1172
    %v1178 = vadd.f32 %v1149, %v1161
    %v1179 = vadd.f32 %v1150, %v1165
    %v1180 = vadd.f32 %v1151, %v1169
    %v1181 = vadd.f32 %v1152, %v1173
    %v1182 = vadd.f32 %v1153, %v1161
    %v1183 = vadd.f32 %v1154, %v1165
    %v1184 = vadd.f32 %v1155, %v1169
    %v1185 = vadd.f32 %v1156, %v1173
    %v1186 = vmul.f32 %v1178, 0.2
    %v1187 = vmul.f32 %v1179, 0.2
    %v1188 = vmul.f32 %v1180, 0.2
    %v1189 = vmul.f32 %v1181, 0.2
    %v1190 = vmul.f32 %v1182, 0.2
    %v1191 = vmul.f32 %v1183, 0.2
    %v1192 = vmul.f32 %v1184, 0.2
    %v1193 = vmul.f32 %v1185, 0.2
    %v1194 = vmax.f32 %v1178, %v1186
    %v1195 = vmax.f32 %v1179, %v1187
    %v1196 = vmax.f32 %v1180, %v1188
    %v1197 = vmax.f32 %v1181, %v1189
    %v1198 = vmax.f32 %v1182, %v1190
    %v1199 = vmax.f32 %v1183, %v1191
    %v1200 = vmax.f32 %v1184, %v1192
    %v1201 = vmax.f32 %v1185, %v1193
    %v1202 = vpack.c.bf16 %v1198, %v1194
    %v1203 = vpack.c.bf16 %v1199, %v1195
    %v1204 = vpack.c.bf16 %v1200, %v1196
    %v1205 = vpack.c.bf16 %v1201, %v1197
    %v1206 = vld [vmem:[#allocation10] sm:$0xff]
    %v1207 = vld [vmem:[#allocation10 + $0x8] sm:$0xff]
    %v1208 = vld [vmem:[#allocation10 + $0x10] sm:$0xff]
    %v1209 = vld [vmem:[#allocation10 + $0x18] sm:$0xff]
    %v1210 = vld [vmem:[#allocation10 + $0x20] sm:$0xff]
    %v1211 = vld [vmem:[#allocation10 + $0x28] sm:$0xff]
    %v1212 = vld [vmem:[#allocation10 + $0x30] sm:$0xff]
    %v1213 = vld [vmem:[#allocation10 + $0x38] sm:$0xff]
    %v1214 = vld [vmem:[#allocation10 + $0x40] sm:$0xff]
    %v1215 = vld [vmem:[#allocation10 + $0x48] sm:$0xff]
    %v1216 = vld [vmem:[#allocation10 + $0x50] sm:$0xff]
    %v1217 = vld [vmem:[#allocation10 + $0x58] sm:$0xff]
    %v1218 = vld [vmem:[#allocation10 + $0x60] sm:$0xff]
    %v1219 = vld [vmem:[#allocation10 + $0x68] sm:$0xff]
    %v1220 = vld [vmem:[#allocation10 + $0x70] sm:$0xff]
    %v1221 = vld [vmem:[#allocation10 + $0x78] sm:$0xff]
    %v1222 = vld [vmem:[#allocation10 + $0x80] sm:$0xff]
    %v1223 = vld [vmem:[#allocation10 + $0x88] sm:$0xff]
    %v1224 = vld [vmem:[#allocation10 + $0x90] sm:$0xff]
    %v1225 = vld [vmem:[#allocation10 + $0x98] sm:$0xff]
    %v1226 = vld [vmem:[#allocation10 + $0xa0] sm:$0xff]
    %v1227 = vld [vmem:[#allocation10 + $0xa8] sm:$0xff]
    %v1228 = vld [vmem:[#allocation10 + $0xb0] sm:$0xff]
    %v1229 = vld [vmem:[#allocation10 + $0xb8] sm:$0xff]
    %v1230 = vld [vmem:[#allocation10 + $0xc0] sm:$0xff]
    %v1231 = vld [vmem:[#allocation10 + $0xc8] sm:$0xff]
    %v1232 = vld [vmem:[#allocation10 + $0xd0] sm:$0xff]
    %v1233 = vld [vmem:[#allocation10 + $0xd8] sm:$0xff]
    %v1234 = vld [vmem:[#allocation10 + $0xe0] sm:$0xff]
    %v1235 = vld [vmem:[#allocation10 + $0xe8] sm:$0xff]
    %v1236 = vld [vmem:[#allocation10 + $0xf0] sm:$0xff]
    %v1237 = vld [vmem:[#allocation10 + $0xf8] sm:$0xff]
    %v1238 = vld [vmem:[#allocation10 + $0x100] sm:$0xff]
    %v1239 = vld [vmem:[#allocation10 + $0x108] sm:$0xff]
    %v1240 = vld [vmem:[#allocation10 + $0x110] sm:$0xff]
    %v1241 = vld [vmem:[#allocation10 + $0x118] sm:$0xff]
    %v1242 = vld [vmem:[#allocation10 + $0x120] sm:$0xff]
    %v1243 = vld [vmem:[#allocation10 + $0x128] sm:$0xff]
    %v1244 = vld [vmem:[#allocation10 + $0x130] sm:$0xff]
    %v1245 = vld [vmem:[#allocation10 + $0x138] sm:$0xff]
    %v1246 = vld [vmem:[#allocation10 + $0x140] sm:$0xff]
    %v1247 = vld [vmem:[#allocation10 + $0x148] sm:$0xff]
    %v1248 = vld [vmem:[#allocation10 + $0x150] sm:$0xff]
    %v1249 = vld [vmem:[#allocation10 + $0x158] sm:$0xff]
    %v1250 = vld [vmem:[#allocation10 + $0x160] sm:$0xff]
    %v1251 = vld [vmem:[#allocation10 + $0x168] sm:$0xff]
    %v1252 = vld [vmem:[#allocation10 + $0x170] sm:$0xff]
    %v1253 = vld [vmem:[#allocation10 + $0x178] sm:$0xff]
    %v1254 = vld [vmem:[#allocation10 + $0x180] sm:$0xff]
    %v1255 = vld [vmem:[#allocation10 + $0x188] sm:$0xff]
    %v1256 = vld [vmem:[#allocation10 + $0x190] sm:$0xff]
    %v1257 = vld [vmem:[#allocation10 + $0x198] sm:$0xff]
    %v1258 = vld [vmem:[#allocation10 + $0x1a0] sm:$0xff]
    %v1259 = vld [vmem:[#allocation10 + $0x1a8] sm:$0xff]
    %v1260 = vld [vmem:[#allocation10 + $0x1b0] sm:$0xff]
    %v1261 = vld [vmem:[#allocation10 + $0x1b8] sm:$0xff]
    %v1262 = vld [vmem:[#allocation10 + $0x1c0] sm:$0xff]
    %v1263 = vld [vmem:[#allocation10 + $0x1c8] sm:$0xff]
    %v1264 = vld [vmem:[#allocation10 + $0x1d0] sm:$0xff]
    %v1265 = vld [vmem:[#allocation10 + $0x1d8] sm:$0xff]
    %v1266 = vld [vmem:[#allocation10 + $0x1e0] sm:$0xff]
    %v1267 = vld [vmem:[#allocation10 + $0x1e8] sm:$0xff]
    %v1268 = vld [vmem:[#allocation10 + $0x1f0] sm:$0xff]
    %v1269 = vld [vmem:[#allocation10 + $0x1f8] sm:$0xff]
    %v1270 = vld [vmem:[#allocation10 + $0x200] sm:$0xff]
    %v1271 = vld [vmem:[#allocation10 + $0x208] sm:$0xff]
    %v1272 = vld [vmem:[#allocation10 + $0x210] sm:$0xff]
    %v1273 = vld [vmem:[#allocation10 + $0x218] sm:$0xff]
    %v1274 = vld [vmem:[#allocation10 + $0x220] sm:$0xff]
    %v1275 = vld [vmem:[#allocation10 + $0x228] sm:$0xff]
    %v1276 = vld [vmem:[#allocation10 + $0x230] sm:$0xff]
    %v1277 = vld [vmem:[#allocation10 + $0x238] sm:$0xff]
    %v1278 = vld [vmem:[#allocation10 + $0x240] sm:$0xff]
    %v1279 = vld [vmem:[#allocation10 + $0x248] sm:$0xff]
    %v1280 = vld [vmem:[#allocation10 + $0x250] sm:$0xff]
    %v1281 = vld [vmem:[#allocation10 + $0x258] sm:$0xff]
    %v1282 = vld [vmem:[#allocation10 + $0x260] sm:$0xff]
    %v1283 = vld [vmem:[#allocation10 + $0x268] sm:$0xff]
    %v1284 = vld [vmem:[#allocation10 + $0x270] sm:$0xff]
    %v1285 = vld [vmem:[#allocation10 + $0x278] sm:$0xff]
    %v1286 = vld [vmem:[#allocation10 + $0x280] sm:$0xff]
    %v1287 = vld [vmem:[#allocation10 + $0x288] sm:$0xff]
    %v1288 = vld [vmem:[#allocation10 + $0x290] sm:$0xff]
    %v1289 = vld [vmem:[#allocation10 + $0x298] sm:$0xff]
    %v1290 = vld [vmem:[#allocation10 + $0x2a0] sm:$0xff]
    %v1291 = vld [vmem:[#allocation10 + $0x2a8] sm:$0xff]
    %v1292 = vld [vmem:[#allocation10 + $0x2b0] sm:$0xff]
    %v1293 = vld [vmem:[#allocation10 + $0x2b8] sm:$0xff]
    %v1294 = vld [vmem:[#allocation10 + $0x2c0] sm:$0xff]
    %v1295 = vld [vmem:[#allocation10 + $0x2c8] sm:$0xff]
    %v1296 = vld [vmem:[#allocation10 + $0x2d0] sm:$0xff]
    %v1297 = vld [vmem:[#allocation10 + $0x2d8] sm:$0xff]
    %v1298 = vld [vmem:[#allocation10 + $0x2e0] sm:$0xff]
    %v1299 = vld [vmem:[#allocation10 + $0x2e8] sm:$0xff]
    %v1300 = vld [vmem:[#allocation10 + $0x2f0] sm:$0xff]
    %v1301 = vld [vmem:[#allocation10 + $0x2f8] sm:$0xff]
    %v1302 = vld [vmem:[#allocation10 + $0x300] sm:$0xff]
    %v1303 = vld [vmem:[#allocation10 + $0x308] sm:$0xff]
    %v1304 = vld [vmem:[#allocation10 + $0x310] sm:$0xff]
    %v1305 = vld [vmem:[#allocation10 + $0x318] sm:$0xff]
    %v1306 = vld [vmem:[#allocation10 + $0x320] sm:$0xff]
    %v1307 = vld [vmem:[#allocation10 + $0x328] sm:$0xff]
    %v1308 = vld [vmem:[#allocation10 + $0x330] sm:$0xff]
    %v1309 = vld [vmem:[#allocation10 + $0x338] sm:$0xff]
    %v1310 = vld [vmem:[#allocation10 + $0x340] sm:$0xff]
    %v1311 = vld [vmem:[#allocation10 + $0x348] sm:$0xff]
    %v1312 = vld [vmem:[#allocation10 + $0x350] sm:$0xff]
    %v1313 = vld [vmem:[#allocation10 + $0x358] sm:$0xff]
    %v1314 = vld [vmem:[#allocation10 + $0x360] sm:$0xff]
    %v1315 = vld [vmem:[#allocation10 + $0x368] sm:$0xff]
    %v1316 = vld [vmem:[#allocation10 + $0x370] sm:$0xff]
    %v1317 = vld [vmem:[#allocation10 + $0x378] sm:$0xff]
    %v1318 = vld [vmem:[#allocation10 + $0x380] sm:$0xff]
    %v1319 = vld [vmem:[#allocation10 + $0x388] sm:$0xff]
    %v1320 = vld [vmem:[#allocation10 + $0x390] sm:$0xff]
    %v1321 = vld [vmem:[#allocation10 + $0x398] sm:$0xff]
    %v1322 = vld [vmem:[#allocation10 + $0x3a0] sm:$0xff]
    %v1323 = vld [vmem:[#allocation10 + $0x3a8] sm:$0xff]
    %v1324 = vld [vmem:[#allocation10 + $0x3b0] sm:$0xff]
    %v1325 = vld [vmem:[#allocation10 + $0x3b8] sm:$0xff]
    %v1326 = vld [vmem:[#allocation10 + $0x3c0] sm:$0xff]
    %v1327 = vld [vmem:[#allocation10 + $0x3c8] sm:$0xff]
    %v1328 = vld [vmem:[#allocation10 + $0x3d0] sm:$0xff]
    %v1329 = vld [vmem:[#allocation10 + $0x3d8] sm:$0xff]
    %v1330 = vld [vmem:[#allocation10 + $0x3e0] sm:$0xff]
    %v1331 = vld [vmem:[#allocation10 + $0x3e8] sm:$0xff]
    %v1332 = vld [vmem:[#allocation10 + $0x3f0] sm:$0xff]
    %v1333 = vld [vmem:[#allocation10 + $0x3f8] sm:$0xff]
    %v1334 = vld [vmem:[#allocation10 + $0x400] sm:$0xff]
    %v1335 = vld [vmem:[#allocation10 + $0x408] sm:$0xff]
    %v1336 = vld [vmem:[#allocation10 + $0x410] sm:$0xff]
    %v1337 = vld [vmem:[#allocation10 + $0x418] sm:$0xff]
    %v1338 = vld [vmem:[#allocation10 + $0x420] sm:$0xff]
    %v1339 = vld [vmem:[#allocation10 + $0x428] sm:$0xff]
    %v1340 = vld [vmem:[#allocation10 + $0x430] sm:$0xff]
    %v1341 = vld [vmem:[#allocation10 + $0x438] sm:$0xff]
    %v1342 = vld [vmem:[#allocation10 + $0x440] sm:$0xff]
    %v1343 = vld [vmem:[#allocation10 + $0x448] sm:$0xff]
    %v1344 = vld [vmem:[#allocation10 + $0x450] sm:$0xff]
    %v1345 = vld [vmem:[#allocation10 + $0x458] sm:$0xff]
    %v1346 = vld [vmem:[#allocation10 + $0x460] sm:$0xff]
    %v1347 = vld [vmem:[#allocation10 + $0x468] sm:$0xff]
    %v1348 = vld [vmem:[#allocation10 + $0x470] sm:$0xff]
    %v1349 = vld [vmem:[#allocation10 + $0x478] sm:$0xff]
    %v1350 = vld [vmem:[#allocation10 + $0x480] sm:$0xff]
    %v1351 = vld [vmem:[#allocation10 + $0x488] sm:$0xff]
    %v1352 = vld [vmem:[#allocation10 + $0x490] sm:$0xff]
    %v1353 = vld [vmem:[#allocation10 + $0x498] sm:$0xff]
    %v1354 = vld [vmem:[#allocation10 + $0x4a0] sm:$0xff]
    %v1355 = vld [vmem:[#allocation10 + $0x4a8] sm:$0xff]
    %v1356 = vld [vmem:[#allocation10 + $0x4b0] sm:$0xff]
    %v1357 = vld [vmem:[#allocation10 + $0x4b8] sm:$0xff]
    %v1358 = vld [vmem:[#allocation10 + $0x4c0] sm:$0xff]
    %v1359 = vld [vmem:[#allocation10 + $0x4c8] sm:$0xff]
    %v1360 = vld [vmem:[#allocation10 + $0x4d0] sm:$0xff]
    %v1361 = vld [vmem:[#allocation10 + $0x4d8] sm:$0xff]
    %v1362 = vld [vmem:[#allocation10 + $0x4e0] sm:$0xff]
    %v1363 = vld [vmem:[#allocation10 + $0x4e8] sm:$0xff]
    %v1364 = vld [vmem:[#allocation10 + $0x4f0] sm:$0xff]
    %v1365 = vld [vmem:[#allocation10 + $0x4f8] sm:$0xff]
    %v1366 = vld [vmem:[#allocation10 + $0x500] sm:$0xff]
    %v1367 = vld [vmem:[#allocation10 + $0x508] sm:$0xff]
    %v1368 = vld [vmem:[#allocation10 + $0x510] sm:$0xff]
    %v1369 = vld [vmem:[#allocation10 + $0x518] sm:$0xff]
    %v1370 = vld [vmem:[#allocation10 + $0x520] sm:$0xff]
    %v1371 = vld [vmem:[#allocation10 + $0x528] sm:$0xff]
    %v1372 = vld [vmem:[#allocation10 + $0x530] sm:$0xff]
    %v1373 = vld [vmem:[#allocation10 + $0x538] sm:$0xff]
    %v1374 = vld [vmem:[#allocation10 + $0x540] sm:$0xff]
    %v1375 = vld [vmem:[#allocation10 + $0x548] sm:$0xff]
    %v1376 = vld [vmem:[#allocation10 + $0x550] sm:$0xff]
    %v1377 = vld [vmem:[#allocation10 + $0x558] sm:$0xff]
    %v1378 = vld [vmem:[#allocation10 + $0x560] sm:$0xff]
    %v1379 = vld [vmem:[#allocation10 + $0x568] sm:$0xff]
    %v1380 = vld [vmem:[#allocation10 + $0x570] sm:$0xff]
    %v1381 = vld [vmem:[#allocation10 + $0x578] sm:$0xff]
    %v1382 = vld [vmem:[#allocation10 + $0x580] sm:$0xff]
    %v1383 = vld [vmem:[#allocation10 + $0x588] sm:$0xff]
    %v1384 = vld [vmem:[#allocation10 + $0x590] sm:$0xff]
    %v1385 = vld [vmem:[#allocation10 + $0x598] sm:$0xff]
    %v1386 = vld [vmem:[#allocation10 + $0x5a0] sm:$0xff]
    %v1387 = vld [vmem:[#allocation10 + $0x5a8] sm:$0xff]
    %v1388 = vld [vmem:[#allocation10 + $0x5b0] sm:$0xff]
    %v1389 = vld [vmem:[#allocation10 + $0x5b8] sm:$0xff]
    %v1390 = vld [vmem:[#allocation10 + $0x5c0] sm:$0xff]
    %v1391 = vld [vmem:[#allocation10 + $0x5c8] sm:$0xff]
    %v1392 = vld [vmem:[#allocation10 + $0x5d0] sm:$0xff]
    %v1393 = vld [vmem:[#allocation10 + $0x5d8] sm:$0xff]
    %v1394 = vld [vmem:[#allocation10 + $0x5e0] sm:$0xff]
    %v1395 = vld [vmem:[#allocation10 + $0x5e8] sm:$0xff]
    %v1396 = vld [vmem:[#allocation10 + $0x5f0] sm:$0xff]
    %v1397 = vld [vmem:[#allocation10 + $0x5f8] sm:$0xff]
    %v1398 = vld [vmem:[#allocation10 + $0x600] sm:$0xff]
    %v1399 = vld [vmem:[#allocation10 + $0x608] sm:$0xff]
    %v1400 = vld [vmem:[#allocation10 + $0x610] sm:$0xff]
    %v1401 = vld [vmem:[#allocation10 + $0x618] sm:$0xff]
    %v1402 = vld [vmem:[#allocation10 + $0x620] sm:$0xff]
    %v1403 = vld [vmem:[#allocation10 + $0x628] sm:$0xff]
    %v1404 = vld [vmem:[#allocation10 + $0x630] sm:$0xff]
    %v1405 = vld [vmem:[#allocation10 + $0x638] sm:$0xff]
    %v1406 = vld [vmem:[#allocation10 + $0x640] sm:$0xff]
    %v1407 = vld [vmem:[#allocation10 + $0x648] sm:$0xff]
    %v1408 = vld [vmem:[#allocation10 + $0x650] sm:$0xff]
    %v1409 = vld [vmem:[#allocation10 + $0x658] sm:$0xff]
    %v1410 = vld [vmem:[#allocation10 + $0x660] sm:$0xff]
    %v1411 = vld [vmem:[#allocation10 + $0x668] sm:$0xff]
    %v1412 = vld [vmem:[#allocation10 + $0x670] sm:$0xff]
    %v1413 = vld [vmem:[#allocation10 + $0x678] sm:$0xff]
    %v1414 = vld [vmem:[#allocation10 + $0x680] sm:$0xff]
    %v1415 = vld [vmem:[#allocation10 + $0x688] sm:$0xff]
    %v1416 = vld [vmem:[#allocation10 + $0x690] sm:$0xff]
    %v1417 = vld [vmem:[#allocation10 + $0x698] sm:$0xff]
    %v1418 = vld [vmem:[#allocation10 + $0x6a0] sm:$0xff]
    %v1419 = vld [vmem:[#allocation10 + $0x6a8] sm:$0xff]
    %v1420 = vld [vmem:[#allocation10 + $0x6b0] sm:$0xff]
    %v1421 = vld [vmem:[#allocation10 + $0x6b8] sm:$0xff]
    %v1422 = vld [vmem:[#allocation10 + $0x6c0] sm:$0xff]
    %v1423 = vld [vmem:[#allocation10 + $0x6c8] sm:$0xff]
    %v1424 = vld [vmem:[#allocation10 + $0x6d0] sm:$0xff]
    %v1425 = vld [vmem:[#allocation10 + $0x6d8] sm:$0xff]
    %v1426 = vld [vmem:[#allocation10 + $0x6e0] sm:$0xff]
    %v1427 = vld [vmem:[#allocation10 + $0x6e8] sm:$0xff]
    %v1428 = vld [vmem:[#allocation10 + $0x6f0] sm:$0xff]
    %v1429 = vld [vmem:[#allocation10 + $0x6f8] sm:$0xff]
    %v1430 = vld [vmem:[#allocation10 + $0x700] sm:$0xff]
    %v1431 = vld [vmem:[#allocation10 + $0x708] sm:$0xff]
    %v1432 = vld [vmem:[#allocation10 + $0x710] sm:$0xff]
    %v1433 = vld [vmem:[#allocation10 + $0x718] sm:$0xff]
    %v1434 = vld [vmem:[#allocation10 + $0x720] sm:$0xff]
    %v1435 = vld [vmem:[#allocation10 + $0x728] sm:$0xff]
    %v1436 = vld [vmem:[#allocation10 + $0x730] sm:$0xff]
    %v1437 = vld [vmem:[#allocation10 + $0x738] sm:$0xff]
    %v1438 = vld [vmem:[#allocation10 + $0x740] sm:$0xff]
    %v1439 = vld [vmem:[#allocation10 + $0x748] sm:$0xff]
    %v1440 = vld [vmem:[#allocation10 + $0x750] sm:$0xff]
    %v1441 = vld [vmem:[#allocation10 + $0x758] sm:$0xff]
    %v1442 = vld [vmem:[#allocation10 + $0x760] sm:$0xff]
    %v1443 = vld [vmem:[#allocation10 + $0x768] sm:$0xff]
    %v1444 = vld [vmem:[#allocation10 + $0x770] sm:$0xff]
    %v1445 = vld [vmem:[#allocation10 + $0x778] sm:$0xff]
    %v1446 = vld [vmem:[#allocation10 + $0x780] sm:$0xff]
    %v1447 = vld [vmem:[#allocation10 + $0x788] sm:$0xff]
    %v1448 = vld [vmem:[#allocation10 + $0x790] sm:$0xff]
    %v1449 = vld [vmem:[#allocation10 + $0x798] sm:$0xff]
    %v1450 = vld [vmem:[#allocation10 + $0x7a0] sm:$0xff]
    %v1451 = vld [vmem:[#allocation10 + $0x7a8] sm:$0xff]
    %v1452 = vld [vmem:[#allocation10 + $0x7b0] sm:$0xff]
    %v1453 = vld [vmem:[#allocation10 + $0x7b8] sm:$0xff]
    %v1454 = vld [vmem:[#allocation10 + $0x7c0] sm:$0xff]
    %v1455 = vld [vmem:[#allocation10 + $0x7c8] sm:$0xff]
    %v1456 = vld [vmem:[#allocation10 + $0x7d0] sm:$0xff]
    %v1457 = vld [vmem:[#allocation10 + $0x7d8] sm:$0xff]
    %v1458 = vld [vmem:[#allocation10 + $0x7e0] sm:$0xff]
    %v1459 = vld [vmem:[#allocation10 + $0x7e8] sm:$0xff]
    %v1460 = vld [vmem:[#allocation10 + $0x7f0] sm:$0xff]
    %v1461 = vld [vmem:[#allocation10 + $0x7f8] sm:$0xff]
    %v1462 = vld [vmem:[%s12] sm:$0xff]
    %v1464 = vlaneseq
    %v1465 = vshrl.u32 %v1464, 7
    %v1466 = vsub.s32 0, %v1465
    %v1467 = vrot.slane %v1462, %v1466
    %v1468 = vlaneseq
    %v1469 = vshrl.u32 %v1468, 7
    %v1470 = vsub.s32 1, %v1469
    %v1471 = vrot.slane %v1462, %v1470
    %v1472 = vlaneseq
    %v1473 = vshrl.u32 %v1472, 7
    %v1474 = vsub.s32 2, %v1473
    %v1475 = vrot.slane %v1462, %v1474
    %v1476 = vlaneseq
    %v1477 = vshrl.u32 %v1476, 7
    %v1478 = vsub.s32 3, %v1477
    %v1479 = vrot.slane %v1462, %v1478
    %v1480 = vlaneseq
    %v1481 = vshrl.u32 %v1480, 7
    %v1482 = vsub.s32 4, %v1481
    %v1483 = vrot.slane %v1462, %v1482
    %v1484 = vlaneseq
    %v1485 = vshrl.u32 %v1484, 7
    %v1486 = vsub.s32 5, %v1485
    %v1487 = vrot.slane %v1462, %v1486
    %v1488 = vlaneseq
    %v1489 = vshrl.u32 %v1488, 7
    %v1490 = vsub.s32 6, %v1489
    %v1491 = vrot.slane %v1462, %v1490
    %v1492 = vlaneseq
    %v1493 = vshrl.u32 %v1492, 7
    %v1494 = vsub.s32 7, %v1493
    %v1495 = vrot.slane %v1462, %v1494
    %v1760 = vunpack.c.l.b16 %v1206
    %v1761 = vunpack.c.h.b16 %v1206
    %v1762 = vunpack.c.l.b16 %v1207
    %v1763 = vunpack.c.h.b16 %v1207
    %v1764 = vunpack.c.l.b16 %v1208
    %v1765 = vunpack.c.h.b16 %v1208
    %v1766 = vunpack.c.l.b16 %v1209
    %v1767 = vunpack.c.h.b16 %v1209
    %v1768 = vunpack.c.l.b16 %v1210
    %v1769 = vunpack.c.h.b16 %v1210
    %v1770 = vunpack.c.l.b16 %v1211
    %v1771 = vunpack.c.h.b16 %v1211
    %v1772 = vunpack.c.l.b16 %v1212
    %v1773 = vunpack.c.h.b16 %v1212
    %v1774 = vunpack.c.l.b16 %v1213
    %v1775 = vunpack.c.h.b16 %v1213
    %v1776 = vunpack.c.l.b16 %v1214
    %v1777 = vunpack.c.h.b16 %v1214
    %v1778 = vunpack.c.l.b16 %v1215
    %v1779 = vunpack.c.h.b16 %v1215
    %v1780 = vunpack.c.l.b16 %v1216
    %v1781 = vunpack.c.h.b16 %v1216
    %v1782 = vunpack.c.l.b16 %v1217
    %v1783 = vunpack.c.h.b16 %v1217
    %v1784 = vunpack.c.l.b16 %v1218
    %v1785 = vunpack.c.h.b16 %v1218
    %v1786 = vunpack.c.l.b16 %v1219
    %v1787 = vunpack.c.h.b16 %v1219
    %v1788 = vunpack.c.l.b16 %v1220
    %v1789 = vunpack.c.h.b16 %v1220
    %v1790 = vunpack.c.l.b16 %v1221
    %v1791 = vunpack.c.h.b16 %v1221
    %v1792 = vunpack.c.l.b16 %v1222
    %v1793 = vunpack.c.h.b16 %v1222
    %v1794 = vunpack.c.l.b16 %v1223
    %v1795 = vunpack.c.h.b16 %v1223
    %v1796 = vunpack.c.l.b16 %v1224
    %v1797 = vunpack.c.h.b16 %v1224
    %v1798 = vunpack.c.l.b16 %v1225
    %v1799 = vunpack.c.h.b16 %v1225
    %v1800 = vunpack.c.l.b16 %v1226
    %v1801 = vunpack.c.h.b16 %v1226
    %v1802 = vunpack.c.l.b16 %v1227
    %v1803 = vunpack.c.h.b16 %v1227
    %v1804 = vunpack.c.l.b16 %v1228
    %v1805 = vunpack.c.h.b16 %v1228
    %v1806 = vunpack.c.l.b16 %v1229
    %v1807 = vunpack.c.h.b16 %v1229
    %v1808 = vunpack.c.l.b16 %v1230
    %v1809 = vunpack.c.h.b16 %v1230
    %v1810 = vunpack.c.l.b16 %v1231
    %v1811 = vunpack.c.h.b16 %v1231
    %v1812 = vunpack.c.l.b16 %v1232
    %v1813 = vunpack.c.h.b16 %v1232
    %v1814 = vunpack.c.l.b16 %v1233
    %v1815 = vunpack.c.h.b16 %v1233
    %v1816 = vunpack.c.l.b16 %v1234
    %v1817 = vunpack.c.h.b16 %v1234
    %v1818 = vunpack.c.l.b16 %v1235
    %v1819 = vunpack.c.h.b16 %v1235
    %v1820 = vunpack.c.l.b16 %v1236
    %v1821 = vunpack.c.h.b16 %v1236
    %v1822 = vunpack.c.l.b16 %v1237
    %v1823 = vunpack.c.h.b16 %v1237
    %v1824 = vunpack.c.l.b16 %v1238
    %v1825 = vunpack.c.h.b16 %v1238
    %v1826 = vunpack.c.l.b16 %v1239
    %v1827 = vunpack.c.h.b16 %v1239
    %v1828 = vunpack.c.l.b16 %v1240
    %v1829 = vunpack.c.h.b16 %v1240
    %v1830 = vunpack.c.l.b16 %v1241
    %v1831 = vunpack.c.h.b16 %v1241
    %v1832 = vunpack.c.l.b16 %v1242
    %v1833 = vunpack.c.h.b16 %v1242
    %v1834 = vunpack.c.l.b16 %v1243
    %v1835 = vunpack.c.h.b16 %v1243
    %v1836 = vunpack.c.l.b16 %v1244
    %v1837 = vunpack.c.h.b16 %v1244
    %v1838 = vunpack.c.l.b16 %v1245
    %v1839 = vunpack.c.h.b16 %v1245
    %v1840 = vunpack.c.l.b16 %v1246
    %v1841 = vunpack.c.h.b16 %v1246
    %v1842 = vunpack.c.l.b16 %v1247
    %v1843 = vunpack.c.h.b16 %v1247
    %v1844 = vunpack.c.l.b16 %v1248
    %v1845 = vunpack.c.h.b16 %v1248
    %v1846 = vunpack.c.l.b16 %v1249
    %v1847 = vunpack.c.h.b16 %v1249
    %v1848 = vunpack.c.l.b16 %v1250
    %v1849 = vunpack.c.h.b16 %v1250
    %v1850 = vunpack.c.l.b16 %v1251
    %v1851 = vunpack.c.h.b16 %v1251
    %v1852 = vunpack.c.l.b16 %v1252
    %v1853 = vunpack.c.h.b16 %v1252
    %v1854 = vunpack.c.l.b16 %v1253
    %v1855 = vunpack.c.h.b16 %v1253
    %v1856 = vunpack.c.l.b16 %v1254
    %v1857 = vunpack.c.h.b16 %v1254
    %v1858 = vunpack.c.l.b16 %v1255
    %v1859 = vunpack.c.h.b16 %v1255
    %v1860 = vunpack.c.l.b16 %v1256
    %v1861 = vunpack.c.h.b16 %v1256
    %v1862 = vunpack.c.l.b16 %v1257
    %v1863 = vunpack.c.h.b16 %v1257
    %v1864 = vunpack.c.l.b16 %v1258
    %v1865 = vunpack.c.h.b16 %v1258
    %v1866 = vunpack.c.l.b16 %v1259
    %v1867 = vunpack.c.h.b16 %v1259
    %v1868 = vunpack.c.l.b16 %v1260
    %v1869 = vunpack.c.h.b16 %v1260
    %v1870 = vunpack.c.l.b16 %v1261
    %v1871 = vunpack.c.h.b16 %v1261
    %v1872 = vunpack.c.l.b16 %v1262
    %v1873 = vunpack.c.h.b16 %v1262
    %v1874 = vunpack.c.l.b16 %v1263
    %v1875 = vunpack.c.h.b16 %v1263
    %v1876 = vunpack.c.l.b16 %v1264
    %v1877 = vunpack.c.h.b16 %v1264
    %v1878 = vunpack.c.l.b16 %v1265
    %v1879 = vunpack.c.h.b16 %v1265
    %v1880 = vunpack.c.l.b16 %v1266
    %v1881 = vunpack.c.h.b16 %v1266
    %v1882 = vunpack.c.l.b16 %v1267
    %v1883 = vunpack.c.h.b16 %v1267
    %v1884 = vunpack.c.l.b16 %v1268
    %v1885 = vunpack.c.h.b16 %v1268
    %v1886 = vunpack.c.l.b16 %v1269
    %v1887 = vunpack.c.h.b16 %v1269
    %v1888 = vunpack.c.l.b16 %v1270
    %v1889 = vunpack.c.h.b16 %v1270
    %v1890 = vunpack.c.l.b16 %v1271
    %v1891 = vunpack.c.h.b16 %v1271
    %v1892 = vunpack.c.l.b16 %v1272
    %v1893 = vunpack.c.h.b16 %v1272
    %v1894 = vunpack.c.l.b16 %v1273
    %v1895 = vunpack.c.h.b16 %v1273
    %v1896 = vunpack.c.l.b16 %v1274
    %v1897 = vunpack.c.h.b16 %v1274
    %v1898 = vunpack.c.l.b16 %v1275
    %v1899 = vunpack.c.h.b16 %v1275
    %v1900 = vunpack.c.l.b16 %v1276
    %v1901 = vunpack.c.h.b16 %v1276
    %v1902 = vunpack.c.l.b16 %v1277
    %v1903 = vunpack.c.h.b16 %v1277
    %v1904 = vunpack.c.l.b16 %v1278
    %v1905 = vunpack.c.h.b16 %v1278
    %v1906 = vunpack.c.l.b16 %v1279
    %v1907 = vunpack.c.h.b16 %v1279
    %v1908 = vunpack.c.l.b16 %v1280
    %v1909 = vunpack.c.h.b16 %v1280
    %v1910 = vunpack.c.l.b16 %v1281
    %v1911 = vunpack.c.h.b16 %v1281
    %v1912 = vunpack.c.l.b16 %v1282
    %v1913 = vunpack.c.h.b16 %v1282
    %v1914 = vunpack.c.l.b16 %v1283
    %v1915 = vunpack.c.h.b16 %v1283
    %v1916 = vunpack.c.l.b16 %v1284
    %v1917 = vunpack.c.h.b16 %v1284
    %v1918 = vunpack.c.l.b16 %v1285
    %v1919 = vunpack.c.h.b16 %v1285
    %v1920 = vunpack.c.l.b16 %v1286
    %v1921 = vunpack.c.h.b16 %v1286
    %v1922 = vunpack.c.l.b16 %v1287
    %v1923 = vunpack.c.h.b16 %v1287
    %v1924 = vunpack.c.l.b16 %v1288
    %v1925 = vunpack.c.h.b16 %v1288
    %v1926 = vunpack.c.l.b16 %v1289
    %v1927 = vunpack.c.h.b16 %v1289
    %v1928 = vunpack.c.l.b16 %v1290
    %v1929 = vunpack.c.h.b16 %v1290
    %v1930 = vunpack.c.l.b16 %v1291
    %v1931 = vunpack.c.h.b16 %v1291
    %v1932 = vunpack.c.l.b16 %v1292
    %v1933 = vunpack.c.h.b16 %v1292
    %v1934 = vunpack.c.l.b16 %v1293
    %v1935 = vunpack.c.h.b16 %v1293
    %v1936 = vunpack.c.l.b16 %v1294
    %v1937 = vunpack.c.h.b16 %v1294
    %v1938 = vunpack.c.l.b16 %v1295
    %v1939 = vunpack.c.h.b16 %v1295
    %v1940 = vunpack.c.l.b16 %v1296
    %v1941 = vunpack.c.h.b16 %v1296
    %v1942 = vunpack.c.l.b16 %v1297
    %v1943 = vunpack.c.h.b16 %v1297
    %v1944 = vunpack.c.l.b16 %v1298
    %v1945 = vunpack.c.h.b16 %v1298
    %v1946 = vunpack.c.l.b16 %v1299
    %v1947 = vunpack.c.h.b16 %v1299
    %v1948 = vunpack.c.l.b16 %v1300
    %v1949 = vunpack.c.h.b16 %v1300
    %v1950 = vunpack.c.l.b16 %v1301
    %v1951 = vunpack.c.h.b16 %v1301
    %v1952 = vunpack.c.l.b16 %v1302
    %v1953 = vunpack.c.h.b16 %v1302
    %v1954 = vunpack.c.l.b16 %v1303
    %v1955 = vunpack.c.h.b16 %v1303
    %v1956 = vunpack.c.l.b16 %v1304
    %v1957 = vunpack.c.h.b16 %v1304
    %v1958 = vunpack.c.l.b16 %v1305
    %v1959 = vunpack.c.h.b16 %v1305
    %v1960 = vunpack.c.l.b16 %v1306
    %v1961 = vunpack.c.h.b16 %v1306
    %v1962 = vunpack.c.l.b16 %v1307
    %v1963 = vunpack.c.h.b16 %v1307
    %v1964 = vunpack.c.l.b16 %v1308
    %v1965 = vunpack.c.h.b16 %v1308
    %v1966 = vunpack.c.l.b16 %v1309
    %v1967 = vunpack.c.h.b16 %v1309
    %v1968 = vunpack.c.l.b16 %v1310
    %v1969 = vunpack.c.h.b16 %v1310
    %v1970 = vunpack.c.l.b16 %v1311
    %v1971 = vunpack.c.h.b16 %v1311
    %v1972 = vunpack.c.l.b16 %v1312
    %v1973 = vunpack.c.h.b16 %v1312
    %v1974 = vunpack.c.l.b16 %v1313
    %v1975 = vunpack.c.h.b16 %v1313
    %v1976 = vunpack.c.l.b16 %v1314
    %v1977 = vunpack.c.h.b16 %v1314
    %v1978 = vunpack.c.l.b16 %v1315
    %v1979 = vunpack.c.h.b16 %v1315
    %v1980 = vunpack.c.l.b16 %v1316
    %v1981 = vunpack.c.h.b16 %v1316
    %v1982 = vunpack.c.l.b16 %v1317
    %v1983 = vunpack.c.h.b16 %v1317
    %v1984 = vunpack.c.l.b16 %v1318
    %v1985 = vunpack.c.h.b16 %v1318
    %v1986 = vunpack.c.l.b16 %v1319
    %v1987 = vunpack.c.h.b16 %v1319
    %v1988 = vunpack.c.l.b16 %v1320
    %v1989 = vunpack.c.h.b16 %v1320
    %v1990 = vunpack.c.l.b16 %v1321
    %v1991 = vunpack.c.h.b16 %v1321
    %v1992 = vunpack.c.l.b16 %v1322
    %v1993 = vunpack.c.h.b16 %v1322
    %v1994 = vunpack.c.l.b16 %v1323
    %v1995 = vunpack.c.h.b16 %v1323
    %v1996 = vunpack.c.l.b16 %v1324
    %v1997 = vunpack.c.h.b16 %v1324
    %v1998 = vunpack.c.l.b16 %v1325
    %v1999 = vunpack.c.h.b16 %v1325
    %v2000 = vunpack.c.l.b16 %v1326
    %v2001 = vunpack.c.h.b16 %v1326
    %v2002 = vunpack.c.l.b16 %v1327
    %v2003 = vunpack.c.h.b16 %v1327
    %v2004 = vunpack.c.l.b16 %v1328
    %v2005 = vunpack.c.h.b16 %v1328
    %v2006 = vunpack.c.l.b16 %v1329
    %v2007 = vunpack.c.h.b16 %v1329
    %v2008 = vunpack.c.l.b16 %v1330
    %v2009 = vunpack.c.h.b16 %v1330
    %v2010 = vunpack.c.l.b16 %v1331
    %v2011 = vunpack.c.h.b16 %v1331
    %v2012 = vunpack.c.l.b16 %v1332
    %v2013 = vunpack.c.h.b16 %v1332
    %v2014 = vunpack.c.l.b16 %v1333
    %v2015 = vunpack.c.h.b16 %v1333
    %v2016 = vunpack.c.l.b16 %v1334
    %v2017 = vunpack.c.h.b16 %v1334
    %v2018 = vunpack.c.l.b16 %v1335
    %v2019 = vunpack.c.h.b16 %v1335
    %v2020 = vunpack.c.l.b16 %v1336
    %v2021 = vunpack.c.h.b16 %v1336
    %v2022 = vunpack.c.l.b16 %v1337
    %v2023 = vunpack.c.h.b16 %v1337
    %v2024 = vunpack.c.l.b16 %v1338
    %v2025 = vunpack.c.h.b16 %v1338
    %v2026 = vunpack.c.l.b16 %v1339
    %v2027 = vunpack.c.h.b16 %v1339
    %v2028 = vunpack.c.l.b16 %v1340
    %v2029 = vunpack.c.h.b16 %v1340
    %v2030 = vunpack.c.l.b16 %v1341
    %v2031 = vunpack.c.h.b16 %v1341
    %v2032 = vunpack.c.l.b16 %v1342
    %v2033 = vunpack.c.h.b16 %v1342
    %v2034 = vunpack.c.l.b16 %v1343
    %v2035 = vunpack.c.h.b16 %v1343
    %v2036 = vunpack.c.l.b16 %v1344
    %v2037 = vunpack.c.h.b16 %v1344
    %v2038 = vunpack.c.l.b16 %v1345
    %v2039 = vunpack.c.h.b16 %v1345
    %v2040 = vunpack.c.l.b16 %v1346
    %v2041 = vunpack.c.h.b16 %v1346
    %v2042 = vunpack.c.l.b16 %v1347
    %v2043 = vunpack.c.h.b16 %v1347
    %v2044 = vunpack.c.l.b16 %v1348
    %v2045 = vunpack.c.h.b16 %v1348
    %v2046 = vunpack.c.l.b16 %v1349
    %v2047 = vunpack.c.h.b16 %v1349
    %v2048 = vunpack.c.l.b16 %v1350
    %v2049 = vunpack.c.h.b16 %v1350
    %v2050 = vunpack.c.l.b16 %v1351
    %v2051 = vunpack.c.h.b16 %v1351
    %v2052 = vunpack.c.l.b16 %v1352
    %v2053 = vunpack.c.h.b16 %v1352
    %v2054 = vunpack.c.l.b16 %v1353
    %v2055 = vunpack.c.h.b16 %v1353
    %v2056 = vunpack.c.l.b16 %v1354
    %v2057 = vunpack.c.h.b16 %v1354
    %v2058 = vunpack.c.l.b16 %v1355
    %v2059 = vunpack.c.h.b16 %v1355
    %v2060 = vunpack.c.l.b16 %v1356
    %v2061 = vunpack.c.h.b16 %v1356
    %v2062 = vunpack.c.l.b16 %v1357
    %v2063 = vunpack.c.h.b16 %v1357
    %v2064 = vunpack.c.l.b16 %v1358
    %v2065 = vunpack.c.h.b16 %v1358
    %v2066 = vunpack.c.l.b16 %v1359
    %v2067 = vunpack.c.h.b16 %v1359
    %v2068 = vunpack.c.l.b16 %v1360
    %v2069 = vunpack.c.h.b16 %v1360
    %v2070 = vunpack.c.l.b16 %v1361
    %v2071 = vunpack.c.h.b16 %v1361
    %v2072 = vunpack.c.l.b16 %v1362
    %v2073 = vunpack.c.h.b16 %v1362
    %v2074 = vunpack.c.l.b16 %v1363
    %v2075 = vunpack.c.h.b16 %v1363
    %v2076 = vunpack.c.l.b16 %v1364
    %v2077 = vunpack.c.h.b16 %v1364
    %v2078 = vunpack.c.l.b16 %v1365
    %v2079 = vunpack.c.h.b16 %v1365
    %v2080 = vunpack.c.l.b16 %v1366
    %v2081 = vunpack.c.h.b16 %v1366
    %v2082 = vunpack.c.l.b16 %v1367
    %v2083 = vunpack.c.h.b16 %v1367
    %v2084 = vunpack.c.l.b16 %v1368
    %v2085 = vunpack.c.h.b16 %v1368
    %v2086 = vunpack.c.l.b16 %v1369
    %v2087 = vunpack.c.h.b16 %v1369
    %v2088 = vunpack.c.l.b16 %v1370
    %v2089 = vunpack.c.h.b16 %v1370
    %v2090 = vunpack.c.l.b16 %v1371
    %v2091 = vunpack.c.h.b16 %v1371
    %v2092 = vunpack.c.l.b16 %v1372
    %v2093 = vunpack.c.h.b16 %v1372
    %v2094 = vunpack.c.l.b16 %v1373
    %v2095 = vunpack.c.h.b16 %v1373
    %v2096 = vunpack.c.l.b16 %v1374
    %v2097 = vunpack.c.h.b16 %v1374
    %v2098 = vunpack.c.l.b16 %v1375
    %v2099 = vunpack.c.h.b16 %v1375
    %v2100 = vunpack.c.l.b16 %v1376
    %v2101 = vunpack.c.h.b16 %v1376
    %v2102 = vunpack.c.l.b16 %v1377
    %v2103 = vunpack.c.h.b16 %v1377
    %v2104 = vunpack.c.l.b16 %v1378
    %v2105 = vunpack.c.h.b16 %v1378
    %v2106 = vunpack.c.l.b16 %v1379
    %v2107 = vunpack.c.h.b16 %v1379
    %v2108 = vunpack.c.l.b16 %v1380
    %v2109 = vunpack.c.h.b16 %v1380
    %v2110 = vunpack.c.l.b16 %v1381
    %v2111 = vunpack.c.h.b16 %v1381
    %v2112 = vunpack.c.l.b16 %v1382
    %v2113 = vunpack.c.h.b16 %v1382
    %v2114 = vunpack.c.l.b16 %v1383
    %v2115 = vunpack.c.h.b16 %v1383
    %v2116 = vunpack.c.l.b16 %v1384
    %v2117 = vunpack.c.h.b16 %v1384
    %v2118 = vunpack.c.l.b16 %v1385
    %v2119 = vunpack.c.h.b16 %v1385
    %v2120 = vunpack.c.l.b16 %v1386
    %v2121 = vunpack.c.h.b16 %v1386
    %v2122 = vunpack.c.l.b16 %v1387
    %v2123 = vunpack.c.h.b16 %v1387
    %v2124 = vunpack.c.l.b16 %v1388
    %v2125 = vunpack.c.h.b16 %v1388
    %v2126 = vunpack.c.l.b16 %v1389
    %v2127 = vunpack.c.h.b16 %v1389
    %v2128 = vunpack.c.l.b16 %v1390
    %v2129 = vunpack.c.h.b16 %v1390
    %v2130 = vunpack.c.l.b16 %v1391
    %v2131 = vunpack.c.h.b16 %v1391
    %v2132 = vunpack.c.l.b16 %v1392
    %v2133 = vunpack.c.h.b16 %v1392
    %v2134 = vunpack.c.l.b16 %v1393
    %v2135 = vunpack.c.h.b16 %v1393
    %v2136 = vunpack.c.l.b16 %v1394
    %v2137 = vunpack.c.h.b16 %v1394
    %v2138 = vunpack.c.l.b16 %v1395
    %v2139 = vunpack.c.h.b16 %v1395
    %v2140 = vunpack.c.l.b16 %v1396
    %v2141 = vunpack.c.h.b16 %v1396
    %v2142 = vunpack.c.l.b16 %v1397
    %v2143 = vunpack.c.h.b16 %v1397
    %v2144 = vunpack.c.l.b16 %v1398
    %v2145 = vunpack.c.h.b16 %v1398
    %v2146 = vunpack.c.l.b16 %v1399
    %v2147 = vunpack.c.h.b16 %v1399
    %v2148 = vunpack.c.l.b16 %v1400
    %v2149 = vunpack.c.h.b16 %v1400
    %v2150 = vunpack.c.l.b16 %v1401
    %v2151 = vunpack.c.h.b16 %v1401
    %v2152 = vunpack.c.l.b16 %v1402
    %v2153 = vunpack.c.h.b16 %v1402
    %v2154 = vunpack.c.l.b16 %v1403
    %v2155 = vunpack.c.h.b16 %v1403
    %v2156 = vunpack.c.l.b16 %v1404
    %v2157 = vunpack.c.h.b16 %v1404
    %v2158 = vunpack.c.l.b16 %v1405
    %v2159 = vunpack.c.h.b16 %v1405
    %v2160 = vunpack.c.l.b16 %v1406
    %v2161 = vunpack.c.h.b16 %v1406
    %v2162 = vunpack.c.l.b16 %v1407
    %v2163 = vunpack.c.h.b16 %v1407
    %v2164 = vunpack.c.l.b16 %v1408
    %v2165 = vunpack.c.h.b16 %v1408
    %v2166 = vunpack.c.l.b16 %v1409
    %v2167 = vunpack.c.h.b16 %v1409
    %v2168 = vunpack.c.l.b16 %v1410
    %v2169 = vunpack.c.h.b16 %v1410
    %v2170 = vunpack.c.l.b16 %v1411
    %v2171 = vunpack.c.h.b16 %v1411
    %v2172 = vunpack.c.l.b16 %v1412
    %v2173 = vunpack.c.h.b16 %v1412
    %v2174 = vunpack.c.l.b16 %v1413
    %v2175 = vunpack.c.h.b16 %v1413
    %v2176 = vunpack.c.l.b16 %v1414
    %v2177 = vunpack.c.h.b16 %v1414
    %v2178 = vunpack.c.l.b16 %v1415
    %v2179 = vunpack.c.h.b16 %v1415
    %v2180 = vunpack.c.l.b16 %v1416
    %v2181 = vunpack.c.h.b16 %v1416
    %v2182 = vunpack.c.l.b16 %v1417
    %v2183 = vunpack.c.h.b16 %v1417
    %v2184 = vunpack.c.l.b16 %v1418
    %v2185 = vunpack.c.h.b16 %v1418
    %v2186 = vunpack.c.l.b16 %v1419
    %v2187 = vunpack.c.h.b16 %v1419
    %v2188 = vunpack.c.l.b16 %v1420
    %v2189 = vunpack.c.h.b16 %v1420
    %v2190 = vunpack.c.l.b16 %v1421
    %v2191 = vunpack.c.h.b16 %v1421
    %v2192 = vunpack.c.l.b16 %v1422
    %v2193 = vunpack.c.h.b16 %v1422
    %v2194 = vunpack.c.l.b16 %v1423
    %v2195 = vunpack.c.h.b16 %v1423
    %v2196 = vunpack.c.l.b16 %v1424
    %v2197 = vunpack.c.h.b16 %v1424
    %v2198 = vunpack.c.l.b16 %v1425
    %v2199 = vunpack.c.h.b16 %v1425
    %v2200 = vunpack.c.l.b16 %v1426
    %v2201 = vunpack.c.h.b16 %v1426
    %v2202 = vunpack.c.l.b16 %v1427
    %v2203 = vunpack.c.h.b16 %v1427
    %v2204 = vunpack.c.l.b16 %v1428
    %v2205 = vunpack.c.h.b16 %v1428
    %v2206 = vunpack.c.l.b16 %v1429
    %v2207 = vunpack.c.h.b16 %v1429
    %v2208 = vunpack.c.l.b16 %v1430
    %v2209 = vunpack.c.h.b16 %v1430
    %v2210 = vunpack.c.l.b16 %v1431
    %v2211 = vunpack.c.h.b16 %v1431
    %v2212 = vunpack.c.l.b16 %v1432
    %v2213 = vunpack.c.h.b16 %v1432
    %v2214 = vunpack.c.l.b16 %v1433
    %v2215 = vunpack.c.h.b16 %v1433
    %v2216 = vunpack.c.l.b16 %v1434
    %v2217 = vunpack.c.h.b16 %v1434
    %v2218 = vunpack.c.l.b16 %v1435
    %v2219 = vunpack.c.h.b16 %v1435
    %v2220 = vunpack.c.l.b16 %v1436
    %v2221 = vunpack.c.h.b16 %v1436
    %v2222 = vunpack.c.l.b16 %v1437
    %v2223 = vunpack.c.h.b16 %v1437
    %v2224 = vunpack.c.l.b16 %v1438
    %v2225 = vunpack.c.h.b16 %v1438
    %v2226 = vunpack.c.l.b16 %v1439
    %v2227 = vunpack.c.h.b16 %v1439
    %v2228 = vunpack.c.l.b16 %v1440
    %v2229 = vunpack.c.h.b16 %v1440
    %v2230 = vunpack.c.l.b16 %v1441
    %v2231 = vunpack.c.h.b16 %v1441
    %v2232 = vunpack.c.l.b16 %v1442
    %v2233 = vunpack.c.h.b16 %v1442
    %v2234 = vunpack.c.l.b16 %v1443
    %v2235 = vunpack.c.h.b16 %v1443
    %v2236 = vunpack.c.l.b16 %v1444
    %v2237 = vunpack.c.h.b16 %v1444
    %v2238 = vunpack.c.l.b16 %v1445
    %v2239 = vunpack.c.h.b16 %v1445
    %v2240 = vunpack.c.l.b16 %v1446
    %v2241 = vunpack.c.h.b16 %v1446
    %v2242 = vunpack.c.l.b16 %v1447
    %v2243 = vunpack.c.h.b16 %v1447
    %v2244 = vunpack.c.l.b16 %v1448
    %v2245 = vunpack.c.h.b16 %v1448
    %v2246 = vunpack.c.l.b16 %v1449
    %v2247 = vunpack.c.h.b16 %v1449
    %v2248 = vunpack.c.l.b16 %v1450
    %v2249 = vunpack.c.h.b16 %v1450
    %v2250 = vunpack.c.l.b16 %v1451
    %v2251 = vunpack.c.h.b16 %v1451
    %v2252 = vunpack.c.l.b16 %v1452
    %v2253 = vunpack.c.h.b16 %v1452
    %v2254 = vunpack.c.l.b16 %v1453
    %v2255 = vunpack.c.h.b16 %v1453
    %v2256 = vunpack.c.l.b16 %v1454
    %v2257 = vunpack.c.h.b16 %v1454
    %v2258 = vunpack.c.l.b16 %v1455
    %v2259 = vunpack.c.h.b16 %v1455
    %v2260 = vunpack.c.l.b16 %v1456
    %v2261 = vunpack.c.h.b16 %v1456
    %v2262 = vunpack.c.l.b16 %v1457
    %v2263 = vunpack.c.h.b16 %v1457
    %v2264 = vunpack.c.l.b16 %v1458
    %v2265 = vunpack.c.h.b16 %v1458
    %v2266 = vunpack.c.l.b16 %v1459
    %v2267 = vunpack.c.h.b16 %v1459
    %v2268 = vunpack.c.l.b16 %v1460
    %v2269 = vunpack.c.h.b16 %v1460
    %v2270 = vunpack.c.l.b16 %v1461
    %v2271 = vunpack.c.h.b16 %v1461
    %v2272 = vpack.c.b16 %v1768, %v1760
    %v2273 = vpack.c.b16 %v1769, %v1761
    %v2274 = vpack.c.b16 %v1770, %v1762
    %v2275 = vpack.c.b16 %v1771, %v1763
    %v2276 = vpack.c.b16 %v1772, %v1764
    %v2277 = vpack.c.b16 %v1773, %v1765
    %v2278 = vpack.c.b16 %v1774, %v1766
    %v2279 = vpack.c.b16 %v1775, %v1767
    %v2280 = vpack.c.b16 %v1784, %v1776
    %v2281 = vpack.c.b16 %v1785, %v1777
    %v2282 = vpack.c.b16 %v1786, %v1778
    %v2283 = vpack.c.b16 %v1787, %v1779
    %v2284 = vpack.c.b16 %v1788, %v1780
    %v2285 = vpack.c.b16 %v1789, %v1781
    %v2286 = vpack.c.b16 %v1790, %v1782
    %v2287 = vpack.c.b16 %v1791, %v1783
    %v2288 = vpack.c.b16 %v1800, %v1792
    %v2289 = vpack.c.b16 %v1801, %v1793
    %v2290 = vpack.c.b16 %v1802, %v1794
    %v2291 = vpack.c.b16 %v1803, %v1795
    %v2292 = vpack.c.b16 %v1804, %v1796
    %v2293 = vpack.c.b16 %v1805, %v1797
    %v2294 = vpack.c.b16 %v1806, %v1798
    %v2295 = vpack.c.b16 %v1807, %v1799
    %v2296 = vpack.c.b16 %v1816, %v1808
    %v2297 = vpack.c.b16 %v1817, %v1809
    %v2298 = vpack.c.b16 %v1818, %v1810
    %v2299 = vpack.c.b16 %v1819, %v1811
    %v2300 = vpack.c.b16 %v1820, %v1812
    %v2301 = vpack.c.b16 %v1821, %v1813
    %v2302 = vpack.c.b16 %v1822, %v1814
    %v2303 = vpack.c.b16 %v1823, %v1815
    %v2304 = vpack.c.b16 %v1832, %v1824
    %v2305 = vpack.c.b16 %v1833, %v1825
    %v2306 = vpack.c.b16 %v1834, %v1826
    %v2307 = vpack.c.b16 %v1835, %v1827
    %v2308 = vpack.c.b16 %v1836, %v1828
    %v2309 = vpack.c.b16 %v1837, %v1829
    %v2310 = vpack.c.b16 %v1838, %v1830
    %v2311 = vpack.c.b16 %v1839, %v1831
    %v2312 = vpack.c.b16 %v1848, %v1840
    %v2313 = vpack.c.b16 %v1849, %v1841
    %v2314 = vpack.c.b16 %v1850, %v1842
    %v2315 = vpack.c.b16 %v1851, %v1843
    %v2316 = vpack.c.b16 %v1852, %v1844
    %v2317 = vpack.c.b16 %v1853, %v1845
    %v2318 = vpack.c.b16 %v1854, %v1846
    %v2319 = vpack.c.b16 %v1855, %v1847
    %v2320 = vpack.c.b16 %v1864, %v1856
    %v2321 = vpack.c.b16 %v1865, %v1857
    %v2322 = vpack.c.b16 %v1866, %v1858
    %v2323 = vpack.c.b16 %v1867, %v1859
    %v2324 = vpack.c.b16 %v1868, %v1860
    %v2325 = vpack.c.b16 %v1869, %v1861
    %v2326 = vpack.c.b16 %v1870, %v1862
    %v2327 = vpack.c.b16 %v1871, %v1863
    %v2328 = vpack.c.b16 %v1880, %v1872
    %v2329 = vpack.c.b16 %v1881, %v1873
    %v2330 = vpack.c.b16 %v1882, %v1874
    %v2331 = vpack.c.b16 %v1883, %v1875
    %v2332 = vpack.c.b16 %v1884, %v1876
    %v2333 = vpack.c.b16 %v1885, %v1877
    %v2334 = vpack.c.b16 %v1886, %v1878
    %v2335 = vpack.c.b16 %v1887, %v1879
    %v2336 = vpack.c.b16 %v1896, %v1888
    %v2337 = vpack.c.b16 %v1897, %v1889
    %v2338 = vpack.c.b16 %v1898, %v1890
    %v2339 = vpack.c.b16 %v1899, %v1891
    %v2340 = vpack.c.b16 %v1900, %v1892
    %v2341 = vpack.c.b16 %v1901, %v1893
    %v2342 = vpack.c.b16 %v1902, %v1894
    %v2343 = vpack.c.b16 %v1903, %v1895
    %v2344 = vpack.c.b16 %v1912, %v1904
    %v2345 = vpack.c.b16 %v1913, %v1905
    %v2346 = vpack.c.b16 %v1914, %v1906
    %v2347 = vpack.c.b16 %v1915, %v1907
    %v2348 = vpack.c.b16 %v1916, %v1908
    %v2349 = vpack.c.b16 %v1917, %v1909
    %v2350 = vpack.c.b16 %v1918, %v1910
    %v2351 = vpack.c.b16 %v1919, %v1911
    %v2352 = vpack.c.b16 %v1928, %v1920
    %v2353 = vpack.c.b16 %v1929, %v1921
    %v2354 = vpack.c.b16 %v1930, %v1922
    %v2355 = vpack.c.b16 %v1931, %v1923
    %v2356 = vpack.c.b16 %v1932, %v1924
    %v2357 = vpack.c.b16 %v1933, %v1925
    %v2358 = vpack.c.b16 %v1934, %v1926
    %v2359 = vpack.c.b16 %v1935, %v1927
    %v2360 = vpack.c.b16 %v1944, %v1936
    %v2361 = vpack.c.b16 %v1945, %v1937
    %v2362 = vpack.c.b16 %v1946, %v1938
    %v2363 = vpack.c.b16 %v1947, %v1939
    %v2364 = vpack.c.b16 %v1948, %v1940
    %v2365 = vpack.c.b16 %v1949, %v1941
    %v2366 = vpack.c.b16 %v1950, %v1942
    %v2367 = vpack.c.b16 %v1951, %v1943
    %v2368 = vpack.c.b16 %v1960, %v1952
    %v2369 = vpack.c.b16 %v1961, %v1953
    %v2370 = vpack.c.b16 %v1962, %v1954
    %v2371 = vpack.c.b16 %v1963, %v1955
    %v2372 = vpack.c.b16 %v1964, %v1956
    %v2373 = vpack.c.b16 %v1965, %v1957
    %v2374 = vpack.c.b16 %v1966, %v1958
    %v2375 = vpack.c.b16 %v1967, %v1959
    %v2376 = vpack.c.b16 %v1976, %v1968
    %v2377 = vpack.c.b16 %v1977, %v1969
    %v2378 = vpack.c.b16 %v1978, %v1970
    %v2379 = vpack.c.b16 %v1979, %v1971
    %v2380 = vpack.c.b16 %v1980, %v1972
    %v2381 = vpack.c.b16 %v1981, %v1973
    %v2382 = vpack.c.b16 %v1982, %v1974
    %v2383 = vpack.c.b16 %v1983, %v1975
    %v2384 = vpack.c.b16 %v1992, %v1984
    %v2385 = vpack.c.b16 %v1993, %v1985
    %v2386 = vpack.c.b16 %v1994, %v1986
    %v2387 = vpack.c.b16 %v1995, %v1987
    %v2388 = vpack.c.b16 %v1996, %v1988
    %v2389 = vpack.c.b16 %v1997, %v1989
    %v2390 = vpack.c.b16 %v1998, %v1990
    %v2391 = vpack.c.b16 %v1999, %v1991
    %v2392 = vpack.c.b16 %v2008, %v2000
    %v2393 = vpack.c.b16 %v2009, %v2001
    %v2394 = vpack.c.b16 %v2010, %v2002
    %v2395 = vpack.c.b16 %v2011, %v2003
    %v2396 = vpack.c.b16 %v2012, %v2004
    %v2397 = vpack.c.b16 %v2013, %v2005
    %v2398 = vpack.c.b16 %v2014, %v2006
    %v2399 = vpack.c.b16 %v2015, %v2007
    %v2400 = vpack.c.b16 %v2024, %v2016
    %v2401 = vpack.c.b16 %v2025, %v2017
    %v2402 = vpack.c.b16 %v2026, %v2018
    %v2403 = vpack.c.b16 %v2027, %v2019
    %v2404 = vpack.c.b16 %v2028, %v2020
    %v2405 = vpack.c.b16 %v2029, %v2021
    %v2406 = vpack.c.b16 %v2030, %v2022
    %v2407 = vpack.c.b16 %v2031, %v2023
    %v2408 = vpack.c.b16 %v2040, %v2032
    %v2409 = vpack.c.b16 %v2041, %v2033
    %v2410 = vpack.c.b16 %v2042, %v2034
    %v2411 = vpack.c.b16 %v2043, %v2035
    %v2412 = vpack.c.b16 %v2044, %v2036
    %v2413 = vpack.c.b16 %v2045, %v2037
    %v2414 = vpack.c.b16 %v2046, %v2038
    %v2415 = vpack.c.b16 %v2047, %v2039
    %v2416 = vpack.c.b16 %v2056, %v2048
    %v2417 = vpack.c.b16 %v2057, %v2049
    %v2418 = vpack.c.b16 %v2058, %v2050
    %v2419 = vpack.c.b16 %v2059, %v2051
    %v2420 = vpack.c.b16 %v2060, %v2052
    %v2421 = vpack.c.b16 %v2061, %v2053
    %v2422 = vpack.c.b16 %v2062, %v2054
    %v2423 = vpack.c.b16 %v2063, %v2055
    %v2424 = vpack.c.b16 %v2072, %v2064
    %v2425 = vpack.c.b16 %v2073, %v2065
    %v2426 = vpack.c.b16 %v2074, %v2066
    %v2427 = vpack.c.b16 %v2075, %v2067
    %v2428 = vpack.c.b16 %v2076, %v2068
    %v2429 = vpack.c.b16 %v2077, %v2069
    %v2430 = vpack.c.b16 %v2078, %v2070
    %v2431 = vpack.c.b16 %v2079, %v2071
    %v2432 = vpack.c.b16 %v2088, %v2080
    %v2433 = vpack.c.b16 %v2089, %v2081
    %v2434 = vpack.c.b16 %v2090, %v2082
    %v2435 = vpack.c.b16 %v2091, %v2083
    %v2436 = vpack.c.b16 %v2092, %v2084
    %v2437 = vpack.c.b16 %v2093, %v2085
    %v2438 = vpack.c.b16 %v2094, %v2086
    %v2439 = vpack.c.b16 %v2095, %v2087
    %v2440 = vpack.c.b16 %v2104, %v2096
    %v2441 = vpack.c.b16 %v2105, %v2097
    %v2442 = vpack.c.b16 %v2106, %v2098
    %v2443 = vpack.c.b16 %v2107, %v2099
    %v2444 = vpack.c.b16 %v2108, %v2100
    %v2445 = vpack.c.b16 %v2109, %v2101
    %v2446 = vpack.c.b16 %v2110, %v2102
    %v2447 = vpack.c.b16 %v2111, %v2103
    %v2448 = vpack.c.b16 %v2120, %v2112
    %v2449 = vpack.c.b16 %v2121, %v2113
    %v2450 = vpack.c.b16 %v2122, %v2114
    %v2451 = vpack.c.b16 %v2123, %v2115
    %v2452 = vpack.c.b16 %v2124, %v2116
    %v2453 = vpack.c.b16 %v2125, %v2117
    %v2454 = vpack.c.b16 %v2126, %v2118
    %v2455 = vpack.c.b16 %v2127, %v2119
    %v2456 = vpack.c.b16 %v2136, %v2128
    %v2457 = vpack.c.b16 %v2137, %v2129
    %v2458 = vpack.c.b16 %v2138, %v2130
    %v2459 = vpack.c.b16 %v2139, %v2131
    %v2460 = vpack.c.b16 %v2140, %v2132
    %v2461 = vpack.c.b16 %v2141, %v2133
    %v2462 = vpack.c.b16 %v2142, %v2134
    %v2463 = vpack.c.b16 %v2143, %v2135
    %v2464 = vpack.c.b16 %v2152, %v2144
    %v2465 = vpack.c.b16 %v2153, %v2145
    %v2466 = vpack.c.b16 %v2154, %v2146
    %v2467 = vpack.c.b16 %v2155, %v2147
    %v2468 = vpack.c.b16 %v2156, %v2148
    %v2469 = vpack.c.b16 %v2157, %v2149
    %v2470 = vpack.c.b16 %v2158, %v2150
    %v2471 = vpack.c.b16 %v2159, %v2151
    %v2472 = vpack.c.b16 %v2168, %v2160
    %v2473 = vpack.c.b16 %v2169, %v2161
    %v2474 = vpack.c.b16 %v2170, %v2162
    %v2475 = vpack.c.b16 %v2171, %v2163
    %v2476 = vpack.c.b16 %v2172, %v2164
    %v2477 = vpack.c.b16 %v2173, %v2165
    %v2478 = vpack.c.b16 %v2174, %v2166
    %v2479 = vpack.c.b16 %v2175, %v2167
    %v2480 = vpack.c.b16 %v2184, %v2176
    %v2481 = vpack.c.b16 %v2185, %v2177
    %v2482 = vpack.c.b16 %v2186, %v2178
    %v2483 = vpack.c.b16 %v2187, %v2179
    %v2484 = vpack.c.b16 %v2188, %v2180
    %v2485 = vpack.c.b16 %v2189, %v2181
    %v2486 = vpack.c.b16 %v2190, %v2182
    %v2487 = vpack.c.b16 %v2191, %v2183
    %v2488 = vpack.c.b16 %v2200, %v2192
    %v2489 = vpack.c.b16 %v2201, %v2193
    %v2490 = vpack.c.b16 %v2202, %v2194
    %v2491 = vpack.c.b16 %v2203, %v2195
    %v2492 = vpack.c.b16 %v2204, %v2196
    %v2493 = vpack.c.b16 %v2205, %v2197
    %v2494 = vpack.c.b16 %v2206, %v2198
    %v2495 = vpack.c.b16 %v2207, %v2199
    %v2496 = vpack.c.b16 %v2216, %v2208
    %v2497 = vpack.c.b16 %v2217, %v2209
    %v2498 = vpack.c.b16 %v2218, %v2210
    %v2499 = vpack.c.b16 %v2219, %v2211
    %v2500 = vpack.c.b16 %v2220, %v2212
    %v2501 = vpack.c.b16 %v2221, %v2213
    %v2502 = vpack.c.b16 %v2222, %v2214
    %v2503 = vpack.c.b16 %v2223, %v2215
    %v2504 = vpack.c.b16 %v2232, %v2224
    %v2505 = vpack.c.b16 %v2233, %v2225
    %v2506 = vpack.c.b16 %v2234, %v2226
    %v2507 = vpack.c.b16 %v2235, %v2227
    %v2508 = vpack.c.b16 %v2236, %v2228
    %v2509 = vpack.c.b16 %v2237, %v2229
    %v2510 = vpack.c.b16 %v2238, %v2230
    %v2511 = vpack.c.b16 %v2239, %v2231
    %v2512 = vpack.c.b16 %v2248, %v2240
    %v2513 = vpack.c.b16 %v2249, %v2241
    %v2514 = vpack.c.b16 %v2250, %v2242
    %v2515 = vpack.c.b16 %v2251, %v2243
    %v2516 = vpack.c.b16 %v2252, %v2244
    %v2517 = vpack.c.b16 %v2253, %v2245
    %v2518 = vpack.c.b16 %v2254, %v2246
    %v2519 = vpack.c.b16 %v2255, %v2247
    %v2520 = vpack.c.b16 %v2264, %v2256
    %v2521 = vpack.c.b16 %v2265, %v2257
    %v2522 = vpack.c.b16 %v2266, %v2258
    %v2523 = vpack.c.b16 %v2267, %v2259
    %v2524 = vpack.c.b16 %v2268, %v2260
    %v2525 = vpack.c.b16 %v2269, %v2261
    %v2526 = vpack.c.b16 %v2270, %v2262
    %v2527 = vpack.c.b16 %v2271, %v2263
    %2784 = vmatprep.subr.bf16.mxu0 %v2273
    %2785 = vmatpush1.bf16.msra.mxu0 %v2272
    %2786 = vmatprep.subr.bf16.mxu0 %v2281
    %2787 = vmatpush1.bf16.msra.mxu0 %v2280
    %2788 = vmatprep.subr.bf16.mxu0 %v2289
    %2789 = vmatpush1.bf16.msra.mxu0 %v2288
    %2790 = vmatprep.subr.bf16.mxu0 %v2297
    %2791 = vmatpush1.bf16.msra.mxu0 %v2296
    %2792 = vmatprep.subr.bf16.mxu0 %v2305
    %2793 = vmatpush1.bf16.msra.mxu0 %v2304
    %2794 = vmatprep.subr.bf16.mxu0 %v2313
    %2795 = vmatpush1.bf16.msra.mxu0 %v2312
    %2796 = vmatprep.subr.bf16.mxu0 %v2321
    %2797 = vmatpush1.bf16.msra.mxu0 %v2320
    %2798 = vmatprep.subr.bf16.mxu0 %v2329
    %2799 = vmatpush1.bf16.msra.mxu0 %v2328
    %2800 = vmatprep.subr.bf16.mxu0 %v2337
    %2801 = vmatpush1.bf16.msra.mxu0 %v2336
    %2802 = vmatprep.subr.bf16.mxu0 %v2345
    %2803 = vmatpush1.bf16.msra.mxu0 %v2344
    %2804 = vmatprep.subr.bf16.mxu0 %v2353
    %2805 = vmatpush1.bf16.msra.mxu0 %v2352
    %2806 = vmatprep.subr.bf16.mxu0 %v2361
    %2807 = vmatpush1.bf16.msra.mxu0 %v2360
    %2808 = vmatprep.subr.bf16.mxu0 %v2369
    %2809 = vmatpush1.bf16.msra.mxu0 %v2368
    %2810 = vmatprep.subr.bf16.mxu0 %v2377
    %2811 = vmatpush1.bf16.msra.mxu0 %v2376
    %2812 = vmatprep.subr.bf16.mxu0 %v2385
    %2813 = vmatpush1.bf16.msra.mxu0 %v2384
    %2814 = vmatprep.subr.bf16.mxu0 %v2393
    %2815 = vmatpush1.bf16.msra.mxu0 %v2392
    %2816 = vmatprep.mubr.bf16.mxu0 %v1203
    %2817 = vmatmul.mubr.bf16.gmra.mrb[0].mxu0 %v1202
    %v2818 = vpop.f32.mrb[0].mxu0
    %v2819 = vadd.f32 %v1467, %v2818
    %v2820 = vpop.f32.mrb[0].mxu0
    %v2821 = vadd.f32 %v1471, %v2820
    %v2822 = vpop.f32.mrb[0].mxu0
    %v2823 = vadd.f32 %v1467, %v2822
    %v2824 = vpop.f32.mrb[0].mxu0
    %v2825 = vadd.f32 %v1471, %v2824
    %2826 = vdwg.mxu0
    %2827 = vmatprep.subr.bf16.mxu0 %v2401
    %2828 = vmatpush1.bf16.msra.mxu0 %v2400
    %2829 = vmatprep.subr.bf16.mxu0 %v2409
    %2830 = vmatpush1.bf16.msra.mxu0 %v2408
    %2831 = vmatprep.subr.bf16.mxu0 %v2417
    %2832 = vmatpush1.bf16.msra.mxu0 %v2416
    %2833 = vmatprep.subr.bf16.mxu0 %v2425
    %2834 = vmatpush1.bf16.msra.mxu0 %v2424
    %2835 = vmatprep.subr.bf16.mxu0 %v2433
    %2836 = vmatpush1.bf16.msra.mxu0 %v2432
    %2837 = vmatprep.subr.bf16.mxu0 %v2441
    %2838 = vmatpush1.bf16.msra.mxu0 %v2440
    %2839 = vmatprep.subr.bf16.mxu0 %v2449
    %2840 = vmatpush1.bf16.msra.mxu0 %v2448
    %2841 = vmatprep.subr.bf16.mxu0 %v2457
    %2842 = vmatpush1.bf16.msra.mxu0 %v2456
    %2843 = vmatprep.subr.bf16.mxu0 %v2465
    %2844 = vmatpush1.bf16.msra.mxu0 %v2464
    %2845 = vmatprep.subr.bf16.mxu0 %v2473
    %2846 = vmatpush1.bf16.msra.mxu0 %v2472
    %2847 = vmatprep.subr.bf16.mxu0 %v2481
    %2848 = vmatpush1.bf16.msra.mxu0 %v2480
    %2849 = vmatprep.subr.bf16.mxu0 %v2489
    %2850 = vmatpush1.bf16.msra.mxu0 %v2488
    %2851 = vmatprep.subr.bf16.mxu0 %v2497
    %2852 = vmatpush1.bf16.msra.mxu0 %v2496
    %2853 = vmatprep.subr.bf16.mxu0 %v2505
    %2854 = vmatpush1.bf16.msra.mxu0 %v2504
    %2855 = vmatprep.subr.bf16.mxu0 %v2513
    %2856 = vmatpush1.bf16.msra.mxu0 %v2512
    %2857 = vmatprep.subr.bf16.mxu0 %v2521
    %2858 = vmatpush1.bf16.msra.mxu0 %v2520
    %2859 = vmatprep.mubr.bf16.mxu0 %v1205
    %2860 = vmatmul.mubr.bf16.gmra.mrb[0].mxu0 %v1204
    %v2861 = vpop.f32.mrb[0].mxu0
    %v2862 = vadd.f32 %v2819, %v2861
    %v2863 = vpop.f32.mrb[0].mxu0
    %v2864 = vadd.f32 %v2821, %v2863
    %v2865 = vpop.f32.mrb[0].mxu0
    %v2866 = vadd.f32 %v2823, %v2865
    %v2867 = vpop.f32.mrb[0].mxu0
    %v2868 = vadd.f32 %v2825, %v2867
    %2869 = vdwg.mxu0
    %2870 = vmatprep.subr.bf16.mxu0 %v2275
    %2871 = vmatpush1.bf16.msra.mxu0 %v2274
    %2872 = vmatprep.subr.bf16.mxu0 %v2283
    %2873 = vmatpush1.bf16.msra.mxu0 %v2282
    %2874 = vmatprep.subr.bf16.mxu0 %v2291
    %2875 = vmatpush1.bf16.msra.mxu0 %v2290
    %2876 = vmatprep.subr.bf16.mxu0 %v2299
    %2877 = vmatpush1.bf16.msra.mxu0 %v2298
    %2878 = vmatprep.subr.bf16.mxu0 %v2307
    %2879 = vmatpush1.bf16.msra.mxu0 %v2306
    %2880 = vmatprep.subr.bf16.mxu0 %v2315
    %2881 = vmatpush1.bf16.msra.mxu0 %v2314
    %2882 = vmatprep.subr.bf16.mxu0 %v2323
    %2883 = vmatpush1.bf16.msra.mxu0 %v2322
    %2884 = vmatprep.subr.bf16.mxu0 %v2331
    %2885 = vmatpush1.bf16.msra.mxu0 %v2330
    %2886 = vmatprep.subr.bf16.mxu0 %v2339
    %2887 = vmatpush1.bf16.msra.mxu0 %v2338
    %2888 = vmatprep.subr.bf16.mxu0 %v2347
    %2889 = vmatpush1.bf16.msra.mxu0 %v2346
    %2890 = vmatprep.subr.bf16.mxu0 %v2355
    %2891 = vmatpush1.bf16.msra.mxu0 %v2354
    %2892 = vmatprep.subr.bf16.mxu0 %v2363
    %2893 = vmatpush1.bf16.msra.mxu0 %v2362
    %2894 = vmatprep.subr.bf16.mxu0 %v2371
    %2895 = vmatpush1.bf16.msra.mxu0 %v2370
    %2896 = vmatprep.subr.bf16.mxu0 %v2379
    %2897 = vmatpush1.bf16.msra.mxu0 %v2378
    %2898 = vmatprep.subr.bf16.mxu0 %v2387
    %2899 = vmatpush1.bf16.msra.mxu0 %v2386
    %2900 = vmatprep.subr.bf16.mxu0 %v2395
    %2901 = vmatpush1.bf16.msra.mxu0 %v2394
    %2902 = vmatprep.mubr.bf16.mxu0 %v1203
    %2903 = vmatmul.mubr.bf16.gmra.mrb[0].mxu0 %v1202
    %v2904 = vpop.f32.mrb[0].mxu0
    %v2905 = vadd.f32 %v1475, %v2904
    %v2906 = vpop.f32.mrb[0].mxu0
    %v2907 = vadd.f32 %v1479, %v2906
    %v2908 = vpop.f32.mrb[0].mxu0
    %v2909 = vadd.f32 %v1475, %v2908
    %v2910 = vpop.f32.mrb[0].mxu0
    %v2911 = vadd.f32 %v1479, %v2910
    %2912 = vdwg.mxu0
    %2913 = vmatprep.subr.bf16.mxu0 %v2403
    %2914 = vmatpush1.bf16.msra.mxu0 %v2402
    %2915 = vmatprep.subr.bf16.mxu0 %v2411
    %2916 = vmatpush1.bf16.msra.mxu0 %v2410
    %2917 = vmatprep.subr.bf16.mxu0 %v2419
    %2918 = vmatpush1.bf16.msra.mxu0 %v2418
    %2919 = vmatprep.subr.bf16.mxu0 %v2427
    %2920 = vmatpush1.bf16.msra.mxu0 %v2426
    %2921 = vmatprep.subr.bf16.mxu0 %v2435
    %2922 = vmatpush1.bf16.msra.mxu0 %v2434
    %2923 = vmatprep.subr.bf16.mxu0 %v2443
    %2924 = vmatpush1.bf16.msra.mxu0 %v2442
    %2925 = vmatprep.subr.bf16.mxu0 %v2451
    %2926 = vmatpush1.bf16.msra.mxu0 %v2450
    %2927 = vmatprep.subr.bf16.mxu0 %v2459
    %2928 = vmatpush1.bf16.msra.mxu0 %v2458
    %2929 = vmatprep.subr.bf16.mxu0 %v2467
    %2930 = vmatpush1.bf16.msra.mxu0 %v2466
    %2931 = vmatprep.subr.bf16.mxu0 %v2475
    %2932 = vmatpush1.bf16.msra.mxu0 %v2474
    %2933 = vmatprep.subr.bf16.mxu0 %v2483
    %2934 = vmatpush1.bf16.msra.mxu0 %v2482
    %2935 = vmatprep.subr.bf16.mxu0 %v2491
    %2936 = vmatpush1.bf16.msra.mxu0 %v2490
    %2937 = vmatprep.subr.bf16.mxu0 %v2499
    %2938 = vmatpush1.bf16.msra.mxu0 %v2498
    %2939 = vmatprep.subr.bf16.mxu0 %v2507
    %2940 = vmatpush1.bf16.msra.mxu0 %v2506
    %2941 = vmatprep.subr.bf16.mxu0 %v2515
    %2942 = vmatpush1.bf16.msra.mxu0 %v2514
    %2943 = vmatprep.subr.bf16.mxu0 %v2523
    %2944 = vmatpush1.bf16.msra.mxu0 %v2522
    %2945 = vmatprep.mubr.bf16.mxu0 %v1205
    %2946 = vmatmul.mubr.bf16.gmra.mrb[0].mxu0 %v1204
    %v2947 = vpop.f32.mrb[0].mxu0
    %v2948 = vadd.f32 %v2905, %v2947
    %v2949 = vpop.f32.mrb[0].mxu0
    %v2950 = vadd.f32 %v2907, %v2949
    %v2951 = vpop.f32.mrb[0].mxu0
    %v2952 = vadd.f32 %v2909, %v2951
    %v2953 = vpop.f32.mrb[0].mxu0
    %v2954 = vadd.f32 %v2911, %v2953
    %2955 = vdwg.mxu0
    %2956 = vmatprep.subr.bf16.mxu0 %v2277
    %2957 = vmatpush1.bf16.msra.mxu0 %v2276
    %2958 = vmatprep.subr.bf16.mxu0 %v2285
    %2959 = vmatpush1.bf16.msra.mxu0 %v2284
    %2960 = vmatprep.subr.bf16.mxu0 %v2293
    %2961 = vmatpush1.bf16.msra.mxu0 %v2292
    %2962 = vmatprep.subr.bf16.mxu0 %v2301
    %2963 = vmatpush1.bf16.msra.mxu0 %v2300
    %2964 = vmatprep.subr.bf16.mxu0 %v2309
    %2965 = vmatpush1.bf16.msra.mxu0 %v2308
    %2966 = vmatprep.subr.bf16.mxu0 %v2317
    %2967 = vmatpush1.bf16.msra.mxu0 %v2316
    %2968 = vmatprep.subr.bf16.mxu0 %v2325
    %2969 = vmatpush1.bf16.msra.mxu0 %v2324
    %2970 = vmatprep.subr.bf16.mxu0 %v2333
    %2971 = vmatpush1.bf16.msra.mxu0 %v2332
    %2972 = vmatprep.subr.bf16.mxu0 %v2341
    %2973 = vmatpush1.bf16.msra.mxu0 %v2340
    %2974 = vmatprep.subr.bf16.mxu0 %v2349
    %2975 = vmatpush1.bf16.msra.mxu0 %v2348
    %2976 = vmatprep.subr.bf16.mxu0 %v2357
    %2977 = vmatpush1.bf16.msra.mxu0 %v2356
    %2978 = vmatprep.subr.bf16.mxu0 %v2365
    %2979 = vmatpush1.bf16.msra.mxu0 %v2364
    %2980 = vmatprep.subr.bf16.mxu0 %v2373
    %2981 = vmatpush1.bf16.msra.mxu0 %v2372
    %2982 = vmatprep.subr.bf16.mxu0 %v2381
    %2983 = vmatpush1.bf16.msra.mxu0 %v2380
    %2984 = vmatprep.subr.bf16.mxu0 %v2389
    %2985 = vmatpush1.bf16.msra.mxu0 %v2388
    %2986 = vmatprep.subr.bf16.mxu0 %v2397
    %2987 = vmatpush1.bf16.msra.mxu0 %v2396
    %2988 = vmatprep.mubr.bf16.mxu0 %v1203
    %2989 = vmatmul.mubr.bf16.gmra.mrb[0].mxu0 %v1202
    %v2990 = vpop.f32.mrb[0].mxu0
    %v2991 = vadd.f32 %v1483, %v2990
    %v2992 = vpop.f32.mrb[0].mxu0
    %v2993 = vadd.f32 %v1487, %v2992
    %v2994 = vpop.f32.mrb[0].mxu0
    %v2995 = vadd.f32 %v1483, %v2994
    %v2996 = vpop.f32.mrb[0].mxu0
    %v2997 = vadd.f32 %v1487, %v2996
    %2998 = vdwg.mxu0
    %2999 = vmatprep.subr.bf16.mxu0 %v2405
    %3000 = vmatpush1.bf16.msra.mxu0 %v2404
    %3001 = vmatprep.subr.bf16.mxu0 %v2413
    %3002 = vmatpush1.bf16.msra.mxu0 %v2412
    %3003 = vmatprep.subr.bf16.mxu0 %v2421
    %3004 = vmatpush1.bf16.msra.mxu0 %v2420
    %3005 = vmatprep.subr.bf16.mxu0 %v2429
    %3006 = vmatpush1.bf16.msra.mxu0 %v2428
    %3007 = vmatprep.subr.bf16.mxu0 %v2437
    %3008 = vmatpush1.bf16.msra.mxu0 %v2436
    %3009 = vmatprep.subr.bf16.mxu0 %v2445
    %3010 = vmatpush1.bf16.msra.mxu0 %v2444
    %3011 = vmatprep.subr.bf16.mxu0 %v2453
    %3012 = vmatpush1.bf16.msra.mxu0 %v2452
    %3013 = vmatprep.subr.bf16.mxu0 %v2461
    %3014 = vmatpush1.bf16.msra.mxu0 %v2460
    %3015 = vmatprep.subr.bf16.mxu0 %v2469
    %3016 = vmatpush1.bf16.msra.mxu0 %v2468
    %3017 = vmatprep.subr.bf16.mxu0 %v2477
    %3018 = vmatpush1.bf16.msra.mxu0 %v2476
    %3019 = vmatprep.subr.bf16.mxu0 %v2485
    %3020 = vmatpush1.bf16.msra.mxu0 %v2484
    %3021 = vmatprep.subr.bf16.mxu0 %v2493
    %3022 = vmatpush1.bf16.msra.mxu0 %v2492
    %3023 = vmatprep.subr.bf16.mxu0 %v2501
    %3024 = vmatpush1.bf16.msra.mxu0 %v2500
    %3025 = vmatprep.subr.bf16.mxu0 %v2509
    %3026 = vmatpush1.bf16.msra.mxu0 %v2508
    %3027 = vmatprep.subr.bf16.mxu0 %v2517
    %3028 = vmatpush1.bf16.msra.mxu0 %v2516
    %3029 = vmatprep.subr.bf16.mxu0 %v2525
    %3030 = vmatpush1.bf16.msra.mxu0 %v2524
    %3031 = vmatprep.mubr.bf16.mxu0 %v1205
    %3032 = vmatmul.mubr.bf16.gmra.mrb[0].mxu0 %v1204
    %v3033 = vpop.f32.mrb[0].mxu0
    %v3034 = vadd.f32 %v2991, %v3033
    %v3035 = vpop.f32.mrb[0].mxu0
    %v3036 = vadd.f32 %v2993, %v3035
    %v3037 = vpop.f32.mrb[0].mxu0
    %v3038 = vadd.f32 %v2995, %v3037
    %v3039 = vpop.f32.mrb[0].mxu0
    %v3040 = vadd.f32 %v2997, %v3039
    %3041 = vdwg.mxu0
    %3042 = vmatprep.subr.bf16.mxu0 %v2279
    %3043 = vmatpush1.bf16.msra.mxu0 %v2278
    %3044 = vmatprep.subr.bf16.mxu0 %v2287
    %3045 = vmatpush1.bf16.msra.mxu0 %v2286
    %3046 = vmatprep.subr.bf16.mxu0 %v2295
    %3047 = vmatpush1.bf16.msra.mxu0 %v2294
    %3048 = vmatprep.subr.bf16.mxu0 %v2303
    %3049 = vmatpush1.bf16.msra.mxu0 %v2302
    %3050 = vmatprep.subr.bf16.mxu0 %v2311
    %3051 = vmatpush1.bf16.msra.mxu0 %v2310
    %3052 = vmatprep.subr.bf16.mxu0 %v2319
    %3053 = vmatpush1.bf16.msra.mxu0 %v2318
    %3054 = vmatprep.subr.bf16.mxu0 %v2327
    %3055 = vmatpush1.bf16.msra.mxu0 %v2326
    %3056 = vmatprep.subr.bf16.mxu0 %v2335
    %3057 = vmatpush1.bf16.msra.mxu0 %v2334
    %3058 = vmatprep.subr.bf16.mxu0 %v2343
    %3059 = vmatpush1.bf16.msra.mxu0 %v2342
    %3060 = vmatprep.subr.bf16.mxu0 %v2351
    %3061 = vmatpush1.bf16.msra.mxu0 %v2350
    %3062 = vmatprep.subr.bf16.mxu0 %v2359
    %3063 = vmatpush1.bf16.msra.mxu0 %v2358
    %3064 = vmatprep.subr.bf16.mxu0 %v2367
    %3065 = vmatpush1.bf16.msra.mxu0 %v2366
    %3066 = vmatprep.subr.bf16.mxu0 %v2375
    %3067 = vmatpush1.bf16.msra.mxu0 %v2374
    %3068 = vmatprep.subr.bf16.mxu0 %v2383
    %3069 = vmatpush1.bf16.msra.mxu0 %v2382
    %3070 = vmatprep.subr.bf16.mxu0 %v2391
    %3071 = vmatpush1.bf16.msra.mxu0 %v2390
    %3072 = vmatprep.subr.bf16.mxu0 %v2399
    %3073 = vmatpush1.bf16.msra.mxu0 %v2398
    %3074 = vmatprep.mubr.bf16.mxu0 %v1203
    %3075 = vmatmul.mubr.bf16.gmra.mrb[0].mxu0 %v1202
    %v3076 = vpop.f32.mrb[0].mxu0
    %v3077 = vadd.f32 %v1491, %v3076
    %v3078 = vpop.f32.mrb[0].mxu0
    %v3079 = vadd.f32 %v1495, %v3078
    %v3080 = vpop.f32.mrb[0].mxu0
    %v3081 = vadd.f32 %v1491, %v3080
    %v3082 = vpop.f32.mrb[0].mxu0
    %v3083 = vadd.f32 %v1495, %v3082
    %3084 = vdwg.mxu0
    %3085 = vmatprep.subr.bf16.mxu0 %v2407
    %3086 = vmatpush1.bf16.msra.mxu0 %v2406
    %3087 = vmatprep.subr.bf16.mxu0 %v2415
    %3088 = vmatpush1.bf16.msra.mxu0 %v2414
    %3089 = vmatprep.subr.bf16.mxu0 %v2423
    %3090 = vmatpush1.bf16.msra.mxu0 %v2422
    %3091 = vmatprep.subr.bf16.mxu0 %v2431
    %3092 = vmatpush1.bf16.msra.mxu0 %v2430
    %3093 = vmatprep.subr.bf16.mxu0 %v2439
    %3094 = vmatpush1.bf16.msra.mxu0 %v2438
    %3095 = vmatprep.subr.bf16.mxu0 %v2447
    %3096 = vmatpush1.bf16.msra.mxu0 %v2446
    %3097 = vmatprep.subr.bf16.mxu0 %v2455
    %3098 = vmatpush1.bf16.msra.mxu0 %v2454
    %3099 = vmatprep.subr.bf16.mxu0 %v2463
    %3100 = vmatpush1.bf16.msra.mxu0 %v2462
    %3101 = vmatprep.subr.bf16.mxu0 %v2471
    %3102 = vmatpush1.bf16.msra.mxu0 %v2470
    %3103 = vmatprep.subr.bf16.mxu0 %v2479
    %3104 = vmatpush1.bf16.msra.mxu0 %v2478
    %3105 = vmatprep.subr.bf16.mxu0 %v2487
    %3106 = vmatpush1.bf16.msra.mxu0 %v2486
    %3107 = vmatprep.subr.bf16.mxu0 %v2495
    %3108 = vmatpush1.bf16.msra.mxu0 %v2494
    %3109 = vmatprep.subr.bf16.mxu0 %v2503
    %3110 = vmatpush1.bf16.msra.mxu0 %v2502
    %3111 = vmatprep.subr.bf16.mxu0 %v2511
    %3112 = vmatpush1.bf16.msra.mxu0 %v2510
    %3113 = vmatprep.subr.bf16.mxu0 %v2519
    %3114 = vmatpush1.bf16.msra.mxu0 %v2518
    %3115 = vmatprep.subr.bf16.mxu0 %v2527
    %3116 = vmatpush1.bf16.msra.mxu0 %v2526
    %3117 = vmatprep.mubr.bf16.mxu0 %v1205
    %3118 = vmatmul.mubr.bf16.gmra.mrb[0].mxu0 %v1204
    %v3119 = vpop.f32.mrb[0].mxu0
    %v3120 = vadd.f32 %v3077, %v3119
    %v3121 = vpop.f32.mrb[0].mxu0
    %v3122 = vadd.f32 %v3079, %v3121
    %v3123 = vpop.f32.mrb[0].mxu0
    %v3124 = vadd.f32 %v3081, %v3123
    %v3125 = vpop.f32.mrb[0].mxu0
    %v3126 = vadd.f32 %v3083, %v3125
    %3127 = vdwg.mxu0
    %v3128 = vld [vmem:[%s13] sm:$0xff]
    %v3129 = vld [vmem:[%s14] sm:$0xff]
    %v3130 = vsel %vm363, %v2862, 0.0
    %v3131 = vsel %vm363, %v2864, 0.0
    %v3132 = vsel %vm363, %v2948, 0.0
    %v3133 = vsel %vm363, %v2950, 0.0
    %v3134 = vsel %vm363, %v3034, 0.0
    %v3135 = vsel %vm363, %v3036, 0.0
    %v3136 = vsel %vm363, %v3120, 0.0
    %v3137 = vsel %vm363, %v3122, 0.0
    %v3138 = vsel %vm364, %v2866, 0.0
    %v3139 = vsel %vm364, %v2868, 0.0
    %v3140 = vsel %vm364, %v2952, 0.0
    %v3141 = vsel %vm364, %v2954, 0.0
    %v3142 = vsel %vm364, %v3038, 0.0
    %v3143 = vsel %vm364, %v3040, 0.0
    %v3144 = vsel %vm364, %v3124, 0.0
    %v3145 = vsel %vm364, %v3126, 0.0
    %v3146 = vadd.f32 %v3130, %v3138
    %v3147 = vrot.slane %v3146, 4
    %v3148 = vadd.f32 %v3146, %v3147
    %v3149 = vrot.slane %v3148, 2
    %v3150 = vadd.f32 %v3148, %v3149
    %v3151 = vrot.slane %v3150, 1
    %v3152 = vadd.f32 %v3150, %v3151
    %v3153 = vadd.f32 %v3131, %v3139
    %v3154 = vrot.slane %v3153, 4
    %v3155 = vadd.f32 %v3153, %v3154
    %v3156 = vrot.slane %v3155, 2
    %v3157 = vadd.f32 %v3155, %v3156
    %v3158 = vrot.slane %v3157, 1
    %v3159 = vadd.f32 %v3157, %v3158
    %v3160 = vadd.f32 %v3132, %v3140
    %v3161 = vrot.slane %v3160, 4
    %v3162 = vadd.f32 %v3160, %v3161
    %v3163 = vrot.slane %v3162, 2
    %v3164 = vadd.f32 %v3162, %v3163
    %v3165 = vrot.slane %v3164, 1
    %v3166 = vadd.f32 %v3164, %v3165
    %v3167 = vadd.f32 %v3133, %v3141
    %v3168 = vrot.slane %v3167, 4
    %v3169 = vadd.f32 %v3167, %v3168
    %v3170 = vrot.slane %v3169, 2
    %v3171 = vadd.f32 %v3169, %v3170
    %v3172 = vrot.slane %v3171, 1
    %v3173 = vadd.f32 %v3171, %v3172
    %v3174 = vadd.f32 %v3134, %v3142
    %v3175 = vrot.slane %v3174, 4
    %v3176 = vadd.f32 %v3174, %v3175
    %v3177 = vrot.slane %v3176, 2
    %v3178 = vadd.f32 %v3176, %v3177
    %v3179 = vrot.slane %v3178, 1
    %v3180 = vadd.f32 %v3178, %v3179
    %v3181 = vadd.f32 %v3135, %v3143
    %v3182 = vrot.slane %v3181, 4
    %v3183 = vadd.f32 %v3181, %v3182
    %v3184 = vrot.slane %v3183, 2
    %v3185 = vadd.f32 %v3183, %v3184
    %v3186 = vrot.slane %v3185, 1
    %v3187 = vadd.f32 %v3185, %v3186
    %v3188 = vadd.f32 %v3136, %v3144
    %v3189 = vrot.slane %v3188, 4
    %v3190 = vadd.f32 %v3188, %v3189
    %v3191 = vrot.slane %v3190, 2
    %v3192 = vadd.f32 %v3190, %v3191
    %v3193 = vrot.slane %v3192, 1
    %v3194 = vadd.f32 %v3192, %v3193
    %v3195 = vadd.f32 %v3137, %v3145
    %v3196 = vrot.slane %v3195, 4
    %v3197 = vadd.f32 %v3195, %v3196
    %v3198 = vrot.slane %v3197, 2
    %v3199 = vadd.f32 %v3197, %v3198
    %v3200 = vrot.slane %v3199, 1
    %v3201 = vadd.f32 %v3199, %v3200
    %v3202 = vmul.f32 %v3130, %v3130
    %v3203 = vmul.f32 %v3131, %v3131
    %v3204 = vmul.f32 %v3132, %v3132
    %v3205 = vmul.f32 %v3133, %v3133
    %v3206 = vmul.f32 %v3134, %v3134
    %v3207 = vmul.f32 %v3135, %v3135
    %v3208 = vmul.f32 %v3136, %v3136
    %v3209 = vmul.f32 %v3137, %v3137
    %v3210 = vmul.f32 %v3138, %v3138
    %v3211 = vmul.f32 %v3139, %v3139
    %v3212 = vmul.f32 %v3140, %v3140
    %v3213 = vmul.f32 %v3141, %v3141
    %v3214 = vmul.f32 %v3142, %v3142
    %v3215 = vmul.f32 %v3143, %v3143
    %v3216 = vmul.f32 %v3144, %v3144
    %v3217 = vmul.f32 %v3145, %v3145
    %v3218 = vadd.f32 %v3202, %v3210
    %v3219 = vrot.slane %v3218, 4
    %v3220 = vadd.f32 %v3218, %v3219
    %v3221 = vrot.slane %v3220, 2
    %v3222 = vadd.f32 %v3220, %v3221
    %v3223 = vrot.slane %v3222, 1
    %v3224 = vadd.f32 %v3222, %v3223
    %v3225 = vadd.f32 %v3203, %v3211
    %v3226 = vrot.slane %v3225, 4
    %v3227 = vadd.f32 %v3225, %v3226
    %v3228 = vrot.slane %v3227, 2
    %v3229 = vadd.f32 %v3227, %v3228
    %v3230 = vrot.slane %v3229, 1
    %v3231 = vadd.f32 %v3229, %v3230
    %v3232 = vadd.f32 %v3204, %v3212
    %v3233 = vrot.slane %v3232, 4
    %v3234 = vadd.f32 %v3232, %v3233
    %v3235 = vrot.slane %v3234, 2
    %v3236 = vadd.f32 %v3234, %v3235
    %v3237 = vrot.slane %v3236, 1
    %v3238 = vadd.f32 %v3236, %v3237
    %v3239 = vadd.f32 %v3205, %v3213
    %v3240 = vrot.slane %v3239, 4
    %v3241 = vadd.f32 %v3239, %v3240
    %v3242 = vrot.slane %v3241, 2
    %v3243 = vadd.f32 %v3241, %v3242
    %v3244 = vrot.slane %v3243, 1
    %v3245 = vadd.f32 %v3243, %v3244
    %v3246 = vadd.f32 %v3206, %v3214
    %v3247 = vrot.slane %v3246, 4
    %v3248 = vadd.f32 %v3246, %v3247
    %v3249 = vrot.slane %v3248, 2
    %v3250 = vadd.f32 %v3248, %v3249
    %v3251 = vrot.slane %v3250, 1
    %v3252 = vadd.f32 %v3250, %v3251
    %v3253 = vadd.f32 %v3207, %v3215
    %v3254 = vrot.slane %v3253, 4
    %v3255 = vadd.f32 %v3253, %v3254
    %v3256 = vrot.slane %v3255, 2
    %v3257 = vadd.f32 %v3255, %v3256
    %v3258 = vrot.slane %v3257, 1
    %v3259 = vadd.f32 %v3257, %v3258
    %v3260 = vadd.f32 %v3208, %v3216
    %v3261 = vrot.slane %v3260, 4
    %v3262 = vadd.f32 %v3260, %v3261
    %v3263 = vrot.slane %v3262, 2
    %v3264 = vadd.f32 %v3262, %v3263
    %v3265 = vrot.slane %v3264, 1
    %v3266 = vadd.f32 %v3264, %v3265
    %v3267 = vadd.f32 %v3209, %v3217
    %v3268 = vrot.slane %v3267, 4
    %v3269 = vadd.f32 %v3267, %v3268
    %v3270 = vrot.slane %v3269, 2
    %v3271 = vadd.f32 %v3269, %v3270
    %v3272 = vrot.slane %v3271, 1
    %v3273 = vadd.f32 %v3271, %v3272
    %v3274 = vmul.f32 %v3152, 0.125
    %v3275 = vmul.f32 %v3159, 0.125
    %v3276 = vmul.f32 %v3166, 0.125
    %v3277 = vmul.f32 %v3173, 0.125
    %v3278 = vmul.f32 %v3180, 0.125
    %v3279 = vmul.f32 %v3187, 0.125
    %v3280 = vmul.f32 %v3194, 0.125
    %v3281 = vmul.f32 %v3201, 0.125
    %v3282 = vmul.f32 %v3224, 0.125
    %v3283 = vmul.f32 %v3231, 0.125
    %v3284 = vmul.f32 %v3238, 0.125
    %v3285 = vmul.f32 %v3245, 0.125
    %v3286 = vmul.f32 %v3252, 0.125
    %v3287 = vmul.f32 %v3259, 0.125
    %v3288 = vmul.f32 %v3266, 0.125
    %v3289 = vmul.f32 %v3273, 0.125
    %v3290 = vmul.f32 %v3274, %v3274
    %v3291 = vmul.f32 %v3275, %v3275
    %v3292 = vmul.f32 %v3276, %v3276
    %v3293 = vmul.f32 %v3277, %v3277
    %v3294 = vmul.f32 %v3278, %v3278
    %v3295 = vmul.f32 %v3279, %v3279
    %v3296 = vmul.f32 %v3280, %v3280
    %v3297 = vmul.f32 %v3281, %v3281
    %v3298 = vsub.f32 %v3282, %v3290
    %v3299 = vsub.f32 %v3283, %v3291
    %v3300 = vsub.f32 %v3284, %v3292
    %v3301 = vsub.f32 %v3285, %v3293
    %v3302 = vsub.f32 %v3286, %v3294
    %v3303 = vsub.f32 %v3287, %v3295
    %v3304 = vsub.f32 %v3288, %v3296
    %v3305 = vsub.f32 %v3289, %v3297
    %v3306 = vadd.f32 %v3298, 0.8
    %v3307 = vadd.f32 %v3299, 0.8
    %v3308 = vadd.f32 %v3300, 0.8
    %v3309 = vadd.f32 %v3301, 0.8
    %v3310 = vadd.f32 %v3302, 0.8
    %v3311 = vadd.f32 %v3303, 0.8
    %v3312 = vadd.f32 %v3304, 0.8
    %v3313 = vadd.f32 %v3305, 0.8
    %v3314 = vrsqrt.pop %v3306
    %v3315 = vrsqrt.pop %v3307
    %v3316 = vrsqrt.pop %v3308
    %v3317 = vrsqrt.pop %v3309
    %v3318 = vrsqrt.pop %v3310
    %v3319 = vrsqrt.pop %v3311
    %v3320 = vrsqrt.pop %v3312
    %v3321 = vrsqrt.pop %v3313
    %v3323 = vlaneseq
    %v3324 = vshrl.u32 %v3323, 7
    %v3325 = vsub.s32 0, %v3324
    %v3326 = vrot.slane %v3128, %v3325
    %v3327 = vlaneseq
    %v3328 = vshrl.u32 %v3327, 7
    %v3329 = vsub.s32 1, %v3328
    %v3330 = vrot.slane %v3128, %v3329
    %v3331 = vlaneseq
    %v3332 = vshrl.u32 %v3331, 7
    %v3333 = vsub.s32 2, %v3332
    %v3334 = vrot.slane %v3128, %v3333
    %v3335 = vlaneseq
    %v3336 = vshrl.u32 %v3335, 7
    %v3337 = vsub.s32 3, %v3336
    %v3338 = vrot.slane %v3128, %v3337
    %v3339 = vlaneseq
    %v3340 = vshrl.u32 %v3339, 7
    %v3341 = vsub.s32 4, %v3340
    %v3342 = vrot.slane %v3128, %v3341
    %v3343 = vlaneseq
    %v3344 = vshrl.u32 %v3343, 7
    %v3345 = vsub.s32 5, %v3344
    %v3346 = vrot.slane %v3128, %v3345
    %v3347 = vlaneseq
    %v3348 = vshrl.u32 %v3347, 7
    %v3349 = vsub.s32 6, %v3348
    %v3350 = vrot.slane %v3128, %v3349
    %v3351 = vlaneseq
    %v3352 = vshrl.u32 %v3351, 7
    %v3353 = vsub.s32 7, %v3352
    %v3354 = vrot.slane %v3128, %v3353
    %v3363 = vmul.f32 %v3314, %v3326
    %v3364 = vmul.f32 %v3315, %v3330
    %v3365 = vmul.f32 %v3316, %v3334
    %v3366 = vmul.f32 %v3317, %v3338
    %v3367 = vmul.f32 %v3318, %v3342
    %v3368 = vmul.f32 %v3319, %v3346
    %v3369 = vmul.f32 %v3320, %v3350
    %v3370 = vmul.f32 %v3321, %v3354
    %v3371 = vmul.f32 %v3274, %v3363
    %v3372 = vmul.f32 %v3275, %v3364
    %v3373 = vmul.f32 %v3276, %v3365
    %v3374 = vmul.f32 %v3277, %v3366
    %v3375 = vmul.f32 %v3278, %v3367
    %v3376 = vmul.f32 %v3279, %v3368
    %v3377 = vmul.f32 %v3280, %v3369
    %v3378 = vmul.f32 %v3281, %v3370
    %v3387 = vcombine.low %v3371, %v3372
    %v3388 = vcombine.low %v3373, %v3374
    %v3389 = vcombine.low %v3375, %v3376
    %v3390 = vcombine.low %v3377, %v3378
    %v3392 = vunpack.c.l.s4 1966171168
    %v3393 = vunpack.c.0.s8 %v3392
    %v3394 = vlaneseq
    %v3395 = vshrl.u32 %v3394, 7
    %v3396 = vsub.s32 %v3393, %v3395
    %v3397 = vrot.slane %v3387, %v3396
    %v3399 = vunpack.c.l.s4 1966171168
    %v3400 = vunpack.c.0.s8 %v3399
    %v3401 = vlaneseq
    %v3402 = vshrl.u32 %v3401, 7
    %v3403 = vsub.s32 %v3400, %v3402
    %v3404 = vrot.slane %v3388, %v3403
    %v3406 = vunpack.c.l.s4 1966171168
    %v3407 = vunpack.c.0.s8 %v3406
    %v3408 = vlaneseq
    %v3409 = vshrl.u32 %v3408, 7
    %v3410 = vsub.s32 %v3407, %v3409
    %v3411 = vrot.slane %v3389, %v3410
    %v3413 = vunpack.c.l.s4 1966171168
    %v3414 = vunpack.c.0.s8 %v3413
    %v3415 = vlaneseq
    %v3416 = vshrl.u32 %v3415, 7
    %v3417 = vsub.s32 %v3414, %v3416
    %v3418 = vrot.slane %v3390, %v3417
    %v3419 = vcombine.low %v3397, %v3404
    %v3420 = vcombine.low %v3411, %v3418
    %v3422 = vunpack.c.l.s4 1966171168
    %v3423 = vunpack.c.0.s8 %v3422
    %v3424 = vlaneseq
    %v3425 = vshrl.u32 %v3424, 7
    %v3426 = vsub.s32 %v3423, %v3425
    %v3427 = vrot.slane %v3419, %v3426
    %v3429 = vunpack.c.l.s4 1966171168
    %v3430 = vunpack.c.0.s8 %v3429
    %v3431 = vlaneseq
    %v3432 = vshrl.u32 %v3431, 7
    %v3433 = vsub.s32 %v3430, %v3432
    %v3434 = vrot.slane %v3420, %v3433
    %v3435 = vcombine.low %v3427, %v3434
    %v3437 = vsub.f32 %v3129, %v3435
    %v3438 = vlaneseq
    %v3439 = vshrl.u32 %v3438, 7
    %v3440 = vsub.s32 0, %v3439
    %v3441 = vrot.slane %v3363, %v3440
    %v3442 = vlaneseq
    %v3443 = vshrl.u32 %v3442, 7
    %v3444 = vsub.s32 0, %v3443
    %v3445 = vrot.slane %v3364, %v3444
    %v3446 = vlaneseq
    %v3447 = vshrl.u32 %v3446, 7
    %v3448 = vsub.s32 0, %v3447
    %v3449 = vrot.slane %v3365, %v3448
    %v3450 = vlaneseq
    %v3451 = vshrl.u32 %v3450, 7
    %v3452 = vsub.s32 0, %v3451
    %v3453 = vrot.slane %v3366, %v3452
    %v3454 = vlaneseq
    %v3455 = vshrl.u32 %v3454, 7
    %v3456 = vsub.s32 0, %v3455
    %v3457 = vrot.slane %v3367, %v3456
    %v3458 = vlaneseq
    %v3459 = vshrl.u32 %v3458, 7
    %v3460 = vsub.s32 0, %v3459
    %v3461 = vrot.slane %v3368, %v3460
    %v3462 = vlaneseq
    %v3463 = vshrl.u32 %v3462, 7
    %v3464 = vsub.s32 0, %v3463
    %v3465 = vrot.slane %v3369, %v3464
    %v3466 = vlaneseq
    %v3467 = vshrl.u32 %v3466, 7
    %v3468 = vsub.s32 0, %v3467
    %v3469 = vrot.slane %v3370, %v3468
    %v3470 = vmul.f32 %v2862, %v3441
    %v3471 = vmul.f32 %v2864, %v3445
    %v3472 = vmul.f32 %v2948, %v3449
    %v3473 = vmul.f32 %v2950, %v3453
    %v3474 = vmul.f32 %v3034, %v3457
    %v3475 = vmul.f32 %v3036, %v3461
    %v3476 = vmul.f32 %v3120, %v3465
    %v3477 = vmul.f32 %v3122, %v3469
    %v3478 = vmul.f32 %v2866, %v3441
    %v3479 = vmul.f32 %v2868, %v3445
    %v3480 = vmul.f32 %v2952, %v3449
    %v3481 = vmul.f32 %v2954, %v3453
    %v3482 = vmul.f32 %v3038, %v3457
    %v3483 = vmul.f32 %v3040, %v3461
    %v3484 = vmul.f32 %v3124, %v3465
    %v3485 = vmul.f32 %v3126, %v3469
    %v3487 = vlaneseq
    %v3488 = vshrl.u32 %v3487, 7
    %v3489 = vsub.s32 0, %v3488
    %v3490 = vrot.slane %v3437, %v3489
    %v3491 = vlaneseq
    %v3492 = vshrl.u32 %v3491, 7
    %v3493 = vsub.s32 1, %v3492
    %v3494 = vrot.slane %v3437, %v3493
    %v3495 = vlaneseq
    %v3496 = vshrl.u32 %v3495, 7
    %v3497 = vsub.s32 2, %v3496
    %v3498 = vrot.slane %v3437, %v3497
    %v3499 = vlaneseq
    %v3500 = vshrl.u32 %v3499, 7
    %v3501 = vsub.s32 3, %v3500
    %v3502 = vrot.slane %v3437, %v3501
    %v3503 = vlaneseq
    %v3504 = vshrl.u32 %v3503, 7
    %v3505 = vsub.s32 4, %v3504
    %v3506 = vrot.slane %v3437, %v3505
    %v3507 = vlaneseq
    %v3508 = vshrl.u32 %v3507, 7
    %v3509 = vsub.s32 5, %v3508
    %v3510 = vrot.slane %v3437, %v3509
    %v3511 = vlaneseq
    %v3512 = vshrl.u32 %v3511, 7
    %v3513 = vsub.s32 6, %v3512
    %v3514 = vrot.slane %v3437, %v3513
    %v3515 = vlaneseq
    %v3516 = vshrl.u32 %v3515, 7
    %v3517 = vsub.s32 7, %v3516
    %v3518 = vrot.slane %v3437, %v3517
    %v3527 = vadd.f32 %v3470, %v3490
    %v3528 = vadd.f32 %v3471, %v3494
    %v3529 = vadd.f32 %v3472, %v3498
    %v3530 = vadd.f32 %v3473, %v3502
    %v3531 = vadd.f32 %v3474, %v3506
    %v3532 = vadd.f32 %v3475, %v3510
    %v3533 = vadd.f32 %v3476, %v3514
    %v3534 = vadd.f32 %v3477, %v3518
    %v3535 = vadd.f32 %v3478, %v3490
    %v3536 = vadd.f32 %v3479, %v3494
    %v3537 = vadd.f32 %v3480, %v3498
    %v3538 = vadd.f32 %v3481, %v3502
    %v3539 = vadd.f32 %v3482, %v3506
    %v3540 = vadd.f32 %v3483, %v3510
    %v3541 = vadd.f32 %v3484, %v3514
    %v3542 = vadd.f32 %v3485, %v3518
    %v3543 = vmul.f32 %v3527, 0.2
    %v3544 = vmul.f32 %v3528, 0.2
    %v3545 = vmul.f32 %v3529, 0.2
    %v3546 = vmul.f32 %v3530, 0.2
    %v3547 = vmul.f32 %v3531, 0.2
    %v3548 = vmul.f32 %v3532, 0.2
    %v3549 = vmul.f32 %v3533, 0.2
    %v3550 = vmul.f32 %v3534, 0.2
    %v3551 = vmul.f32 %v3535, 0.2
    %v3552 = vmul.f32 %v3536, 0.2
    %v3553 = vmul.f32 %v3537, 0.2
    %v3554 = vmul.f32 %v3538, 0.2
    %v3555 = vmul.f32 %v3539, 0.2
    %v3556 = vmul.f32 %v3540, 0.2
    %v3557 = vmul.f32 %v3541, 0.2
    %v3558 = vmul.f32 %v3542, 0.2
    %v3559 = vmax.f32 %v3527, %v3543
    %v3560 = vmax.f32 %v3528, %v3544
    %v3561 = vmax.f32 %v3529, %v3545
    %v3562 = vmax.f32 %v3530, %v3546
    %v3563 = vmax.f32 %v3531, %v3547
    %v3564 = vmax.f32 %v3532, %v3548
    %v3565 = vmax.f32 %v3533, %v3549
    %v3566 = vmax.f32 %v3534, %v3550
    %v3567 = vmax.f32 %v3535, %v3551
    %v3568 = vmax.f32 %v3536, %v3552
    %v3569 = vmax.f32 %v3537, %v3553
    %v3570 = vmax.f32 %v3538, %v3554
    %v3571 = vmax.f32 %v3539, %v3555
    %v3572 = vmax.f32 %v3540, %v3556
    %v3573 = vmax.f32 %v3541, %v3557
    %v3574 = vmax.f32 %v3542, %v3558
    %v3575 = vpack.c.bf16 %v3567, %v3559
    %v3576 = vpack.c.bf16 %v3568, %v3560
    %v3577 = vpack.c.bf16 %v3569, %v3561
    %v3578 = vpack.c.bf16 %v3570, %v3562
    %v3579 = vpack.c.bf16 %v3571, %v3563
    %v3580 = vpack.c.bf16 %v3572, %v3564
    %v3581 = vpack.c.bf16 %v3573, %v3565
    %v3582 = vpack.c.bf16 %v3574, %v3566
    %v3591 = vunpack.c.l.b16 %v3575
    %v3592 = vunpack.c.l.b16 %v3576
    %v3593 = vunpack.c.l.b16 %v3577
    %v3594 = vunpack.c.l.b16 %v3578
    %v3595 = vunpack.c.l.b16 %v3579
    %v3596 = vunpack.c.l.b16 %v3580
    %v3597 = vunpack.c.l.b16 %v3581
    %v3598 = vunpack.c.l.b16 %v3582
    %v3599 = vunpack.c.h.b16 %v3575
    %v3600 = vunpack.c.h.b16 %v3576
    %v3601 = vunpack.c.h.b16 %v3577
    %v3602 = vunpack.c.h.b16 %v3578
    %v3603 = vunpack.c.h.b16 %v3579
    %v3604 = vunpack.c.h.b16 %v3580
    %v3605 = vunpack.c.h.b16 %v3581
    %v3606 = vunpack.c.h.b16 %v3582
    %v3607 = vpack.c.b16 %v3592, %v3591
    %v3608 = vpack.c.b16 %v3594, %v3593
    %v3609 = vpack.c.b16 %v3596, %v3595
    %v3610 = vpack.c.b16 %v3598, %v3597
    %v3611 = vpack.c.b16 %v3600, %v3599
    %v3612 = vpack.c.b16 %v3602, %v3601
    %v3613 = vpack.c.b16 %v3604, %v3603
    %v3614 = vpack.c.b16 %v3606, %v3605
    %3623 = vst [vmem:[%s15] sm:$0xff] %v3607
    %3624 = vst [vmem:[%s15 + $0x8] sm:$0xff] %v3608
    %3625 = vst [vmem:[%s15 + $0x10] sm:$0xff] %v3609
    %3626 = vst [vmem:[%s15 + $0x18] sm:$0xff] %v3610
    %3627 = vst [vmem:[%s15 + $0x20] sm:$0xff] %v3611
    %3628 = vst [vmem:[%s15 + $0x28] sm:$0xff] %v3612
    %3629 = vst [vmem:[%s15 + $0x30] sm:$0xff] %v3613
    %3630 = vst [vmem:[%s15 + $0x38] sm:$0xff] %v3614
    // Predicated region
    $region86: #{generator_forward.2} parent=1 // pred_check
      _
    $region87: #{generator_forward.2} parent=1 // pred_check_branch
      %3632 = sbr.rel (0) target = $region89
    $region88: #{generator_forward.2} parent=1 // pred_region
      _
    $region89: #{generator_forward.2} parent=1 // pred_fallthru
      _
    // Predicated region
    $region90: #{generator_forward.2} parent=1 // pred_check
      _
    $region91: #{generator_forward.2} parent=1 // pred_check_branch
      %3634 = sbr.rel (0) target = $region93
    $region92: #{generator_forward.2} parent=1 // pred_region
      _
    $region93: #{generator_forward.2} parent=1 // pred_fallthru
      _
    %3635 = vsyncpa [#allocation3], 1
    %3636 = vsyncpa [#allocation5], 1
    %3637 = vsyncpa [#allocation8], 1
    %3638 = vsyncpa [#allocation11], 1

</llo_original>
